<compile_context>
chip_gen: v5e
topology: v5e:2x2
jax: 0.10.0
libtpu: 0.0.40
codegen_flags: <defaults>
</compile_context>

<pallas_src>
import jax
import jax.numpy as jnp
from jax import lax
from jax.experimental import pallas as pl
from jax.experimental.pallas import tpu as pltpu
import numpy as np


def _round_up(x, m):
    return -(-x // m) * m


# ----------------------------- Pallas kernels ------------------------------

def _stacked_tap_conv(x, w_ref, C, Sp, PS, halo, inoffs):
    """3x3x3 conv of x (C, Sp) f32 (zero outside occupied voxels) as 3 MXU matmuls
    with K = 9*C against a stacked shifted-view buffer (bf16 in, f32 accumulate)."""
    Wv = Sp + 2 * PS
    zc = jnp.zeros((C, halo), jnp.float32)
    xe = jnp.concatenate([zc, x, zc], axis=1)                  # (C, Sp + 2*halo), aligned
    # 9 in-plane (ky,kx) shifted views, each wide enough to serve all 3 kz taps.
    # f32 stacking keeps the sublane concat tile-aligned (8-row pieces); cast once.
    views = [xe[:, halo - PS + off: halo - PS + off + Wv] for off in inoffs]
    st = jnp.concatenate(views, axis=0).astype(jnp.bfloat16)   # (9*C, Wv) bf16
    acc = jnp.zeros((C, Sp), jnp.float32)
    for kz in range(3):                                        # kz*PS offsets: lane-aligned
        acc = acc + jnp.dot(w_ref[kz], st[:, kz * PS: kz * PS + Sp],
                            preferred_element_type=jnp.float32)
    return acc


def _make_conv1_kernel(C, Sp, PS, halo, inoffs):
    """SE gate multiply + conv1 (no bias) + BN partial sums for one batch block."""
    def kernel(x_ref, g_ref, m_ref, w_ref, o_ref, s1_ref, s2_ref):
        xg = x_ref[0] * g_ref[0]                               # (C, Sp) gated, masked input
        acc = _stacked_tap_conv(xg, w_ref, C, Sp, PS, halo, inoffs)
        out1 = acc * m_ref[0]                                  # Minkowski: output on input coords
        s1_ref[0] = jnp.sum(out1, axis=1, keepdims=True)       # f32 BN partial sums
        s2_ref[0] = jnp.sum(out1 * out1, axis=1, keepdims=True)
        o_ref[0] = out1.astype(o_ref.dtype)                    # single lane-dense bf16 store
    return kernel


def _make_conv2_kernel(C, Sp, PS, halo, inoffs):
    """BatchNorm(scale/shift) + ReLU fused into the conv2 input path (+ bias), masked."""
    def kernel(x_ref, m_ref, sc_ref, sh_ref, w_ref, b_ref, o_ref):
        m = m_ref[0]                                           # (1, Sp)
        x = x_ref[0].astype(jnp.float32)                       # bf16 out1 -> f32
        y = jnp.maximum(x * sc_ref[...] + sh_ref[...], 0.0) * m
        acc = _stacked_tap_conv(y, w_ref, C, Sp, PS, halo, inoffs)
        o_ref[0] = (acc + b_ref[...]) * m
    return kernel


# ------------------------------ forward pass --------------------------------

def transformer_in_feat_forward(feats, mask, params):
    B, D, H, W, C = feats.shape
    Dp, Hp, Wp = D + 2, H + 2, W + 2
    PS = _round_up(Hp * Wp, 128)          # z-plane stride, lane aligned
    Sp = Dp * PS                          # flattened padded spatial, multiple of 128
    halo = _round_up(PS + Wp + 1, 128)    # >= largest tap offset, lane aligned
    inoffs = [(ky - 1) * Wp + (kx - 1) for ky in range(3) for kx in range(3)]

    # --- SE gate: masked global average pooling + tiny fc (B*C floats) in plain JAX ---
    fm = feats * mask
    cnt = jnp.maximum(jnp.sum(mask, axis=(1, 2, 3)), 1.0)            # (B, 1), /0 guarded
    pooled = jnp.sum(fm, axis=(1, 2, 3)) / cnt                       # (B, C)
    h = jnp.maximum(pooled @ params["w1"] + params["b1"][0], 0.0)
    gate = jax.nn.sigmoid(h @ params["w2"] + params["b2"][0])        # (B, C)
    gate3 = gate[:, :, None]                                         # (B, C, 1)

    # --- lane-dense channels-first layout: (B, c, Dp*PS), plane stride padded to 128 ---
    # TODO(synk): fold this transpose/pad and the pooling above into a single Pallas
    # prologue pass so feats is read once from HBM at production volumes.
    def to_cf(x, nchan):
        xc = jnp.transpose(x, (0, 4, 1, 2, 3))                       # (B, c, D, H, W)
        xc = jnp.pad(xc, ((0, 0), (0, 0), (1, 1), (1, 1), (1, 1)))   # spatial zero pad
        xc = xc.reshape(B, nchan, Dp, Hp * Wp)
        xc = jnp.pad(xc, ((0, 0), (0, 0), (0, 0), (0, PS - Hp * Wp)))
        return xc.reshape(B, nchan, Sp)

    x_sp = to_cf(fm, C)                                              # (B, C, Sp)
    m_sp = to_cf(mask, 1)                                            # (B, 1, Sp)

    # conv weights (27, Cin, Cout) -> (3, Cout, 9*Cin) bf16, grouped by kz
    def prep_w(w):
        w = w.reshape(3, 9, C, C)                 # [kz, j=(ky,kx), ci, co]
        w = jnp.transpose(w, (0, 3, 1, 2))        # [kz, co, j, ci]
        return w.reshape(3, C, 9 * C).astype(jnp.bfloat16)

    w1t = prep_w(params["wc1"])
    w2t = prep_w(params["wc2"])

    perb = lambda shape: pl.BlockSpec(shape, lambda b: (b, 0, 0))    # per-batch block
    shared3 = lambda shape: pl.BlockSpec(shape, lambda b: (0, 0, 0))  # shared block
    shared2 = lambda shape: pl.BlockSpec(shape, lambda b: (0, 0))

    # TODO(synk): at production volumes add a z-slab grid axis (one-plane halo per slab)
    # and pltpu.CORE_PARALLEL on the batch axis to shard across v7x's 2 TensorCores and
    # respect its 64 MiB VMEM; at demo sizes the whole volume fits comfortably.
    cparams = pltpu.CompilerParams(dimension_semantics=("parallel",))

    # --- kernel 1: gated conv1 (stacked-tap bf16 matmul) + BN partial sums ---
    out1, s1, s2 = pl.pallas_call(
        _make_conv1_kernel(C, Sp, PS, halo, inoffs),
        grid=(B,),
        in_specs=[perb((1, C, Sp)), perb((1, C, 1)), perb((1, 1, Sp)),
                  shared3((3, C, 9 * C))],
        out_specs=(perb((1, C, Sp)), perb((1, C, 1)), perb((1, C, 1))),
        out_shape=(jax.ShapeDtypeStruct((B, C, Sp), jnp.bfloat16),
                   jax.ShapeDtypeStruct((B, C, 1), jnp.float32),
                   jax.ShapeDtypeStruct((B, C, 1), jnp.float32)),
        compiler_params=cparams,
    )(x_sp, gate3, m_sp, w1t)

    # --- finalize BatchNorm (training-mode biased stats over occupied voxels only) ---
    n = jnp.maximum(jnp.sum(mask), 1.0)
    mean = jnp.sum(s1[:, :, 0], axis=0) / n                          # (C,)
    var = jnp.maximum(jnp.sum(s2[:, :, 0], axis=0) / n - mean * mean, 0.0)
    inv = lax.rsqrt(var + 1e-5)
    scale = (params["gamma"][0] * inv)[:, None]                      # (C, 1)
    shift = (params["beta"][0] - mean * params["gamma"][0] * inv)[:, None]
    bias2 = params["bc2"][0][:, None]                                # (C, 1)

    # --- kernel 2: BN + ReLU fused into conv2 (+ bias), masked ---
    out2 = pl.pallas_call(
        _make_conv2_kernel(C, Sp, PS, halo, inoffs),
        grid=(B,),
        in_specs=[perb((1, C, Sp)), perb((1, 1, Sp)),
                  shared2((C, 1)), shared2((C, 1)),
                  shared3((3, C, 9 * C)), shared2((C, 1))],
        out_specs=perb((1, C, Sp)),
        out_shape=jax.ShapeDtypeStruct((B, C, Sp), jnp.float32),
        compiler_params=cparams,
    )(out1, m_sp, scale, shift, w2t, bias2)

    # --- back to (B, D, H, W, C): drop plane padding and the spatial zero pad ---
    out = out2.reshape(B, C, Dp, PS)[:, :, :, :Hp * Wp]
    out = out.reshape(B, C, Dp, Hp, Wp)[:, :, 1:-1, 1:-1, 1:-1]
    return jnp.transpose(out, (0, 2, 3, 4, 1))


# --------------------------- pure-JAX reference -----------------------------

def reference_forward(feats, mask, P):
    B, D, H, W, C = feats.shape
    m = mask
    f = feats * m
    cnt = jnp.sum(m, axis=(1, 2, 3))                  # (B, 1)
    pooled = jnp.sum(f, axis=(1, 2, 3)) / cnt         # (B, C)
    h = jnp.maximum(pooled @ P["w1"] + P["b1"][0], 0.0)
    gate = jax.nn.sigmoid(h @ P["w2"] + P["b2"][0])
    gated = f * gate[:, None, None, None, :]
    dn = ("NDHWC", "DHWIO", "NDHWC")
    wc1 = P["wc1"].reshape(3, 3, 3, C, C)
    out1 = lax.conv_general_dilated(gated, wc1, (1, 1, 1), "SAME",
                                    dimension_numbers=dn) * m
    n = jnp.sum(m)
    mean = jnp.sum(out1 * m, axis=(0, 1, 2, 3)) / n
    var = jnp.sum(((out1 - mean) * m) ** 2, axis=(0, 1, 2, 3)) / n
    y = (out1 - mean) * lax.rsqrt(var + 1e-5) * P["gamma"][0] + P["beta"][0]
    y = jnp.maximum(y, 0.0) * m
    wc2 = P["wc2"].reshape(3, 3, 3, C, C)
    out2 = (lax.conv_general_dilated(y, wc2, (1, 1, 1), "SAME",
                                     dimension_numbers=dn) + P["bc2"][0]) * m
    return out2


# --------------------------------- main --------------------------------------

if __name__ == "__main__":
    # in_channels == out_channels == 8 (the module's fc requires this), grid 8^3
    B, D, H, W, C = 2, 8, 8, 8, 8
    R = C // 4
    key = jax.random.PRNGKey(0)
    ks = jax.random.split(key, 10)

    mask = (jax.random.uniform(ks[1], (B, D, H, W, 1)) < 0.6).astype(jnp.float32)
    mask = mask.at[:, 0, 0, 0, 0].set(1.0)            # ensure >=1 point per batch
    feats = jax.random.normal(ks[0], (B, D, H, W, C), jnp.float32) * mask

    params = {
        # fc: MinkowskiLinear(C, C//4) and MinkowskiLinear(C//4, C), bias=True
        "w1": jax.random.normal(ks[2], (C, R), jnp.float32) * 0.3,
        "b1": jax.random.normal(ks[3], (1, R), jnp.float32) * 0.1,
        "w2": jax.random.normal(ks[4], (R, C), jnp.float32) * 0.3,
        "b2": jax.random.normal(ks[5], (1, C), jnp.float32) * 0.1,
        # MinkowskiConvolution kernels: (kernel_volume=27, C_in, C_out)
        "wc1": jax.random.normal(ks[6], (27, C, C), jnp.float32) * 0.1,  # bias=False
        "wc2": jax.random.normal(ks[7], (27, C, C), jnp.float32) * 0.1,
        "bc2": jax.random.normal(ks[8], (1, C), jnp.float32) * 0.1,
        # MinkowskiBatchNorm affine params (PyTorch default init)
        "gamma": jnp.ones((1, C), jnp.float32),
        "beta": jnp.zeros((1, C), jnp.float32),
    }

    out = jax.jit(transformer_in_feat_forward)(feats, mask, params)
    out = jax.block_until_ready(out)

    ref = reference_forward(feats, mask, params)
    np.testing.assert_allclose(np.asarray(out), np.asarray(ref),
                               rtol=2e-2, atol=2e-2)
    print("KERNEL_OK")
</pallas_src>

<mosaic_0001>
module attributes {stable_mosaic.version = 11 : i64} {
  func.func @kernel(%arg0: i32, %arg1: memref<1x8x1280xf32, #tpu.memory_space<vmem>>, %arg2: memref<1x8x1xf32, #tpu.memory_space<vmem>>, %arg3: memref<1x1x1280xf32, #tpu.memory_space<vmem>>, %arg4: memref<3x8x72xbf16, #tpu.memory_space<vmem>>, %arg5: memref<1x8x1280xbf16, #tpu.memory_space<vmem>>, %arg6: memref<1x8x1xf32, #tpu.memory_space<vmem>>, %arg7: memref<1x8x1xf32, #tpu.memory_space<vmem>>) attributes {dimension_semantics = [#tpu.dimension_semantics<parallel>], iteration_bounds = array<i64: 2>, scalar_prefetch = 0 : i64, scratch_operands = 0 : i64, tpu.core_type = #tpu.core_type<tc>, window_params = [{transform_indices = @transform_0, window_bounds = array<i64: 1, 8, 1280>}, {transform_indices = @transform_1, window_bounds = array<i64: 1, 8, 1>}, {transform_indices = @transform_2, window_bounds = array<i64: 1, 1, 1280>}, {pipeline_mode = #tpu.pipeline_mode<synchronous>, transform_indices = @transform_3, window_bounds = array<i64: 3, 8, 72>}, {transform_indices = @transform_4, window_bounds = array<i64: 1, 8, 1280>}, {transform_indices = @transform_5, window_bounds = array<i64: 1, 8, 1>}, {transform_indices = @transform_6, window_bounds = array<i64: 1, 8, 1>}]} {
    %c0 = arith.constant 0 : index
    %c0_0 = arith.constant 0 : index
    %c0_1 = arith.constant 0 : index
    %0 = vector.load %arg1[%c0, %c0_0, %c0_1] : memref<1x8x1280xf32, #tpu.memory_space<vmem>>, vector<1x8x1280xf32>
    %1 = vector.shape_cast %0 : vector<1x8x1280xf32> to vector<8x1280xf32>
    %c0_2 = arith.constant 0 : index
    %c0_3 = arith.constant 0 : index
    %c0_4 = arith.constant 0 : index
    %2 = vector.load %arg2[%c0_2, %c0_3, %c0_4] : memref<1x8x1xf32, #tpu.memory_space<vmem>>, vector<1x8x1xf32>
    %3 = vector.shape_cast %2 : vector<1x8x1xf32> to vector<8x1xf32>
    %4 = vector.broadcast %3 : vector<8x1xf32> to vector<8x1280xf32>
    %5 = arith.mulf %1, %4 : vector<8x1280xf32>
    %cst = arith.constant 0.000000e+00 : f32
    %6 = vector.broadcast %cst : f32 to vector<8x256xf32>
    %7 = tpu.concatenate %6, %5, %6 in 1 : vector<8x256xf32>, vector<8x1280xf32>, vector<8x256xf32> -> vector<8x1792xf32>
    %8 = vector.extract_strided_slice %7 {offsets = [0, 117], sizes = [8, 1536], strides = [1, 1]} : vector<8x1792xf32> to vector<8x1536xf32>
    %9 = vector.extract_strided_slice %7 {offsets = [0, 118], sizes = [8, 1536], strides = [1, 1]} : vector<8x1792xf32> to vector<8x1536xf32>
    %10 = vector.extract_strided_slice %7 {offsets = [0, 119], sizes = [8, 1536], strides = [1, 1]} : vector<8x1792xf32> to vector<8x1536xf32>
    %11 = vector.extract_strided_slice %7 {offsets = [0, 127], sizes = [8, 1536], strides = [1, 1]} : vector<8x1792xf32> to vector<8x1536xf32>
    %12 = vector.extract_strided_slice %7 {offsets = [0, 128], sizes = [8, 1536], strides = [1, 1]} : vector<8x1792xf32> to vector<8x1536xf32>
    %13 = vector.extract_strided_slice %7 {offsets = [0, 129], sizes = [8, 1536], strides = [1, 1]} : vector<8x1792xf32> to vector<8x1536xf32>
    %14 = vector.extract_strided_slice %7 {offsets = [0, 137], sizes = [8, 1536], strides = [1, 1]} : vector<8x1792xf32> to vector<8x1536xf32>
    %15 = vector.extract_strided_slice %7 {offsets = [0, 138], sizes = [8, 1536], strides = [1, 1]} : vector<8x1792xf32> to vector<8x1536xf32>
    %16 = vector.extract_strided_slice %7 {offsets = [0, 139], sizes = [8, 1536], strides = [1, 1]} : vector<8x1792xf32> to vector<8x1536xf32>
    %17 = tpu.concatenate %8, %9, %10, %11, %12, %13, %14, %15, %16 in 0 : vector<8x1536xf32>, vector<8x1536xf32>, vector<8x1536xf32>, vector<8x1536xf32>, vector<8x1536xf32>, vector<8x1536xf32>, vector<8x1536xf32>, vector<8x1536xf32>, vector<8x1536xf32> -> vector<72x1536xf32>
    %18 = arith.truncf %17 : vector<72x1536xf32> to vector<72x1536xbf16>
    %cst_5 = arith.constant 0.000000e+00 : f32
    %19 = vector.broadcast %cst_5 : f32 to vector<8x1280xf32>
    %c0_6 = arith.constant 0 : index
    %c0_7 = arith.constant 0 : index
    %c0_8 = arith.constant 0 : index
    %20 = vector.load %arg4[%c0_6, %c0_7, %c0_8] : memref<3x8x72xbf16, #tpu.memory_space<vmem>>, vector<1x8x72xbf16>
    %21 = vector.shape_cast %20 : vector<1x8x72xbf16> to vector<8x72xbf16>
    %22 = vector.extract_strided_slice %18 {offsets = [0, 0], sizes = [72, 1280], strides = [1, 1]} : vector<72x1536xbf16> to vector<72x1280xbf16>
    %cst_9 = arith.constant dense<0.000000e+00> : vector<8x1280xf32>
    %23 = tpu.matmul %21, %22, %cst_9 {dimension_numbers = #tpu.dot_dimension_numbers<[1], [0], [0], [1], [0, 0, 1, 1], [], []>} : vector<8x72xbf16>, vector<72x1280xbf16>, vector<8x1280xf32> -> vector<8x1280xf32>
    %24 = arith.addf %19, %23 : vector<8x1280xf32>
    %c1 = arith.constant 1 : index
    %c0_10 = arith.constant 0 : index
    %c0_11 = arith.constant 0 : index
    %25 = vector.load %arg4[%c1, %c0_10, %c0_11] : memref<3x8x72xbf16, #tpu.memory_space<vmem>>, vector<1x8x72xbf16>
    %26 = vector.shape_cast %25 : vector<1x8x72xbf16> to vector<8x72xbf16>
    %27 = vector.extract_strided_slice %18 {offsets = [0, 128], sizes = [72, 1280], strides = [1, 1]} : vector<72x1536xbf16> to vector<72x1280xbf16>
    %cst_12 = arith.constant dense<0.000000e+00> : vector<8x1280xf32>
    %28 = tpu.matmul %26, %27, %cst_12 {dimension_numbers = #tpu.dot_dimension_numbers<[1], [0], [0], [1], [0, 0, 1, 1], [], []>} : vector<8x72xbf16>, vector<72x1280xbf16>, vector<8x1280xf32> -> vector<8x1280xf32>
    %29 = arith.addf %24, %28 : vector<8x1280xf32>
    %c2 = arith.constant 2 : index
    %c0_13 = arith.constant 0 : index
    %c0_14 = arith.constant 0 : index
    %30 = vector.load %arg4[%c2, %c0_13, %c0_14] : memref<3x8x72xbf16, #tpu.memory_space<vmem>>, vector<1x8x72xbf16>
    %31 = vector.shape_cast %30 : vector<1x8x72xbf16> to vector<8x72xbf16>
    %32 = vector.extract_strided_slice %18 {offsets = [0, 256], sizes = [72, 1280], strides = [1, 1]} : vector<72x1536xbf16> to vector<72x1280xbf16>
    %cst_15 = arith.constant dense<0.000000e+00> : vector<8x1280xf32>
    %33 = tpu.matmul %31, %32, %cst_15 {dimension_numbers = #tpu.dot_dimension_numbers<[1], [0], [0], [1], [0, 0, 1, 1], [], []>} : vector<8x72xbf16>, vector<72x1280xbf16>, vector<8x1280xf32> -> vector<8x1280xf32>
    %34 = arith.addf %29, %33 : vector<8x1280xf32>
    %c0_16 = arith.constant 0 : index
    %c0_17 = arith.constant 0 : index
    %c0_18 = arith.constant 0 : index
    %35 = vector.load %arg3[%c0_16, %c0_17, %c0_18] : memref<1x1x1280xf32, #tpu.memory_space<vmem>>, vector<1x1x1280xf32>
    %36 = vector.shape_cast %35 : vector<1x1x1280xf32> to vector<1x1280xf32>
    %37 = vector.broadcast %36 : vector<1x1280xf32> to vector<8x1280xf32>
    %38 = arith.mulf %34, %37 : vector<8x1280xf32>
    %cst_19 = arith.constant dense<0.000000e+00> : vector<8xf32>
    %39 = vector.multi_reduction <add>, %38, %cst_19 [1] : vector<8x1280xf32> to vector<8xf32>
    %40 = vector.shape_cast %39 : vector<8xf32> to vector<8x1xf32>
    %c0_20 = arith.constant 0 : index
    %c0_21 = arith.constant 0 : index
    %c0_22 = arith.constant 0 : index
    %41 = vector.load %arg6[%c0_20, %c0_21, %c0_22] : memref<1x8x1xf32, #tpu.memory_space<vmem>>, vector<1x8x1xf32>
    %42 = vector.shape_cast %41 : vector<1x8x1xf32> to vector<8x1xf32>
    %43 = vector.shape_cast %40 : vector<8x1xf32> to vector<1x8x1xf32>
    tpu.vector_store %arg6[%c0_20, %c0_21, %c0_22], %43 {strides = array<i32>} : memref<1x8x1xf32, #tpu.memory_space<vmem>>, vector<1x8x1xf32>,
    %44 = arith.mulf %38, %38 : vector<8x1280xf32>
    %cst_23 = arith.constant dense<0.000000e+00> : vector<8xf32>
    %45 = vector.multi_reduction <add>, %44, %cst_23 [1] : vector<8x1280xf32> to vector<8xf32>
    %46 = vector.shape_cast %45 : vector<8xf32> to vector<8x1xf32>
    %c0_24 = arith.constant 0 : index
    %c0_25 = arith.constant 0 : index
    %c0_26 = arith.constant 0 : index
    %47 = vector.load %arg7[%c0_24, %c0_25, %c0_26] : memref<1x8x1xf32, #tpu.memory_space<vmem>>, vector<1x8x1xf32>
    %48 = vector.shape_cast %47 : vector<1x8x1xf32> to vector<8x1xf32>
    %49 = vector.shape_cast %46 : vector<8x1xf32> to vector<1x8x1xf32>
    tpu.vector_store %arg7[%c0_24, %c0_25, %c0_26], %49 {strides = array<i32>} : memref<1x8x1xf32, #tpu.memory_space<vmem>>, vector<1x8x1xf32>,
    %50 = arith.truncf %38 : vector<8x1280xf32> to vector<8x1280xbf16>
    %c0_27 = arith.constant 0 : index
    %c0_28 = arith.constant 0 : index
    %c0_29 = arith.constant 0 : index
    %51 = vector.load %arg5[%c0_27, %c0_28, %c0_29] : memref<1x8x1280xbf16, #tpu.memory_space<vmem>>, vector<1x8x1280xbf16>
    %52 = vector.shape_cast %51 : vector<1x8x1280xbf16> to vector<8x1280xbf16>
    %53 = vector.shape_cast %50 : vector<8x1280xbf16> to vector<1x8x1280xbf16>
    tpu.vector_store %arg5[%c0_27, %c0_28, %c0_29], %53 {strides = array<i32>} : memref<1x8x1280xbf16, #tpu.memory_space<vmem>>, vector<1x8x1280xbf16>,
    return
  }
  func.func @transform_0(%arg0: i32) -> (i32, i32, i32) {
    %c0_i32 = arith.constant 0 : i32
    %c0_i32_0 = arith.constant 0 : i32
    %c0_i32_1 = arith.constant 0 : i32
    return %arg0, %c0_i32, %c0_i32_0 : i32, i32, i32
  }
  func.func @transform_1(%arg0: i32) -> (i32, i32, i32) {
    %c0_i32 = arith.constant 0 : i32
    %c0_i32_0 = arith.constant 0 : i32
    %c0_i32_1 = arith.constant 0 : i32
    return %arg0, %c0_i32, %c0_i32_0 : i32, i32, i32
  }
  func.func @transform_2(%arg0: i32) -> (i32, i32, i32) {
    %c0_i32 = arith.constant 0 : i32
    %c0_i32_0 = arith.constant 0 : i32
    %c0_i32_1 = arith.constant 0 : i32
    return %arg0, %c0_i32, %c0_i32_0 : i32, i32, i32
  }
  func.func @transform_3(%arg0: i32) -> (i32, i32, i32) {
    %c0_i32 = arith.constant 0 : i32
    %c0_i32_0 = arith.constant 0 : i32
    %c0_i32_1 = arith.constant 0 : i32
    %c0_i32_2 = arith.constant 0 : i32
    return %c0_i32, %c0_i32_0, %c0_i32_1 : i32, i32, i32
  }
  func.func @transform_4(%arg0: i32) -> (i32, i32, i32) {
    %c0_i32 = arith.constant 0 : i32
    %c0_i32_0 = arith.constant 0 : i32
    %c0_i32_1 = arith.constant 0 : i32
    return %arg0, %c0_i32, %c0_i32_0 : i32, i32, i32
  }
  func.func @transform_5(%arg0: i32) -> (i32, i32, i32) {
    %c0_i32 = arith.constant 0 : i32
    %c0_i32_0 = arith.constant 0 : i32
    %c0_i32_1 = arith.constant 0 : i32
    return %arg0, %c0_i32, %c0_i32_0 : i32, i32, i32
  }
  func.func @transform_6(%arg0: i32) -> (i32, i32, i32) {
    %c0_i32 = arith.constant 0 : i32
    %c0_i32_0 = arith.constant 0 : i32
    %c0_i32_1 = arith.constant 0 : i32
    return %arg0, %c0_i32, %c0_i32_0 : i32, i32, i32
  }
}

module attributes {stable_mosaic.version = 11 : i64} {
  func.func @kernel(%arg0: i32, %arg1: memref<1x8x1280xbf16, #tpu.memory_space<vmem>>, %arg2: memref<1x1x1280xf32, #tpu.memory_space<vmem>>, %arg3: memref<8x1xf32, #tpu.memory_space<vmem>>, %arg4: memref<8x1xf32, #tpu.memory_space<vmem>>, %arg5: memref<3x8x72xbf16, #tpu.memory_space<vmem>>, %arg6: memref<8x1xf32, #tpu.memory_space<vmem>>, %arg7: memref<1x8x1280xf32, #tpu.memory_space<vmem>>) attributes {dimension_semantics = [#tpu.dimension_semantics<parallel>], iteration_bounds = array<i64: 2>, scalar_prefetch = 0 : i64, scratch_operands = 0 : i64, tpu.core_type = #tpu.core_type<tc>, window_params = [{transform_indices = @transform_0, window_bounds = array<i64: 1, 8, 1280>}, {transform_indices = @transform_1, window_bounds = array<i64: 1, 1, 1280>}, {pipeline_mode = #tpu.pipeline_mode<synchronous>, transform_indices = @transform_2, window_bounds = array<i64: 8, 1>}, {pipeline_mode = #tpu.pipeline_mode<synchronous>, transform_indices = @transform_3, window_bounds = array<i64: 8, 1>}, {pipeline_mode = #tpu.pipeline_mode<synchronous>, transform_indices = @transform_4, window_bounds = array<i64: 3, 8, 72>}, {pipeline_mode = #tpu.pipeline_mode<synchronous>, transform_indices = @transform_5, window_bounds = array<i64: 8, 1>}, {transform_indices = @transform_6, window_bounds = array<i64: 1, 8, 1280>}]} {
    %c0 = arith.constant 0 : index
    %c0_0 = arith.constant 0 : index
    %c0_1 = arith.constant 0 : index
    %0 = vector.load %arg2[%c0, %c0_0, %c0_1] : memref<1x1x1280xf32, #tpu.memory_space<vmem>>, vector<1x1x1280xf32>
    %1 = vector.shape_cast %0 : vector<1x1x1280xf32> to vector<1x1280xf32>
    %c0_2 = arith.constant 0 : index
    %c0_3 = arith.constant 0 : index
    %c0_4 = arith.constant 0 : index
    %2 = vector.load %arg1[%c0_2, %c0_3, %c0_4] : memref<1x8x1280xbf16, #tpu.memory_space<vmem>>, vector<1x8x1280xbf16>
    %3 = vector.shape_cast %2 : vector<1x8x1280xbf16> to vector<8x1280xbf16>
    %4 = arith.extf %3 : vector<8x1280xbf16> to vector<8x1280xf32>
    %c0_5 = arith.constant 0 : index
    %c0_6 = arith.constant 0 : index
    %5 = vector.load %arg3[%c0_5, %c0_6] : memref<8x1xf32, #tpu.memory_space<vmem>>, vector<8x1xf32>
    %6 = vector.broadcast %5 : vector<8x1xf32> to vector<8x1280xf32>
    %7 = arith.mulf %4, %6 : vector<8x1280xf32>
    %c0_7 = arith.constant 0 : index
    %c0_8 = arith.constant 0 : index
    %8 = vector.load %arg4[%c0_7, %c0_8] : memref<8x1xf32, #tpu.memory_space<vmem>>, vector<8x1xf32>
    %9 = vector.broadcast %8 : vector<8x1xf32> to vector<8x1280xf32>
    %10 = arith.addf %7, %9 : vector<8x1280xf32>
    %cst = arith.constant 0.000000e+00 : f32
    %11 = vector.broadcast %cst : f32 to vector<8x1280xf32>
    %12 = arith.maximumf %10, %11 : vector<8x1280xf32>
    %13 = vector.broadcast %1 : vector<1x1280xf32> to vector<8x1280xf32>
    %14 = arith.mulf %12, %13 : vector<8x1280xf32>
    %cst_9 = arith.constant 0.000000e+00 : f32
    %15 = vector.broadcast %cst_9 : f32 to vector<8x256xf32>
    %16 = tpu.concatenate %15, %14, %15 in 1 : vector<8x256xf32>, vector<8x1280xf32>, vector<8x256xf32> -> vector<8x1792xf32>
    %17 = vector.extract_strided_slice %16 {offsets = [0, 117], sizes = [8, 1536], strides = [1, 1]} : vector<8x1792xf32> to vector<8x1536xf32>
    %18 = vector.extract_strided_slice %16 {offsets = [0, 118], sizes = [8, 1536], strides = [1, 1]} : vector<8x1792xf32> to vector<8x1536xf32>
    %19 = vector.extract_strided_slice %16 {offsets = [0, 119], sizes = [8, 1536], strides = [1, 1]} : vector<8x1792xf32> to vector<8x1536xf32>
    %20 = vector.extract_strided_slice %16 {offsets = [0, 127], sizes = [8, 1536], strides = [1, 1]} : vector<8x1792xf32> to vector<8x1536xf32>
    %21 = vector.extract_strided_slice %16 {offsets = [0, 128], sizes = [8, 1536], strides = [1, 1]} : vector<8x1792xf32> to vector<8x1536xf32>
    %22 = vector.extract_strided_slice %16 {offsets = [0, 129], sizes = [8, 1536], strides = [1, 1]} : vector<8x1792xf32> to vector<8x1536xf32>
    %23 = vector.extract_strided_slice %16 {offsets = [0, 137], sizes = [8, 1536], strides = [1, 1]} : vector<8x1792xf32> to vector<8x1536xf32>
    %24 = vector.extract_strided_slice %16 {offsets = [0, 138], sizes = [8, 1536], strides = [1, 1]} : vector<8x1792xf32> to vector<8x1536xf32>
    %25 = vector.extract_strided_slice %16 {offsets = [0, 139], sizes = [8, 1536], strides = [1, 1]} : vector<8x1792xf32> to vector<8x1536xf32>
    %26 = tpu.concatenate %17, %18, %19, %20, %21, %22, %23, %24, %25 in 0 : vector<8x1536xf32>, vector<8x1536xf32>, vector<8x1536xf32>, vector<8x1536xf32>, vector<8x1536xf32>, vector<8x1536xf32>, vector<8x1536xf32>, vector<8x1536xf32>, vector<8x1536xf32> -> vector<72x1536xf32>
    %27 = arith.truncf %26 : vector<72x1536xf32> to vector<72x1536xbf16>
    %cst_10 = arith.constant 0.000000e+00 : f32
    %28 = vector.broadcast %cst_10 : f32 to vector<8x1280xf32>
    %c0_11 = arith.constant 0 : index
    %c0_12 = arith.constant 0 : index
    %c0_13 = arith.constant 0 : index
    %29 = vector.load %arg5[%c0_11, %c0_12, %c0_13] : memref<3x8x72xbf16, #tpu.memory_space<vmem>>, vector<1x8x72xbf16>
    %30 = vector.shape_cast %29 : vector<1x8x72xbf16> to vector<8x72xbf16>
    %31 = vector.extract_strided_slice %27 {offsets = [0, 0], sizes = [72, 1280], strides = [1, 1]} : vector<72x1536xbf16> to vector<72x1280xbf16>
    %cst_14 = arith.constant dense<0.000000e+00> : vector<8x1280xf32>
    %32 = tpu.matmul %30, %31, %cst_14 {dimension_numbers = #tpu.dot_dimension_numbers<[1], [0], [0], [1], [0, 0, 1, 1], [], []>} : vector<8x72xbf16>, vector<72x1280xbf16>, vector<8x1280xf32> -> vector<8x1280xf32>
    %33 = arith.addf %28, %32 : vector<8x1280xf32>
    %c1 = arith.constant 1 : index
    %c0_15 = arith.constant 0 : index
    %c0_16 = arith.constant 0 : index
    %34 = vector.load %arg5[%c1, %c0_15, %c0_16] : memref<3x8x72xbf16, #tpu.memory_space<vmem>>, vector<1x8x72xbf16>
    %35 = vector.shape_cast %34 : vector<1x8x72xbf16> to vector<8x72xbf16>
    %36 = vector.extract_strided_slice %27 {offsets = [0, 128], sizes = [72, 1280], strides = [1, 1]} : vector<72x1536xbf16> to vector<72x1280xbf16>
    %cst_17 = arith.constant dense<0.000000e+00> : vector<8x1280xf32>
    %37 = tpu.matmul %35, %36, %cst_17 {dimension_numbers = #tpu.dot_dimension_numbers<[1], [0], [0], [1], [0, 0, 1, 1], [], []>} : vector<8x72xbf16>, vector<72x1280xbf16>, vector<8x1280xf32> -> vector<8x1280xf32>
    %38 = arith.addf %33, %37 : vector<8x1280xf32>
    %c2 = arith.constant 2 : index
    %c0_18 = arith.constant 0 : index
    %c0_19 = arith.constant 0 : index
    %39 = vector.load %arg5[%c2, %c0_18, %c0_19] : memref<3x8x72xbf16, #tpu.memory_space<vmem>>, vector<1x8x72xbf16>
    %40 = vector.shape_cast %39 : vector<1x8x72xbf16> to vector<8x72xbf16>
    %41 = vector.extract_strided_slice %27 {offsets = [0, 256], sizes = [72, 1280], strides = [1, 1]} : vector<72x1536xbf16> to vector<72x1280xbf16>
    %cst_20 = arith.constant dense<0.000000e+00> : vector<8x1280xf32>
    %42 = tpu.matmul %40, %41, %cst_20 {dimension_numbers = #tpu.dot_dimension_numbers<[1], [0], [0], [1], [0, 0, 1, 1], [], []>} : vector<8x72xbf16>, vector<72x1280xbf16>, vector<8x1280xf32> -> vector<8x1280xf32>
    %43 = arith.addf %38, %42 : vector<8x1280xf32>
    %c0_21 = arith.constant 0 : index
    %c0_22 = arith.constant 0 : index
    %44 = vector.load %arg6[%c0_21, %c0_22] : memref<8x1xf32, #tpu.memory_space<vmem>>, vector<8x1xf32>
    %45 = vector.broadcast %44 : vector<8x1xf32> to vector<8x1280xf32>
    %46 = arith.addf %43, %45 : vector<8x1280xf32>
    %47 = vector.broadcast %1 : vector<1x1280xf32> to vector<8x1280xf32>
    %48 = arith.mulf %46, %47 : vector<8x1280xf32>
    %c0_23 = arith.constant 0 : index
    %c0_24 = arith.constant 0 : index
    %c0_25 = arith.constant 0 : index
    %49 = vector.load %arg7[%c0_23, %c0_24, %c0_25] : memref<1x8x1280xf32, #tpu.memory_space<vmem>>, vector<1x8x1280xf32>
    %50 = vector.shape_cast %49 : vector<1x8x1280xf32> to vector<8x1280xf32>
    %51 = vector.shape_cast %48 : vector<8x1280xf32> to vector<1x8x1280xf32>
    tpu.vector_store %arg7[%c0_23, %c0_24, %c0_25], %51 {strides = array<i32>} : memref<1x8x1280xf32, #tpu.memory_space<vmem>>, vector<1x8x1280xf32>,
    return
  }
  func.func @transform_0(%arg0: i32) -> (i32, i32, i32) {
    %c0_i32 = arith.constant 0 : i32
    %c0_i32_0 = arith.constant 0 : i32
    %c0_i32_1 = arith.constant 0 : i32
    return %arg0, %c0_i32, %c0_i32_0 : i32, i32, i32
  }
  func.func @transform_1(%arg0: i32) -> (i32, i32, i32) {
    %c0_i32 = arith.constant 0 : i32
    %c0_i32_0 = arith.constant 0 : i32
    %c0_i32_1 = arith.constant 0 : i32
    return %arg0, %c0_i32, %c0_i32_0 : i32, i32, i32
  }
  func.func @transform_2(%arg0: i32) -> (i32, i32) {
    %c0_i32 = arith.constant 0 : i32
    %c0_i32_0 = arith.constant 0 : i32
    %c0_i32_1 = arith.constant 0 : i32
    return %c0_i32, %c0_i32_0 : i32, i32
  }
  func.func @transform_3(%arg0: i32) -> (i32, i32) {
    %c0_i32 = arith.constant 0 : i32
    %c0_i32_0 = arith.constant 0 : i32
    %c0_i32_1 = arith.constant 0 : i32
    return %c0_i32, %c0_i32_0 : i32, i32
  }
  func.func @transform_4(%arg0: i32) -> (i32, i32, i32) {
    %c0_i32 = arith.constant 0 : i32
    %c0_i32_0 = arith.constant 0 : i32
    %c0_i32_1 = arith.constant 0 : i32
    %c0_i32_2 = arith.constant 0 : i32
    return %c0_i32, %c0_i32_0, %c0_i32_1 : i32, i32, i32
  }
  func.func @transform_5(%arg0: i32) -> (i32, i32) {
    %c0_i32 = arith.constant 0 : i32
    %c0_i32_0 = arith.constant 0 : i32
    %c0_i32_1 = arith.constant 0 : i32
    return %c0_i32, %c0_i32_0 : i32, i32
  }
  func.func @transform_6(%arg0: i32) -> (i32, i32, i32) {
    %c0_i32 = arith.constant 0 : i32
    %c0_i32_0 = arith.constant 0 : i32
    %c0_i32_1 = arith.constant 0 : i32
    return %arg0, %c0_i32, %c0_i32_0 : i32, i32, i32
  }
}

</mosaic_0001>

<llo_original>
// kernel: transformer_in_feat_forward.3
$region0: #{transformer_in_feat_forward.3}
  #allocation0 [shape = 'u32[]', space=smem, size = 0x4, offset = 0x4, fixed_abs, tag = 'smem constant byte address 0x4 - core index']
  #allocation1 [shape = 'u32[72,128]{1,0:T(1,128)}', space=vmem, size = 0x9000, scoped, tag = 'internal scratch']
  %s0 = inlined_call_operand.vmem [shape: bf16[2,8,1280], index: 0, kind: input, shape index: {}]
  %s1 = inlined_call_operand.vmem [shape: f32[2,1,1280], index: 1, kind: input, shape index: {}]
  %s2 = inlined_call_operand.vmem [shape: f32[8,1], index: 2, kind: input, shape index: {}]
  %s3 = inlined_call_operand.vmem [shape: f32[8,1], index: 3, kind: input, shape index: {}]
  %s4 = inlined_call_operand.vmem [shape: bf16[3,8,72], index: 4, kind: input, shape index: {}]
  %s5 = inlined_call_operand.vmem [shape: f32[8,1], index: 5, kind: input, shape index: {}]
  %s6 = inlined_call_operand.vmem [shape: f32[2,8,1280], index: 6, kind: output, shape index: {}]
  %s7 = sld [smem:[#allocation0]]
  $region57: #{transformer_in_feat_forward.3} parent=0
    _
  %s9 = ssub.s32 1, %s7
  %s10 = scalar_select 0, %s9, %s7
  loop: start=0, step=1, limit=4
  $region2: #{transformer_in_feat_forward.3} parent=0 // loop_pre_header
    _
  $region3: #{transformer_in_feat_forward.3} parent=0 // loop_header
    %s12 = sphi 0, %s16
    %p13 = scmp.ge.s32.totalorder %s12, 4
    %s22 = sphi 0, %s24
    %s25 = sphi 0, %s22
    %s26 = sphi 0, %s25
    %s42 = sphi 0, %s26
    %s48 = sphi 0, %s50
    %s51 = sphi 0, %s48
    %s52 = sphi 0, %s51
    %s68 = sphi 0, %s52
    %s72 = sphi 0, %s72
    %s74 = sphi 0, %s72
    %s75 = sphi 0, %s74
    %s89 = sphi 0, %s75
    %s93 = sphi 0, %s93
    %s95 = sphi 0, %s93
    %s96 = sphi 0, %s95
    %s110 = sphi 0, %s96
    %s114 = sphi 0, %s114
    %s116 = sphi 0, %s114
    %s117 = sphi 0, %s116
    %s131 = sphi 0, %s117
    %s135 = sphi 0, %s135
    %s137 = sphi 0, %s135
    %s138 = sphi 0, %s137
    %s152 = sphi 0, %s138
    %s158 = sphi 0, %s160
    %s161 = sphi 0, %s158
    %s162 = sphi 0, %s161
    %s178 = sphi 0, %s162
  $region4: #{transformer_in_feat_forward.3} parent=0 // loop_header_branch
    %15 = sbr.rel (%p13) target = $region8
  $region5: #{transformer_in_feat_forward.3} parent=0 // loop_body
    %s17 = ssub.s32 %s12, 1
    %s18 = ssub.s32 %s12, 2
    %s19 = sadd.s32 %s12, 1
    %s20 = ssub.s32 %s12, %s19
    %p21 = scmp.eq.s32.totalorder %s20, 0
    %s23 = sadd.s32 %s22, 1
    %s24 = scalar_select %p21, %s22, %s23
    %p27 = pneg %p21
    %p28 = scmp.eq.s32.totalorder %s12, 1
    %p29 = por %p27, %p28
    %p30 = scmp.ne.s32.totalorder %s22, %s25
    %p31 = scmp.eq.s32.totalorder %s12, 0
    %p32 = por %p30, %p31
    %p33 = scmp.ne.s32.totalorder %s22, %s25
    %p34 = scmp.eq.s32.totalorder %s17, 1
    %p35 = por %p33, %p34
    %p36 = scmp.ne.s32.totalorder %s25, %s26
    %p37 = scmp.eq.s32.totalorder %s17, 0
    %p38 = por %p36, %p37
    %p39 = scmp.ne.s32.totalorder %s25, %s26
    %p40 = scmp.eq.s32.totalorder %s18, 1
    %p41 = por %p39, %p40
    %p43 = scmp.ne.s32.totalorder %s26, %s42
    %p44 = scmp.eq.s32.totalorder %s18, 0
    %p45 = por %p43, %p44
    %s46 = ssub.s32 %s12, %s19
    %p47 = scmp.eq.s32.totalorder %s46, 0
    %s49 = sadd.s32 %s48, 1
    %s50 = scalar_select %p47, %s48, %s49
    %p53 = pneg %p47
    %p54 = scmp.eq.s32.totalorder %s12, 1
    %p55 = por %p53, %p54
    %p56 = scmp.ne.s32.totalorder %s48, %s51
    %p57 = scmp.eq.s32.totalorder %s12, 0
    %p58 = por %p56, %p57
    %p59 = scmp.ne.s32.totalorder %s48, %s51
    %p60 = scmp.eq.s32.totalorder %s17, 1
    %p61 = por %p59, %p60
    %p62 = scmp.ne.s32.totalorder %s51, %s52
    %p63 = scmp.eq.s32.totalorder %s17, 0
    %p64 = por %p62, %p63
    %p65 = scmp.ne.s32.totalorder %s51, %s52
    %p66 = scmp.eq.s32.totalorder %s18, 1
    %p67 = por %p65, %p66
    %p69 = scmp.ne.s32.totalorder %s52, %s68
    %p70 = scmp.eq.s32.totalorder %s18, 0
    %p71 = por %p69, %p70
    %s73 = sadd.s32 %s72, 1
    %p76 = scmp.eq.s32.totalorder %s12, 1
    %p77 = scmp.ne.s32.totalorder %s72, %s74
    %p78 = scmp.eq.s32.totalorder %s12, 0
    %p79 = por %p77, %p78
    %p80 = scmp.ne.s32.totalorder %s72, %s74
    %p81 = scmp.eq.s32.totalorder %s17, 1
    %p82 = por %p80, %p81
    %p83 = scmp.ne.s32.totalorder %s74, %s75
    %p84 = scmp.eq.s32.totalorder %s17, 0
    %p85 = por %p83, %p84
    %p86 = scmp.ne.s32.totalorder %s74, %s75
    %p87 = scmp.eq.s32.totalorder %s18, 1
    %p88 = por %p86, %p87
    %p90 = scmp.ne.s32.totalorder %s75, %s89
    %p91 = scmp.eq.s32.totalorder %s18, 0
    %p92 = por %p90, %p91
    %s94 = sadd.s32 %s93, 1
    %p97 = scmp.eq.s32.totalorder %s12, 1
    %p98 = scmp.ne.s32.totalorder %s93, %s95
    %p99 = scmp.eq.s32.totalorder %s12, 0
    %p100 = por %p98, %p99
    %p101 = scmp.ne.s32.totalorder %s93, %s95
    %p102 = scmp.eq.s32.totalorder %s17, 1
    %p103 = por %p101, %p102
    %p104 = scmp.ne.s32.totalorder %s95, %s96
    %p105 = scmp.eq.s32.totalorder %s17, 0
    %p106 = por %p104, %p105
    %p107 = scmp.ne.s32.totalorder %s95, %s96
    %p108 = scmp.eq.s32.totalorder %s18, 1
    %p109 = por %p107, %p108
    %p111 = scmp.ne.s32.totalorder %s96, %s110
    %p112 = scmp.eq.s32.totalorder %s18, 0
    %p113 = por %p111, %p112
    %s115 = sadd.s32 %s114, 1
    %p118 = scmp.eq.s32.totalorder %s12, 1
    %p119 = scmp.ne.s32.totalorder %s114, %s116
    %p120 = scmp.eq.s32.totalorder %s12, 0
    %p121 = por %p119, %p120
    %p122 = scmp.ne.s32.totalorder %s114, %s116
    %p123 = scmp.eq.s32.totalorder %s17, 1
    %p124 = por %p122, %p123
    %p125 = scmp.ne.s32.totalorder %s116, %s117
    %p126 = scmp.eq.s32.totalorder %s17, 0
    %p127 = por %p125, %p126
    %p128 = scmp.ne.s32.totalorder %s116, %s117
    %p129 = scmp.eq.s32.totalorder %s18, 1
    %p130 = por %p128, %p129
    %p132 = scmp.ne.s32.totalorder %s117, %s131
    %p133 = scmp.eq.s32.totalorder %s18, 0
    %p134 = por %p132, %p133
    %s136 = sadd.s32 %s135, 1
    %p139 = scmp.eq.s32.totalorder %s12, 1
    %p140 = scmp.ne.s32.totalorder %s135, %s137
    %p141 = scmp.eq.s32.totalorder %s12, 0
    %p142 = por %p140, %p141
    %p143 = scmp.ne.s32.totalorder %s135, %s137
    %p144 = scmp.eq.s32.totalorder %s17, 1
    %p145 = por %p143, %p144
    %p146 = scmp.ne.s32.totalorder %s137, %s138
    %p147 = scmp.eq.s32.totalorder %s17, 0
    %p148 = por %p146, %p147
    %p149 = scmp.ne.s32.totalorder %s137, %s138
    %p150 = scmp.eq.s32.totalorder %s18, 1
    %p151 = por %p149, %p150
    %p153 = scmp.ne.s32.totalorder %s138, %s152
    %p154 = scmp.eq.s32.totalorder %s18, 0
    %p155 = por %p153, %p154
    %s156 = ssub.s32 %s12, %s19
    %p157 = scmp.eq.s32.totalorder %s156, 0
    %s159 = sadd.s32 %s158, 1
    %s160 = scalar_select %p157, %s158, %s159
    %p163 = pneg %p157
    %p164 = scmp.eq.s32.totalorder %s12, 1
    %p165 = por %p163, %p164
    %p166 = scmp.ne.s32.totalorder %s158, %s161
    %p167 = scmp.eq.s32.totalorder %s12, 0
    %p168 = por %p166, %p167
    %p169 = scmp.ne.s32.totalorder %s158, %s161
    %p170 = scmp.eq.s32.totalorder %s17, 1
    %p171 = por %p169, %p170
    %p172 = scmp.ne.s32.totalorder %s161, %s162
    %p173 = scmp.eq.s32.totalorder %s17, 0
    %p174 = por %p172, %p173
    %p175 = scmp.ne.s32.totalorder %s161, %s162
    %p176 = scmp.eq.s32.totalorder %s18, 1
    %p177 = por %p175, %p176
    %p179 = scmp.ne.s32.totalorder %s162, %s178
    %p180 = scmp.eq.s32.totalorder %s18, 0
    %p181 = por %p179, %p180
    %p182 = scmp.le.s32.totalorder 1, %s12
    %p183 = scmp.lt.s32.totalorder %s12, 3
    %p184 = pnand %p182, %p183
    %p185 = pneg %p184
    // Predicated region
    $region9: #{transformer_in_feat_forward.3} parent=5 // pred_check
      _
    $region10: #{transformer_in_feat_forward.3} parent=5 // pred_check_branch
      %187 = sbr.rel (%p184) target = $region12
    $region11: #{transformer_in_feat_forward.3} parent=5 // pred_region
      %s188 = ssub.s32 %s12, 1
      // Predicated region
      $region13: #{transformer_in_feat_forward.3} parent=11 // pred_check
        %p189 = pneg %p85
      $region14: #{transformer_in_feat_forward.3} parent=11 // pred_check_branch
        %191 = sbr.rel (%p189) target = $region16
      $region15: #{transformer_in_feat_forward.3} parent=11 // pred_region
        _
      $region16: #{transformer_in_feat_forward.3} parent=11 // pred_fallthru
        _
      // Predicated region
      $region17: #{transformer_in_feat_forward.3} parent=11 // pred_check
        %p192 = pneg %p106
      $region18: #{transformer_in_feat_forward.3} parent=11 // pred_check_branch
        %194 = sbr.rel (%p192) target = $region20
      $region19: #{transformer_in_feat_forward.3} parent=11 // pred_region
        _
      $region20: #{transformer_in_feat_forward.3} parent=11 // pred_fallthru
        _
      // Predicated region
      $region21: #{transformer_in_feat_forward.3} parent=11 // pred_check
        %p195 = pneg %p127
      $region22: #{transformer_in_feat_forward.3} parent=11 // pred_check_branch
        %197 = sbr.rel (%p195) target = $region24
      $region23: #{transformer_in_feat_forward.3} parent=11 // pred_region
        _
      $region24: #{transformer_in_feat_forward.3} parent=11 // pred_fallthru
        _
      // Predicated region
      $region25: #{transformer_in_feat_forward.3} parent=11 // pred_check
        %p198 = pneg %p148
      $region26: #{transformer_in_feat_forward.3} parent=11 // pred_check_branch
        %200 = sbr.rel (%p198) target = $region28
      $region27: #{transformer_in_feat_forward.3} parent=11 // pred_region
        _
      $region28: #{transformer_in_feat_forward.3} parent=11 // pred_fallthru
        _
    $region12: #{transformer_in_feat_forward.3} parent=5 // pred_fallthru
      _
    %p201 = scmp.lt.s32.totalorder %s12, 2
    // Predicated region
    $region29: #{transformer_in_feat_forward.3} parent=5 // pred_check
      %p202 = pneg %p201
    $region30: #{transformer_in_feat_forward.3} parent=5 // pred_check_branch
      %204 = sbr.rel (%p202) target = $region32
    $region31: #{transformer_in_feat_forward.3} parent=5 // pred_region
      // Predicated region
      $region33: #{transformer_in_feat_forward.3} parent=31 // pred_check
        %p205 = pneg %p32
      $region34: #{transformer_in_feat_forward.3} parent=31 // pred_check_branch
        %207 = sbr.rel (%p205) target = $region36
      $region35: #{transformer_in_feat_forward.3} parent=31 // pred_region
        %p208 = scmp.lt.s32.totalorder %s12, 1
        %s209 = scalar_select %p208, %s12, 1
        %s210 = smul.addr %s209, 10
        %s211 = smul.addr %s210, 4
        %s212 = scalar_lea.vmem %s0, %s211
      $region36: #{transformer_in_feat_forward.3} parent=31 // pred_fallthru
        _
      // Predicated region
      $region37: #{transformer_in_feat_forward.3} parent=31 // pred_check
        %p213 = pneg %p58
      $region38: #{transformer_in_feat_forward.3} parent=31 // pred_check_branch
        %215 = sbr.rel (%p213) target = $region40
      $region39: #{transformer_in_feat_forward.3} parent=31 // pred_region
        %p216 = scmp.lt.s32.totalorder %s12, 1
        %s217 = scalar_select %p216, %s12, 1
        %s218 = smul.addr %s217, 10
        %s219 = scalar_lea.vmem %s1, %s218
      $region40: #{transformer_in_feat_forward.3} parent=31 // pred_fallthru
        _
    $region32: #{transformer_in_feat_forward.3} parent=5 // pred_fallthru
      _
    %p220 = scmp.le.s32.totalorder 1, %s12
    %p221 = scmp.lt.s32.totalorder %s12, 3
    %p222 = pnand %p220, %p221
    %p223 = pneg %p222
    // Predicated region
    $region41: #{transformer_in_feat_forward.3} parent=5 // pred_check
      _
    $region42: #{transformer_in_feat_forward.3} parent=5 // pred_check_branch
      %225 = sbr.rel (%p222) target = $region44
    $region43: #{transformer_in_feat_forward.3} parent=5 // pred_region
      %s226 = ssub.s32 %s12, 1
      %p227 = scmp.lt.s32.totalorder %s17, 1
      %s228 = scalar_select %p227, %s17, 1
      %s229 = smul.addr %s228, 10
      %s230 = smul.addr %s229, 4
      %s231 = scalar_lea.vmem %s0, %s230
      %p232 = pneg %p38
      %p233 = pneg %p35
      %p234 = scmp.lt.s32.totalorder %s17, 1
      %s235 = scalar_select %p234, %s17, 1
      %s236 = smul.addr %s235, 10
      %s237 = scalar_lea.vmem %s1, %s236
      %p238 = pneg %p64
      %p239 = pneg %p61
      %p240 = pneg %p85
      %p241 = pneg %p82
      %p242 = pneg %p106
      %p243 = pneg %p103
      %p244 = pneg %p127
      %p245 = pneg %p124
      %p246 = pneg %p148
      %p247 = pneg %p145
      %p248 = pneg %p174
      %p249 = pneg %p171
      %p250 = scmp.lt.s32.totalorder %s17, 1
      %s251 = scalar_select %p250, %s17, 1
      %s252 = smul.addr %s251, 10
      %s253 = smul.addr %s252, 8
      %s254 = scalar_lea.vmem %s6, %s253
      %p255 = scmp.lt.s32.totalorder %s17, 1
      %s256 = scalar_select %p255, %s17, 1
      %s257 = smul.addr %s256, 10
      %s258 = smul.addr %s257, 4
      %s259 = scalar_lea.vmem %s0, %s258
      %p260 = scmp.lt.s32.totalorder %s17, 1
      %s261 = scalar_select %p260, %s17, 1
      %s262 = smul.addr %s261, 10
      %s263 = scalar_lea.vmem %s1, %s262
      %p264 = scmp.lt.s32.totalorder %s17, 1
      %s265 = scalar_select %p264, %s17, 1
      %s266 = smul.addr %s265, 10
      %s267 = smul.addr %s266, 8
      %s268 = scalar_lea.vmem %s6, %s267
      %v270 = vld [vmem:[%s263] sm:$0xff]
      %v271 = vld [vmem:[%s263 + $0x8] sm:$0x3]
      %v272 = vld [vmem:[%s259] sm:$0xff]
      %v273 = vld [vmem:[%s259 + $0x8] sm:$0xff]
      %v274 = vld [vmem:[%s259 + $0x10] sm:$0xff]
      %v275 = vld [vmem:[%s259 + $0x18] sm:$0xff]
      %v276 = vld [vmem:[%s259 + $0x20] sm:$0xff]
      %v277 = vunpack.c.l.bf16 %v272
      %v278 = vunpack.c.h.bf16 %v272
      %v279 = vunpack.c.l.bf16 %v273
      %v280 = vunpack.c.h.bf16 %v273
      %v281 = vunpack.c.l.bf16 %v274
      %v282 = vunpack.c.h.bf16 %v274
      %v283 = vunpack.c.l.bf16 %v275
      %v284 = vunpack.c.h.bf16 %v275
      %v285 = vunpack.c.l.bf16 %v276
      %v286 = vunpack.c.h.bf16 %v276
      %v287 = vld [vmem:[%s2] sm:$0xff]
      %289 = vset.pattern.permute.xlu0 0
      %290 = vperm.xlu0 %289, %v287
      %v291 = vpop.permute.xlu0 %290
      %v293 = vmul.f32 %v277, %v291
      %v294 = vmul.f32 %v278, %v291
      %v295 = vmul.f32 %v279, %v291
      %v296 = vmul.f32 %v280, %v291
      %v297 = vmul.f32 %v281, %v291
      %v298 = vmul.f32 %v282, %v291
      %v299 = vmul.f32 %v283, %v291
      %v300 = vmul.f32 %v284, %v291
      %v301 = vmul.f32 %v285, %v291
      %v302 = vmul.f32 %v286, %v291
      %v303 = vld [vmem:[%s3] sm:$0xff]
      %305 = vset.pattern.permute.xlu0 0
      %306 = vperm.xlu0 %305, %v303
      %v307 = vpop.permute.xlu0 %306
      %v309 = vadd.f32 %v293, %v307
      %v310 = vadd.f32 %v294, %v307
      %v311 = vadd.f32 %v295, %v307
      %v312 = vadd.f32 %v296, %v307
      %v313 = vadd.f32 %v297, %v307
      %v314 = vadd.f32 %v298, %v307
      %v315 = vadd.f32 %v299, %v307
      %v316 = vadd.f32 %v300, %v307
      %v317 = vadd.f32 %v301, %v307
      %v318 = vadd.f32 %v302, %v307
      %v319 = vmax.f32 %v309, 0.0
      %v320 = vmax.f32 %v310, 0.0
      %v321 = vmax.f32 %v311, 0.0
      %v322 = vmax.f32 %v312, 0.0
      %v323 = vmax.f32 %v313, 0.0
      %v324 = vmax.f32 %v314, 0.0
      %v325 = vmax.f32 %v315, 0.0
      %v326 = vmax.f32 %v316, 0.0
      %v327 = vmax.f32 %v317, 0.0
      %v328 = vmax.f32 %v318, 0.0
      %v331 = vperm.slane %v270, 0
      %v332 = vperm.slane %v270, 1
      %v333 = vperm.slane %v270, 2
      %v334 = vperm.slane %v270, 3
      %v335 = vperm.slane %v270, 4
      %v336 = vperm.slane %v270, 5
      %v337 = vperm.slane %v270, 6
      %v338 = vperm.slane %v270, 7
      %v339 = vperm.slane %v271, 0
      %v340 = vperm.slane %v271, 1
      %v351 = vmul.f32 %v319, %v331
      %v352 = vmul.f32 %v320, %v332
      %v353 = vmul.f32 %v321, %v333
      %v354 = vmul.f32 %v322, %v334
      %v355 = vmul.f32 %v323, %v335
      %v356 = vmul.f32 %v324, %v336
      %v357 = vmul.f32 %v325, %v337
      %v358 = vmul.f32 %v326, %v338
      %v359 = vmul.f32 %v327, %v339
      %v360 = vmul.f32 %v328, %v340
      %372 = vrot.lane.b32.xlu0 0.0, 127
      %v373 = vpop.permute.xlu0 %372
      %374 = vrot.lane.b32.xlu0 %v351, 127
      %v375 = vpop.permute.xlu0 %374
      %376 = vrot.lane.b32.xlu0 %v352, 127
      %v377 = vpop.permute.xlu0 %376
      %378 = vrot.lane.b32.xlu0 %v353, 127
      %v379 = vpop.permute.xlu0 %378
      %380 = vrot.lane.b32.xlu0 %v354, 127
      %v381 = vpop.permute.xlu0 %380
      %382 = vrot.lane.b32.xlu0 %v355, 127
      %v383 = vpop.permute.xlu0 %382
      %384 = vrot.lane.b32.xlu0 %v356, 127
      %v385 = vpop.permute.xlu0 %384
      %386 = vrot.lane.b32.xlu0 %v357, 127
      %v387 = vpop.permute.xlu0 %386
      %388 = vrot.lane.b32.xlu0 %v358, 127
      %v389 = vpop.permute.xlu0 %388
      %390 = vrot.lane.b32.xlu0 %v359, 127
      %v391 = vpop.permute.xlu0 %390
      %392 = vrot.lane.b32.xlu0 %v360, 127
      %v393 = vpop.permute.xlu0 %392
      %vm394 = vcmask 1039360
      %v395 = vsel %vm394, %v373, %v375
      %v396 = vsel %vm394, %v375, %v377
      %v397 = vsel %vm394, %v377, %v379
      %v398 = vsel %vm394, %v379, %v381
      %v399 = vsel %vm394, %v381, %v383
      %v400 = vsel %vm394, %v383, %v385
      %v401 = vsel %vm394, %v385, %v387
      %v402 = vsel %vm394, %v387, %v389
      %v403 = vsel %vm394, %v389, %v391
      %v404 = vsel %vm394, %v391, %v393
      %v405 = vsel %vm394, %v393, %v373
      %418 = vrot.lane.b32.xlu0 0.0, 126
      %v419 = vpop.permute.xlu0 %418
      %420 = vrot.lane.b32.xlu0 %v351, 126
      %v421 = vpop.permute.xlu0 %420
      %422 = vrot.lane.b32.xlu0 %v352, 126
      %v423 = vpop.permute.xlu0 %422
      %424 = vrot.lane.b32.xlu0 %v353, 126
      %v425 = vpop.permute.xlu0 %424
      %426 = vrot.lane.b32.xlu0 %v354, 126
      %v427 = vpop.permute.xlu0 %426
      %428 = vrot.lane.b32.xlu0 %v355, 126
      %v429 = vpop.permute.xlu0 %428
      %430 = vrot.lane.b32.xlu0 %v356, 126
      %v431 = vpop.permute.xlu0 %430
      %432 = vrot.lane.b32.xlu0 %v357, 126
      %v433 = vpop.permute.xlu0 %432
      %434 = vrot.lane.b32.xlu0 %v358, 126
      %v435 = vpop.permute.xlu0 %434
      %436 = vrot.lane.b32.xlu0 %v359, 126
      %v437 = vpop.permute.xlu0 %436
      %438 = vrot.lane.b32.xlu0 %v360, 126
      %v439 = vpop.permute.xlu0 %438
      %vm440 = vcmask 1031168
      %v441 = vsel %vm440, %v419, %v421
      %v442 = vsel %vm440, %v421, %v423
      %v443 = vsel %vm440, %v423, %v425
      %v444 = vsel %vm440, %v425, %v427
      %v445 = vsel %vm440, %v427, %v429
      %v446 = vsel %vm440, %v429, %v431
      %v447 = vsel %vm440, %v431, %v433
      %v448 = vsel %vm440, %v433, %v435
      %v449 = vsel %vm440, %v435, %v437
      %v450 = vsel %vm440, %v437, %v439
      %v451 = vsel %vm440, %v439, %v419
      %464 = vrot.lane.b32.xlu0 0.0, 118
      %v465 = vpop.permute.xlu0 %464
      %466 = vrot.lane.b32.xlu0 %v351, 118
      %v467 = vpop.permute.xlu0 %466
      %468 = vrot.lane.b32.xlu0 %v352, 118
      %v469 = vpop.permute.xlu0 %468
      %470 = vrot.lane.b32.xlu0 %v353, 118
      %v471 = vpop.permute.xlu0 %470
      %472 = vrot.lane.b32.xlu0 %v354, 118
      %v473 = vpop.permute.xlu0 %472
      %474 = vrot.lane.b32.xlu0 %v355, 118
      %v475 = vpop.permute.xlu0 %474
      %476 = vrot.lane.b32.xlu0 %v356, 118
      %v477 = vpop.permute.xlu0 %476
      %478 = vrot.lane.b32.xlu0 %v357, 118
      %v479 = vpop.permute.xlu0 %478
      %480 = vrot.lane.b32.xlu0 %v358, 118
      %v481 = vpop.permute.xlu0 %480
      %482 = vrot.lane.b32.xlu0 %v359, 118
      %v483 = vpop.permute.xlu0 %482
      %484 = vrot.lane.b32.xlu0 %v360, 118
      %v485 = vpop.permute.xlu0 %484
      %vm486 = vcmask 965632
      %v487 = vsel %vm486, %v465, %v467
      %v488 = vsel %vm486, %v467, %v469
      %v489 = vsel %vm486, %v469, %v471
      %v490 = vsel %vm486, %v471, %v473
      %v491 = vsel %vm486, %v473, %v475
      %v492 = vsel %vm486, %v475, %v477
      %v493 = vsel %vm486, %v477, %v479
      %v494 = vsel %vm486, %v479, %v481
      %v495 = vsel %vm486, %v481, %v483
      %v496 = vsel %vm486, %v483, %v485
      %v497 = vsel %vm486, %v485, %v465
      %510 = vrot.lane.b32.xlu0 0.0, 117
      %v511 = vpop.permute.xlu0 %510
      %512 = vrot.lane.b32.xlu0 %v351, 117
      %v513 = vpop.permute.xlu0 %512
      %514 = vrot.lane.b32.xlu0 %v352, 117
      %v515 = vpop.permute.xlu0 %514
      %516 = vrot.lane.b32.xlu0 %v353, 117
      %v517 = vpop.permute.xlu0 %516
      %518 = vrot.lane.b32.xlu0 %v354, 117
      %v519 = vpop.permute.xlu0 %518
      %520 = vrot.lane.b32.xlu0 %v355, 117
      %v521 = vpop.permute.xlu0 %520
      %522 = vrot.lane.b32.xlu0 %v356, 117
      %v523 = vpop.permute.xlu0 %522
      %524 = vrot.lane.b32.xlu0 %v357, 117
      %v525 = vpop.permute.xlu0 %524
      %526 = vrot.lane.b32.xlu0 %v358, 117
      %v527 = vpop.permute.xlu0 %526
      %528 = vrot.lane.b32.xlu0 %v359, 117
      %v529 = vpop.permute.xlu0 %528
      %530 = vrot.lane.b32.xlu0 %v360, 117
      %v531 = vpop.permute.xlu0 %530
      %vm532 = vcmask 957440
      %v533 = vsel %vm532, %v511, %v513
      %v534 = vsel %vm532, %v513, %v515
      %v535 = vsel %vm532, %v515, %v517
      %v536 = vsel %vm532, %v517, %v519
      %v537 = vsel %vm532, %v519, %v521
      %v538 = vsel %vm532, %v521, %v523
      %v539 = vsel %vm532, %v523, %v525
      %v540 = vsel %vm532, %v525, %v527
      %v541 = vsel %vm532, %v527, %v529
      %v542 = vsel %vm532, %v529, %v531
      %v543 = vsel %vm532, %v531, %v511
      %556 = vrot.lane.b32.xlu0 0.0, 116
      %v557 = vpop.permute.xlu0 %556
      %558 = vrot.lane.b32.xlu0 %v351, 116
      %v559 = vpop.permute.xlu0 %558
      %560 = vrot.lane.b32.xlu0 %v352, 116
      %v561 = vpop.permute.xlu0 %560
      %562 = vrot.lane.b32.xlu0 %v353, 116
      %v563 = vpop.permute.xlu0 %562
      %564 = vrot.lane.b32.xlu0 %v354, 116
      %v565 = vpop.permute.xlu0 %564
      %566 = vrot.lane.b32.xlu0 %v355, 116
      %v567 = vpop.permute.xlu0 %566
      %568 = vrot.lane.b32.xlu0 %v356, 116
      %v569 = vpop.permute.xlu0 %568
      %570 = vrot.lane.b32.xlu0 %v357, 116
      %v571 = vpop.permute.xlu0 %570
      %572 = vrot.lane.b32.xlu0 %v358, 116
      %v573 = vpop.permute.xlu0 %572
      %574 = vrot.lane.b32.xlu0 %v359, 116
      %v575 = vpop.permute.xlu0 %574
      %576 = vrot.lane.b32.xlu0 %v360, 116
      %v577 = vpop.permute.xlu0 %576
      %vm578 = vcmask 949248
      %v579 = vsel %vm578, %v557, %v559
      %v580 = vsel %vm578, %v559, %v561
      %v581 = vsel %vm578, %v561, %v563
      %v582 = vsel %vm578, %v563, %v565
      %v583 = vsel %vm578, %v565, %v567
      %v584 = vsel %vm578, %v567, %v569
      %v585 = vsel %vm578, %v569, %v571
      %v586 = vsel %vm578, %v571, %v573
      %v587 = vsel %vm578, %v573, %v575
      %v588 = vsel %vm578, %v575, %v577
      %v589 = vsel %vm578, %v577, %v557
      %602 = vrot.lane.b32.xlu0 0.0, 108
      %v603 = vpop.permute.xlu0 %602
      %604 = vrot.lane.b32.xlu0 %v351, 108
      %v605 = vpop.permute.xlu0 %604
      %606 = vrot.lane.b32.xlu0 %v352, 108
      %v607 = vpop.permute.xlu0 %606
      %608 = vrot.lane.b32.xlu0 %v353, 108
      %v609 = vpop.permute.xlu0 %608
      %610 = vrot.lane.b32.xlu0 %v354, 108
      %v611 = vpop.permute.xlu0 %610
      %612 = vrot.lane.b32.xlu0 %v355, 108
      %v613 = vpop.permute.xlu0 %612
      %614 = vrot.lane.b32.xlu0 %v356, 108
      %v615 = vpop.permute.xlu0 %614
      %616 = vrot.lane.b32.xlu0 %v357, 108
      %v617 = vpop.permute.xlu0 %616
      %618 = vrot.lane.b32.xlu0 %v358, 108
      %v619 = vpop.permute.xlu0 %618
      %620 = vrot.lane.b32.xlu0 %v359, 108
      %v621 = vpop.permute.xlu0 %620
      %622 = vrot.lane.b32.xlu0 %v360, 108
      %v623 = vpop.permute.xlu0 %622
      %vm624 = vcmask 883712
      %v625 = vsel %vm624, %v603, %v605
      %v626 = vsel %vm624, %v605, %v607
      %v627 = vsel %vm624, %v607, %v609
      %v628 = vsel %vm624, %v609, %v611
      %v629 = vsel %vm624, %v611, %v613
      %v630 = vsel %vm624, %v613, %v615
      %v631 = vsel %vm624, %v615, %v617
      %v632 = vsel %vm624, %v617, %v619
      %v633 = vsel %vm624, %v619, %v621
      %v634 = vsel %vm624, %v621, %v623
      %v635 = vsel %vm624, %v623, %v603
      %648 = vrot.lane.b32.xlu0 0.0, 107
      %v649 = vpop.permute.xlu0 %648
      %650 = vrot.lane.b32.xlu0 %v351, 107
      %v651 = vpop.permute.xlu0 %650
      %652 = vrot.lane.b32.xlu0 %v352, 107
      %v653 = vpop.permute.xlu0 %652
      %654 = vrot.lane.b32.xlu0 %v353, 107
      %v655 = vpop.permute.xlu0 %654
      %656 = vrot.lane.b32.xlu0 %v354, 107
      %v657 = vpop.permute.xlu0 %656
      %658 = vrot.lane.b32.xlu0 %v355, 107
      %v659 = vpop.permute.xlu0 %658
      %660 = vrot.lane.b32.xlu0 %v356, 107
      %v661 = vpop.permute.xlu0 %660
      %662 = vrot.lane.b32.xlu0 %v357, 107
      %v663 = vpop.permute.xlu0 %662
      %664 = vrot.lane.b32.xlu0 %v358, 107
      %v665 = vpop.permute.xlu0 %664
      %666 = vrot.lane.b32.xlu0 %v359, 107
      %v667 = vpop.permute.xlu0 %666
      %668 = vrot.lane.b32.xlu0 %v360, 107
      %v669 = vpop.permute.xlu0 %668
      %vm670 = vcmask 875520
      %v671 = vsel %vm670, %v649, %v651
      %v672 = vsel %vm670, %v651, %v653
      %v673 = vsel %vm670, %v653, %v655
      %v674 = vsel %vm670, %v655, %v657
      %v675 = vsel %vm670, %v657, %v659
      %v676 = vsel %vm670, %v659, %v661
      %v677 = vsel %vm670, %v661, %v663
      %v678 = vsel %vm670, %v663, %v665
      %v679 = vsel %vm670, %v665, %v667
      %v680 = vsel %vm670, %v667, %v669
      %v681 = vsel %vm670, %v669, %v649
      %694 = vrot.lane.b32.xlu0 0.0, 106
      %v695 = vpop.permute.xlu0 %694
      %696 = vrot.lane.b32.xlu0 %v351, 106
      %v697 = vpop.permute.xlu0 %696
      %698 = vrot.lane.b32.xlu0 %v352, 106
      %v699 = vpop.permute.xlu0 %698
      %700 = vrot.lane.b32.xlu0 %v353, 106
      %v701 = vpop.permute.xlu0 %700
      %702 = vrot.lane.b32.xlu0 %v354, 106
      %v703 = vpop.permute.xlu0 %702
      %704 = vrot.lane.b32.xlu0 %v355, 106
      %v705 = vpop.permute.xlu0 %704
      %706 = vrot.lane.b32.xlu0 %v356, 106
      %v707 = vpop.permute.xlu0 %706
      %708 = vrot.lane.b32.xlu0 %v357, 106
      %v709 = vpop.permute.xlu0 %708
      %710 = vrot.lane.b32.xlu0 %v358, 106
      %v711 = vpop.permute.xlu0 %710
      %712 = vrot.lane.b32.xlu0 %v359, 106
      %v713 = vpop.permute.xlu0 %712
      %714 = vrot.lane.b32.xlu0 %v360, 106
      %v715 = vpop.permute.xlu0 %714
      %vm716 = vcmask 867328
      %v717 = vsel %vm716, %v695, %v697
      %v718 = vsel %vm716, %v697, %v699
      %v719 = vsel %vm716, %v699, %v701
      %v720 = vsel %vm716, %v701, %v703
      %v721 = vsel %vm716, %v703, %v705
      %v722 = vsel %vm716, %v705, %v707
      %v723 = vsel %vm716, %v707, %v709
      %v724 = vsel %vm716, %v709, %v711
      %v725 = vsel %vm716, %v711, %v713
      %v726 = vsel %vm716, %v713, %v715
      %v727 = vsel %vm716, %v715, %v695
      %v740 = vpack.c.bf16 0.0, 0.0
      %v741 = vpack.c.bf16 %v352, %v351
      %v742 = vpack.c.bf16 %v354, %v353
      %v743 = vpack.c.bf16 %v356, %v355
      %v744 = vpack.c.bf16 %v358, %v357
      %v745 = vpack.c.bf16 %v360, %v359
      %v746 = vpack.c.bf16 %v395, %v373
      %v747 = vpack.c.bf16 %v397, %v396
      %v748 = vpack.c.bf16 %v399, %v398
      %v749 = vpack.c.bf16 %v401, %v400
      %v750 = vpack.c.bf16 %v403, %v402
      %v751 = vpack.c.bf16 %v405, %v404
      %v752 = vpack.c.bf16 %v373, %v373
      %v753 = vpack.c.bf16 %v441, %v419
      %v754 = vpack.c.bf16 %v443, %v442
      %v755 = vpack.c.bf16 %v445, %v444
      %v756 = vpack.c.bf16 %v447, %v446
      %v757 = vpack.c.bf16 %v449, %v448
      %v758 = vpack.c.bf16 %v451, %v450
      %v759 = vpack.c.bf16 %v419, %v419
      %v760 = vpack.c.bf16 %v487, %v465
      %v761 = vpack.c.bf16 %v489, %v488
      %v762 = vpack.c.bf16 %v491, %v490
      %v763 = vpack.c.bf16 %v493, %v492
      %v764 = vpack.c.bf16 %v495, %v494
      %v765 = vpack.c.bf16 %v497, %v496
      %v766 = vpack.c.bf16 %v465, %v465
      %v767 = vpack.c.bf16 %v533, %v511
      %v768 = vpack.c.bf16 %v535, %v534
      %v769 = vpack.c.bf16 %v537, %v536
      %v770 = vpack.c.bf16 %v539, %v538
      %v771 = vpack.c.bf16 %v541, %v540
      %v772 = vpack.c.bf16 %v543, %v542
      %v773 = vpack.c.bf16 %v511, %v511
      %v774 = vpack.c.bf16 %v579, %v557
      %v775 = vpack.c.bf16 %v581, %v580
      %v776 = vpack.c.bf16 %v583, %v582
      %v777 = vpack.c.bf16 %v585, %v584
      %v778 = vpack.c.bf16 %v587, %v586
      %v779 = vpack.c.bf16 %v589, %v588
      %v780 = vpack.c.bf16 %v557, %v557
      %v781 = vpack.c.bf16 %v625, %v603
      %v782 = vpack.c.bf16 %v627, %v626
      %v783 = vpack.c.bf16 %v629, %v628
      %v784 = vpack.c.bf16 %v631, %v630
      %v785 = vpack.c.bf16 %v633, %v632
      %v786 = vpack.c.bf16 %v635, %v634
      %v787 = vpack.c.bf16 %v603, %v603
      %v788 = vpack.c.bf16 %v671, %v649
      %v789 = vpack.c.bf16 %v673, %v672
      %v790 = vpack.c.bf16 %v675, %v674
      %v791 = vpack.c.bf16 %v677, %v676
      %v792 = vpack.c.bf16 %v679, %v678
      %v793 = vpack.c.bf16 %v681, %v680
      %v794 = vpack.c.bf16 %v649, %v649
      %v795 = vpack.c.bf16 %v717, %v695
      %v796 = vpack.c.bf16 %v719, %v718
      %v797 = vpack.c.bf16 %v721, %v720
      %v798 = vpack.c.bf16 %v723, %v722
      %v799 = vpack.c.bf16 %v725, %v724
      %v800 = vpack.c.bf16 %v727, %v726
      %v801 = vpack.c.bf16 %v695, %v695
      %v802 = vld [vmem:[%s4] sm:$0xf]
      %s803 = scalar_lea.vmem %s4, 4
      %v804 = vld [vmem:[%s803] sm:$0xf]
      %v859 = vunpack.c.h.b16 %v740
      %v860 = vunpack.c.l.b16 %v741
      %v861 = vunpack.c.h.b16 %v741
      %v862 = vunpack.c.l.b16 %v742
      %v863 = vunpack.c.h.b16 %v742
      %v864 = vunpack.c.l.b16 %v743
      %v865 = vunpack.c.h.b16 %v743
      %v866 = vunpack.c.l.b16 %v744
      %v867 = vunpack.c.h.b16 %v744
      %v868 = vunpack.c.l.b16 %v745
      %v869 = vunpack.c.h.b16 %v745
      %v870 = vunpack.c.h.b16 %v746
      %v871 = vunpack.c.l.b16 %v747
      %v872 = vunpack.c.h.b16 %v747
      %v873 = vunpack.c.l.b16 %v748
      %v874 = vunpack.c.h.b16 %v748
      %v875 = vunpack.c.l.b16 %v749
      %v876 = vunpack.c.h.b16 %v749
      %v877 = vunpack.c.l.b16 %v750
      %v878 = vunpack.c.h.b16 %v750
      %v879 = vunpack.c.l.b16 %v751
      %v880 = vunpack.c.h.b16 %v751
      %v881 = vunpack.c.h.b16 %v753
      %v882 = vunpack.c.l.b16 %v754
      %v883 = vunpack.c.h.b16 %v754
      %v884 = vunpack.c.l.b16 %v755
      %v885 = vunpack.c.h.b16 %v755
      %v886 = vunpack.c.l.b16 %v756
      %v887 = vunpack.c.h.b16 %v756
      %v888 = vunpack.c.l.b16 %v757
      %v889 = vunpack.c.h.b16 %v757
      %v890 = vunpack.c.l.b16 %v758
      %v891 = vunpack.c.h.b16 %v758
      %v892 = vunpack.c.h.b16 %v760
      %v893 = vunpack.c.l.b16 %v761
      %v894 = vunpack.c.h.b16 %v761
      %v895 = vunpack.c.l.b16 %v762
      %v896 = vunpack.c.h.b16 %v762
      %v897 = vunpack.c.l.b16 %v763
      %v898 = vunpack.c.h.b16 %v763
      %v899 = vunpack.c.l.b16 %v764
      %v900 = vunpack.c.h.b16 %v764
      %v901 = vunpack.c.l.b16 %v765
      %v902 = vunpack.c.h.b16 %v765
      %v903 = vunpack.c.h.b16 %v767
      %v904 = vunpack.c.l.b16 %v768
      %v905 = vunpack.c.h.b16 %v768
      %v906 = vunpack.c.l.b16 %v769
      %v907 = vunpack.c.h.b16 %v769
      %v908 = vunpack.c.l.b16 %v770
      %v909 = vunpack.c.h.b16 %v770
      %v910 = vunpack.c.l.b16 %v771
      %v911 = vunpack.c.h.b16 %v771
      %v912 = vunpack.c.l.b16 %v772
      %v913 = vunpack.c.h.b16 %v772
      %v914 = vunpack.c.h.b16 %v774
      %v915 = vunpack.c.l.b16 %v775
      %v916 = vunpack.c.h.b16 %v775
      %v917 = vunpack.c.l.b16 %v776
      %v918 = vunpack.c.h.b16 %v776
      %v919 = vunpack.c.l.b16 %v777
      %v920 = vunpack.c.h.b16 %v777
      %v921 = vunpack.c.l.b16 %v778
      %v922 = vunpack.c.h.b16 %v778
      %v923 = vunpack.c.l.b16 %v779
      %v924 = vunpack.c.h.b16 %v779
      %v925 = vunpack.c.h.b16 %v781
      %v926 = vunpack.c.l.b16 %v782
      %v927 = vunpack.c.h.b16 %v782
      %v928 = vunpack.c.l.b16 %v783
      %v929 = vunpack.c.h.b16 %v783
      %v930 = vunpack.c.l.b16 %v784
      %v931 = vunpack.c.h.b16 %v784
      %v932 = vunpack.c.l.b16 %v785
      %v933 = vunpack.c.h.b16 %v785
      %v934 = vunpack.c.l.b16 %v786
      %v935 = vunpack.c.h.b16 %v786
      %v936 = vunpack.c.h.b16 %v788
      %v937 = vunpack.c.l.b16 %v789
      %v938 = vunpack.c.h.b16 %v789
      %v939 = vunpack.c.l.b16 %v790
      %v940 = vunpack.c.h.b16 %v790
      %v941 = vunpack.c.l.b16 %v791
      %v942 = vunpack.c.h.b16 %v791
      %v943 = vunpack.c.l.b16 %v792
      %v944 = vunpack.c.h.b16 %v792
      %v945 = vunpack.c.l.b16 %v793
      %v946 = vunpack.c.h.b16 %v793
      %v947 = vunpack.c.h.b16 %v795
      %v948 = vunpack.c.l.b16 %v796
      %v949 = vunpack.c.h.b16 %v796
      %v950 = vunpack.c.l.b16 %v797
      %v951 = vunpack.c.h.b16 %v797
      %v952 = vunpack.c.l.b16 %v798
      %v953 = vunpack.c.h.b16 %v798
      %v954 = vunpack.c.l.b16 %v799
      %v955 = vunpack.c.h.b16 %v799
      %v956 = vunpack.c.l.b16 %v800
      %v957 = vunpack.c.h.b16 %v800
      %v958 = vpack.c.b16 %v870, %v859
      %v959 = vpack.c.b16 %v871, %v860
      %v960 = vpack.c.b16 %v872, %v861
      %v961 = vpack.c.b16 %v873, %v862
      %v962 = vpack.c.b16 %v874, %v863
      %v963 = vpack.c.b16 %v875, %v864
      %v964 = vpack.c.b16 %v876, %v865
      %v965 = vpack.c.b16 %v877, %v866
      %v966 = vpack.c.b16 %v878, %v867
      %v967 = vpack.c.b16 %v879, %v868
      %v968 = vpack.c.b16 %v880, %v869
      %v969 = vpack.c.b16 %v892, %v881
      %v970 = vpack.c.b16 %v893, %v882
      %v971 = vpack.c.b16 %v894, %v883
      %v972 = vpack.c.b16 %v895, %v884
      %v973 = vpack.c.b16 %v896, %v885
      %v974 = vpack.c.b16 %v897, %v886
      %v975 = vpack.c.b16 %v898, %v887
      %v976 = vpack.c.b16 %v899, %v888
      %v977 = vpack.c.b16 %v900, %v889
      %v978 = vpack.c.b16 %v901, %v890
      %v979 = vpack.c.b16 %v902, %v891
      %v980 = vpack.c.b16 %v914, %v903
      %v981 = vpack.c.b16 %v915, %v904
      %v982 = vpack.c.b16 %v916, %v905
      %v983 = vpack.c.b16 %v917, %v906
      %v984 = vpack.c.b16 %v918, %v907
      %v985 = vpack.c.b16 %v919, %v908
      %v986 = vpack.c.b16 %v920, %v909
      %v987 = vpack.c.b16 %v921, %v910
      %v988 = vpack.c.b16 %v922, %v911
      %v989 = vpack.c.b16 %v923, %v912
      %v990 = vpack.c.b16 %v924, %v913
      %v991 = vpack.c.b16 %v936, %v925
      %v992 = vpack.c.b16 %v937, %v926
      %v993 = vpack.c.b16 %v938, %v927
      %v994 = vpack.c.b16 %v939, %v928
      %v995 = vpack.c.b16 %v940, %v929
      %v996 = vpack.c.b16 %v941, %v930
      %v997 = vpack.c.b16 %v942, %v931
      %v998 = vpack.c.b16 %v943, %v932
      %v999 = vpack.c.b16 %v944, %v933
      %v1000 = vpack.c.b16 %v945, %v934
      %v1001 = vpack.c.b16 %v946, %v935
      %v1002 = vpack.c.b16 %v947, %v947
      %v1003 = vpack.c.b16 %v948, %v948
      %v1004 = vpack.c.b16 %v949, %v949
      %v1005 = vpack.c.b16 %v950, %v950
      %v1006 = vpack.c.b16 %v951, %v951
      %v1007 = vpack.c.b16 %v952, %v952
      %v1008 = vpack.c.b16 %v953, %v953
      %v1009 = vpack.c.b16 %v954, %v954
      %v1010 = vpack.c.b16 %v955, %v955
      %v1011 = vpack.c.b16 %v956, %v956
      %v1012 = vpack.c.b16 %v957, %v957
      %1013 = vrot.lane.b32.xlu0 %v958, 11
      %v1014 = vpop.permute.xlu0 %1013
      %1015 = vrot.lane.b32.xlu0 %v959, 11
      %v1016 = vpop.permute.xlu0 %1015
      %1017 = vrot.lane.b32.xlu0 %v960, 11
      %v1018 = vpop.permute.xlu0 %1017
      %1019 = vrot.lane.b32.xlu0 %v961, 11
      %v1020 = vpop.permute.xlu0 %1019
      %1021 = vrot.lane.b32.xlu0 %v962, 11
      %v1022 = vpop.permute.xlu0 %1021
      %1023 = vrot.lane.b32.xlu0 %v963, 11
      %v1024 = vpop.permute.xlu0 %1023
      %1025 = vrot.lane.b32.xlu0 %v964, 11
      %v1026 = vpop.permute.xlu0 %1025
      %1027 = vrot.lane.b32.xlu0 %v965, 11
      %v1028 = vpop.permute.xlu0 %1027
      %1029 = vrot.lane.b32.xlu0 %v966, 11
      %v1030 = vpop.permute.xlu0 %1029
      %1031 = vrot.lane.b32.xlu0 %v967, 11
      %v1032 = vpop.permute.xlu0 %1031
      %1033 = vrot.lane.b32.xlu0 %v968, 11
      %v1034 = vpop.permute.xlu0 %1033
      %1035 = vrot.lane.b32.xlu0 %v969, 11
      %v1036 = vpop.permute.xlu0 %1035
      %1037 = vrot.lane.b32.xlu0 %v970, 11
      %v1038 = vpop.permute.xlu0 %1037
      %1039 = vrot.lane.b32.xlu0 %v971, 11
      %v1040 = vpop.permute.xlu0 %1039
      %1041 = vrot.lane.b32.xlu0 %v972, 11
      %v1042 = vpop.permute.xlu0 %1041
      %1043 = vrot.lane.b32.xlu0 %v973, 11
      %v1044 = vpop.permute.xlu0 %1043
      %1045 = vrot.lane.b32.xlu0 %v974, 11
      %v1046 = vpop.permute.xlu0 %1045
      %1047 = vrot.lane.b32.xlu0 %v975, 11
      %v1048 = vpop.permute.xlu0 %1047
      %1049 = vrot.lane.b32.xlu0 %v976, 11
      %v1050 = vpop.permute.xlu0 %1049
      %1051 = vrot.lane.b32.xlu0 %v977, 11
      %v1052 = vpop.permute.xlu0 %1051
      %1053 = vrot.lane.b32.xlu0 %v978, 11
      %v1054 = vpop.permute.xlu0 %1053
      %1055 = vrot.lane.b32.xlu0 %v979, 11
      %v1056 = vpop.permute.xlu0 %1055
      %1057 = vrot.lane.b32.xlu0 %v980, 11
      %v1058 = vpop.permute.xlu0 %1057
      %1059 = vrot.lane.b32.xlu0 %v981, 11
      %v1060 = vpop.permute.xlu0 %1059
      %1061 = vrot.lane.b32.xlu0 %v982, 11
      %v1062 = vpop.permute.xlu0 %1061
      %1063 = vrot.lane.b32.xlu0 %v983, 11
      %v1064 = vpop.permute.xlu0 %1063
      %1065 = vrot.lane.b32.xlu0 %v984, 11
      %v1066 = vpop.permute.xlu0 %1065
      %1067 = vrot.lane.b32.xlu0 %v985, 11
      %v1068 = vpop.permute.xlu0 %1067
      %1069 = vrot.lane.b32.xlu0 %v986, 11
      %v1070 = vpop.permute.xlu0 %1069
      %1071 = vrot.lane.b32.xlu0 %v987, 11
      %v1072 = vpop.permute.xlu0 %1071
      %1073 = vrot.lane.b32.xlu0 %v988, 11
      %v1074 = vpop.permute.xlu0 %1073
      %1075 = vrot.lane.b32.xlu0 %v989, 11
      %v1076 = vpop.permute.xlu0 %1075
      %1077 = vrot.lane.b32.xlu0 %v990, 11
      %v1078 = vpop.permute.xlu0 %1077
      %1079 = vrot.lane.b32.xlu0 %v991, 11
      %v1080 = vpop.permute.xlu0 %1079
      %1081 = vrot.lane.b32.xlu0 %v992, 11
      %v1082 = vpop.permute.xlu0 %1081
      %1083 = vrot.lane.b32.xlu0 %v993, 11
      %v1084 = vpop.permute.xlu0 %1083
      %1085 = vrot.lane.b32.xlu0 %v994, 11
      %v1086 = vpop.permute.xlu0 %1085
      %1087 = vrot.lane.b32.xlu0 %v995, 11
      %v1088 = vpop.permute.xlu0 %1087
      %1089 = vrot.lane.b32.xlu0 %v996, 11
      %v1090 = vpop.permute.xlu0 %1089
      %1091 = vrot.lane.b32.xlu0 %v997, 11
      %v1092 = vpop.permute.xlu0 %1091
      %1093 = vrot.lane.b32.xlu0 %v998, 11
      %v1094 = vpop.permute.xlu0 %1093
      %1095 = vrot.lane.b32.xlu0 %v999, 11
      %v1096 = vpop.permute.xlu0 %1095
      %1097 = vrot.lane.b32.xlu0 %v1000, 11
      %v1098 = vpop.permute.xlu0 %1097
      %1099 = vrot.lane.b32.xlu0 %v1001, 11
      %v1100 = vpop.permute.xlu0 %1099
      %1101 = vrot.lane.b32.xlu0 %v1002, 11
      %v1102 = vpop.permute.xlu0 %1101
      %1103 = vrot.lane.b32.xlu0 %v1003, 11
      %v1104 = vpop.permute.xlu0 %1103
      %1105 = vrot.lane.b32.xlu0 %v1004, 11
      %v1106 = vpop.permute.xlu0 %1105
      %1107 = vrot.lane.b32.xlu0 %v1005, 11
      %v1108 = vpop.permute.xlu0 %1107
      %1109 = vrot.lane.b32.xlu0 %v1006, 11
      %v1110 = vpop.permute.xlu0 %1109
      %1111 = vrot.lane.b32.xlu0 %v1007, 11
      %v1112 = vpop.permute.xlu0 %1111
      %1113 = vrot.lane.b32.xlu0 %v1008, 11
      %v1114 = vpop.permute.xlu0 %1113
      %1115 = vrot.lane.b32.xlu0 %v1009, 11
      %v1116 = vpop.permute.xlu0 %1115
      %1117 = vrot.lane.b32.xlu0 %v1010, 11
      %v1118 = vpop.permute.xlu0 %1117
      %1119 = vrot.lane.b32.xlu0 %v1011, 11
      %v1120 = vpop.permute.xlu0 %1119
      %1121 = vrot.lane.b32.xlu0 %v1012, 11
      %v1122 = vpop.permute.xlu0 %1121
      %vm1123 = vcmask 89088
      %v1124 = vsel %vm1123, %v1014, %v1016
      %v1125 = vsel %vm1123, %v1016, %v1018
      %v1126 = vsel %vm1123, %v1018, %v1020
      %v1127 = vsel %vm1123, %v1020, %v1022
      %v1128 = vsel %vm1123, %v1022, %v1024
      %v1129 = vsel %vm1123, %v1024, %v1026
      %v1130 = vsel %vm1123, %v1026, %v1028
      %v1131 = vsel %vm1123, %v1028, %v1030
      %v1132 = vsel %vm1123, %v1030, %v1032
      %v1133 = vsel %vm1123, %v1032, %v1034
      %v1134 = vsel %vm1123, %v1036, %v1038
      %v1135 = vsel %vm1123, %v1038, %v1040
      %v1136 = vsel %vm1123, %v1040, %v1042
      %v1137 = vsel %vm1123, %v1042, %v1044
      %v1138 = vsel %vm1123, %v1044, %v1046
      %v1139 = vsel %vm1123, %v1046, %v1048
      %v1140 = vsel %vm1123, %v1048, %v1050
      %v1141 = vsel %vm1123, %v1050, %v1052
      %v1142 = vsel %vm1123, %v1052, %v1054
      %v1143 = vsel %vm1123, %v1054, %v1056
      %v1144 = vsel %vm1123, %v1058, %v1060
      %v1145 = vsel %vm1123, %v1060, %v1062
      %v1146 = vsel %vm1123, %v1062, %v1064
      %v1147 = vsel %vm1123, %v1064, %v1066
      %v1148 = vsel %vm1123, %v1066, %v1068
      %v1149 = vsel %vm1123, %v1068, %v1070
      %v1150 = vsel %vm1123, %v1070, %v1072
      %v1151 = vsel %vm1123, %v1072, %v1074
      %v1152 = vsel %vm1123, %v1074, %v1076
      %v1153 = vsel %vm1123, %v1076, %v1078
      %v1154 = vsel %vm1123, %v1080, %v1082
      %v1155 = vsel %vm1123, %v1082, %v1084
      %v1156 = vsel %vm1123, %v1084, %v1086
      %v1157 = vsel %vm1123, %v1086, %v1088
      %v1158 = vsel %vm1123, %v1088, %v1090
      %v1159 = vsel %vm1123, %v1090, %v1092
      %v1160 = vsel %vm1123, %v1092, %v1094
      %v1161 = vsel %vm1123, %v1094, %v1096
      %v1162 = vsel %vm1123, %v1096, %v1098
      %v1163 = vsel %vm1123, %v1098, %v1100
      %v1164 = vsel %vm1123, %v1102, %v1104
      %v1165 = vsel %vm1123, %v1104, %v1106
      %v1166 = vsel %vm1123, %v1106, %v1108
      %v1167 = vsel %vm1123, %v1108, %v1110
      %v1168 = vsel %vm1123, %v1110, %v1112
      %v1169 = vsel %vm1123, %v1112, %v1114
      %v1170 = vsel %vm1123, %v1114, %v1116
      %v1171 = vsel %vm1123, %v1116, %v1118
      %v1172 = vsel %vm1123, %v1118, %v1120
      %v1173 = vsel %vm1123, %v1120, %v1122
      %vm1214 = vcmask 588800
      %v1216 = vsel %vm1214, %v804, 0
      %vm1218 = vcmask 1043456
      %v1220 = vsel %vm1218, %v1164, 0
      %v1223 = vsel %vm1218, %v1165, 0
      %v1226 = vsel %vm1218, %v1166, 0
      %v1229 = vsel %vm1218, %v1167, 0
      %v1232 = vsel %vm1218, %v1168, 0
      %v1235 = vsel %vm1218, %v1169, 0
      %v1238 = vsel %vm1218, %v1170, 0
      %v1241 = vsel %vm1218, %v1171, 0
      %v1244 = vsel %vm1218, %v1172, 0
      %v1247 = vsel %vm1218, %v1173, 0
      %1249 = vmatpush.bf16.msra.mxu0 0
      %1250 = vmatpush.bf16.msra.mxu0 0
      %1251 = vmatpush.bf16.msra.mxu0 0
      %1252 = vmatpush.bf16.msra.mxu0 %v1220
      %1253 = vmatpush.bf16.msra.mxu0 %v1154
      %1254 = vmatpush.bf16.msra.mxu0 %v1144
      %1255 = vmatpush.bf16.msra.mxu0 %v1134
      %1256 = vmatpush.bf16.msra.mxu0 %v1124
      %1257 = vmatmul.bf16.gmra.mxu0 %v1216
      %v1258 = vpop.f32.mrf.mxu0
      %v1259 = vadd.f32 0.0, %v1258
      %v1260 = vpop.f32.mrf.mxu0
      %1261 = vdwg.mxu0
      %1262 = vmatpush.bf16.msra.mxu0 0
      %1263 = vmatpush.bf16.msra.mxu0 0
      %1264 = vmatpush.bf16.msra.mxu0 0
      %1265 = vmatpush.bf16.msra.mxu0 %v1223
      %1266 = vmatpush.bf16.msra.mxu0 %v1155
      %1267 = vmatpush.bf16.msra.mxu0 %v1145
      %1268 = vmatpush.bf16.msra.mxu0 %v1135
      %1269 = vmatpush.bf16.msra.mxu0 %v1125
      %1270 = vmatmul.bf16.gmra.mxu0 %v1216
      %v1271 = vpop.f32.mrf.mxu0
      %v1272 = vadd.f32 0.0, %v1271
      %v1273 = vpop.f32.mrf.mxu0
      %1274 = vdwg.mxu0
      %1275 = vmatpush.bf16.msra.mxu0 0
      %1276 = vmatpush.bf16.msra.mxu0 0
      %1277 = vmatpush.bf16.msra.mxu0 0
      %1278 = vmatpush.bf16.msra.mxu0 %v1226
      %1279 = vmatpush.bf16.msra.mxu0 %v1156
      %1280 = vmatpush.bf16.msra.mxu0 %v1146
      %1281 = vmatpush.bf16.msra.mxu0 %v1136
      %1282 = vmatpush.bf16.msra.mxu0 %v1126
      %1283 = vmatmul.bf16.gmra.mxu0 %v1216
      %v1284 = vpop.f32.mrf.mxu0
      %v1285 = vadd.f32 0.0, %v1284
      %v1286 = vpop.f32.mrf.mxu0
      %1287 = vdwg.mxu0
      %1288 = vmatpush.bf16.msra.mxu0 0
      %1289 = vmatpush.bf16.msra.mxu0 0
      %1290 = vmatpush.bf16.msra.mxu0 0
      %1291 = vmatpush.bf16.msra.mxu0 %v1229
      %1292 = vmatpush.bf16.msra.mxu0 %v1157
      %1293 = vmatpush.bf16.msra.mxu0 %v1147
      %1294 = vmatpush.bf16.msra.mxu0 %v1137
      %1295 = vmatpush.bf16.msra.mxu0 %v1127
      %1296 = vmatmul.bf16.gmra.mxu0 %v1216
      %v1297 = vpop.f32.mrf.mxu0
      %v1298 = vadd.f32 0.0, %v1297
      %v1299 = vpop.f32.mrf.mxu0
      %1300 = vdwg.mxu0
      %1301 = vmatpush.bf16.msra.mxu0 0
      %1302 = vmatpush.bf16.msra.mxu0 0
      %1303 = vmatpush.bf16.msra.mxu0 0
      %1304 = vmatpush.bf16.msra.mxu0 %v1232
      %1305 = vmatpush.bf16.msra.mxu0 %v1158
      %1306 = vmatpush.bf16.msra.mxu0 %v1148
      %1307 = vmatpush.bf16.msra.mxu0 %v1138
      %1308 = vmatpush.bf16.msra.mxu0 %v1128
      %1309 = vmatmul.bf16.gmra.mxu0 %v1216
      %v1310 = vpop.f32.mrf.mxu0
      %v1311 = vadd.f32 0.0, %v1310
      %v1312 = vpop.f32.mrf.mxu0
      %1313 = vdwg.mxu0
      %1314 = vmatpush.bf16.msra.mxu0 0
      %1315 = vmatpush.bf16.msra.mxu0 0
      %1316 = vmatpush.bf16.msra.mxu0 0
      %1317 = vmatpush.bf16.msra.mxu0 %v1235
      %1318 = vmatpush.bf16.msra.mxu0 %v1159
      %1319 = vmatpush.bf16.msra.mxu0 %v1149
      %1320 = vmatpush.bf16.msra.mxu0 %v1139
      %1321 = vmatpush.bf16.msra.mxu0 %v1129
      %1322 = vmatmul.bf16.gmra.mxu0 %v1216
      %v1323 = vpop.f32.mrf.mxu0
      %v1324 = vadd.f32 0.0, %v1323
      %v1325 = vpop.f32.mrf.mxu0
      %1326 = vdwg.mxu0
      %1327 = vmatpush.bf16.msra.mxu0 0
      %1328 = vmatpush.bf16.msra.mxu0 0
      %1329 = vmatpush.bf16.msra.mxu0 0
      %1330 = vmatpush.bf16.msra.mxu0 %v1238
      %1331 = vmatpush.bf16.msra.mxu0 %v1160
      %1332 = vmatpush.bf16.msra.mxu0 %v1150
      %1333 = vmatpush.bf16.msra.mxu0 %v1140
      %1334 = vmatpush.bf16.msra.mxu0 %v1130
      %1335 = vmatmul.bf16.gmra.mxu0 %v1216
      %v1336 = vpop.f32.mrf.mxu0
      %v1337 = vadd.f32 0.0, %v1336
      %v1338 = vpop.f32.mrf.mxu0
      %1339 = vdwg.mxu0
      %1340 = vmatpush.bf16.msra.mxu0 0
      %1341 = vmatpush.bf16.msra.mxu0 0
      %1342 = vmatpush.bf16.msra.mxu0 0
      %1343 = vmatpush.bf16.msra.mxu0 %v1241
      %1344 = vmatpush.bf16.msra.mxu0 %v1161
      %1345 = vmatpush.bf16.msra.mxu0 %v1151
      %1346 = vmatpush.bf16.msra.mxu0 %v1141
      %1347 = vmatpush.bf16.msra.mxu0 %v1131
      %1348 = vmatmul.bf16.gmra.mxu0 %v1216
      %v1349 = vpop.f32.mrf.mxu0
      %v1350 = vadd.f32 0.0, %v1349
      %v1351 = vpop.f32.mrf.mxu0
      %1352 = vdwg.mxu0
      %1353 = vmatpush.bf16.msra.mxu0 0
      %1354 = vmatpush.bf16.msra.mxu0 0
      %1355 = vmatpush.bf16.msra.mxu0 0
      %1356 = vmatpush.bf16.msra.mxu0 %v1244
      %1357 = vmatpush.bf16.msra.mxu0 %v1162
      %1358 = vmatpush.bf16.msra.mxu0 %v1152
      %1359 = vmatpush.bf16.msra.mxu0 %v1142
      %1360 = vmatpush.bf16.msra.mxu0 %v1132
      %1361 = vmatmul.bf16.gmra.mxu0 %v1216
      %v1362 = vpop.f32.mrf.mxu0
      %v1363 = vadd.f32 0.0, %v1362
      %v1364 = vpop.f32.mrf.mxu0
      %1365 = vdwg.mxu0
      %1366 = vmatpush.bf16.msra.mxu0 0
      %1367 = vmatpush.bf16.msra.mxu0 0
      %1368 = vmatpush.bf16.msra.mxu0 0
      %1369 = vmatpush.bf16.msra.mxu0 %v1247
      %1370 = vmatpush.bf16.msra.mxu0 %v1163
      %1371 = vmatpush.bf16.msra.mxu0 %v1153
      %1372 = vmatpush.bf16.msra.mxu0 %v1143
      %1373 = vmatpush.bf16.msra.mxu0 %v1133
      %1374 = vmatmul.bf16.gmra.mxu0 %v1216
      %v1375 = vpop.f32.mrf.mxu0
      %v1376 = vadd.f32 0.0, %v1375
      %v1377 = vpop.f32.mrf.mxu0
      %1378 = vdwg.mxu0
      %v1379 = vunpack.c.l.b16 %v740
      %v1380 = vunpack.c.l.b16 %v746
      %v1381 = vunpack.c.l.b16 %v753
      %v1382 = vunpack.c.l.b16 %v760
      %v1383 = vunpack.c.l.b16 %v767
      %v1384 = vunpack.c.l.b16 %v774
      %v1385 = vunpack.c.l.b16 %v781
      %v1386 = vunpack.c.l.b16 %v788
      %v1387 = vunpack.c.l.b16 %v795
      %v1388 = vpack.c.b16 %v1380, %v1379
      %v1389 = vpack.c.b16 %v1382, %v1381
      %v1390 = vpack.c.b16 %v1384, %v1383
      %v1391 = vpack.c.b16 %v1386, %v1385
      %v1392 = vpack.c.b16 %v1387, %v1387
      %1393 = vrot.lane.b32.xlu0 %v1388, 11
      %v1394 = vpop.permute.xlu0 %1393
      %1395 = vrot.lane.b32.xlu0 %v1389, 11
      %v1396 = vpop.permute.xlu0 %1395
      %1397 = vrot.lane.b32.xlu0 %v1390, 11
      %v1398 = vpop.permute.xlu0 %1397
      %1399 = vrot.lane.b32.xlu0 %v1391, 11
      %v1400 = vpop.permute.xlu0 %1399
      %1401 = vrot.lane.b32.xlu0 %v1392, 11
      %v1402 = vpop.permute.xlu0 %1401
      %v1403 = vsel %vm1123, %v1394, %v1014
      %v1404 = vsel %vm1123, %v1396, %v1036
      %v1405 = vsel %vm1123, %v1398, %v1058
      %v1406 = vsel %vm1123, %v1400, %v1080
      %v1407 = vsel %vm1123, %v1402, %v1102
      %v1413 = vsel %vm1214, %v802, 0
      %v1416 = vsel %vm1218, %v1407, 0
      %1418 = vmatpush.bf16.msra.mxu0 0
      %1419 = vmatpush.bf16.msra.mxu0 0
      %1420 = vmatpush.bf16.msra.mxu0 0
      %1421 = vmatpush.bf16.msra.mxu0 %v1416
      %1422 = vmatpush.bf16.msra.mxu0 %v1406
      %1423 = vmatpush.bf16.msra.mxu0 %v1405
      %1424 = vmatpush.bf16.msra.mxu0 %v1404
      %1425 = vmatpush.bf16.msra.mxu0 %v1403
      %1426 = vmatmul.bf16.gmra.mxu0 %v1413
      %v1427 = vpop.f32.mrf.mxu0
      %v1428 = vadd.f32 %v1259, %v1427
      %v1429 = vpop.f32.mrf.mxu0
      %1430 = vdwg.mxu0
      %1431 = vmatpush.bf16.msra.mxu0 0
      %1432 = vmatpush.bf16.msra.mxu0 0
      %1433 = vmatpush.bf16.msra.mxu0 0
      %1434 = vmatpush.bf16.msra.mxu0 %v1220
      %1435 = vmatpush.bf16.msra.mxu0 %v1154
      %1436 = vmatpush.bf16.msra.mxu0 %v1144
      %1437 = vmatpush.bf16.msra.mxu0 %v1134
      %1438 = vmatpush.bf16.msra.mxu0 %v1124
      %1439 = vmatmul.bf16.gmra.mxu0 %v1413
      %v1440 = vpop.f32.mrf.mxu0
      %v1441 = vadd.f32 %v1272, %v1440
      %v1442 = vpop.f32.mrf.mxu0
      %1443 = vdwg.mxu0
      %1444 = vmatpush.bf16.msra.mxu0 0
      %1445 = vmatpush.bf16.msra.mxu0 0
      %1446 = vmatpush.bf16.msra.mxu0 0
      %1447 = vmatpush.bf16.msra.mxu0 %v1223
      %1448 = vmatpush.bf16.msra.mxu0 %v1155
      %1449 = vmatpush.bf16.msra.mxu0 %v1145
      %1450 = vmatpush.bf16.msra.mxu0 %v1135
      %1451 = vmatpush.bf16.msra.mxu0 %v1125
      %1452 = vmatmul.bf16.gmra.mxu0 %v1413
      %v1453 = vpop.f32.mrf.mxu0
      %v1454 = vadd.f32 %v1285, %v1453
      %v1455 = vpop.f32.mrf.mxu0
      %1456 = vdwg.mxu0
      %1457 = vmatpush.bf16.msra.mxu0 0
      %1458 = vmatpush.bf16.msra.mxu0 0
      %1459 = vmatpush.bf16.msra.mxu0 0
      %1460 = vmatpush.bf16.msra.mxu0 %v1226
      %1461 = vmatpush.bf16.msra.mxu0 %v1156
      %1462 = vmatpush.bf16.msra.mxu0 %v1146
      %1463 = vmatpush.bf16.msra.mxu0 %v1136
      %1464 = vmatpush.bf16.msra.mxu0 %v1126
      %1465 = vmatmul.bf16.gmra.mxu0 %v1413
      %v1466 = vpop.f32.mrf.mxu0
      %v1467 = vadd.f32 %v1298, %v1466
      %v1468 = vpop.f32.mrf.mxu0
      %1469 = vdwg.mxu0
      %1470 = vmatpush.bf16.msra.mxu0 0
      %1471 = vmatpush.bf16.msra.mxu0 0
      %1472 = vmatpush.bf16.msra.mxu0 0
      %1473 = vmatpush.bf16.msra.mxu0 %v1229
      %1474 = vmatpush.bf16.msra.mxu0 %v1157
      %1475 = vmatpush.bf16.msra.mxu0 %v1147
      %1476 = vmatpush.bf16.msra.mxu0 %v1137
      %1477 = vmatpush.bf16.msra.mxu0 %v1127
      %1478 = vmatmul.bf16.gmra.mxu0 %v1413
      %v1479 = vpop.f32.mrf.mxu0
      %v1480 = vadd.f32 %v1311, %v1479
      %v1481 = vpop.f32.mrf.mxu0
      %1482 = vdwg.mxu0
      %1483 = vmatpush.bf16.msra.mxu0 0
      %1484 = vmatpush.bf16.msra.mxu0 0
      %1485 = vmatpush.bf16.msra.mxu0 0
      %1486 = vmatpush.bf16.msra.mxu0 %v1232
      %1487 = vmatpush.bf16.msra.mxu0 %v1158
      %1488 = vmatpush.bf16.msra.mxu0 %v1148
      %1489 = vmatpush.bf16.msra.mxu0 %v1138
      %1490 = vmatpush.bf16.msra.mxu0 %v1128
      %1491 = vmatmul.bf16.gmra.mxu0 %v1413
      %v1492 = vpop.f32.mrf.mxu0
      %v1493 = vadd.f32 %v1324, %v1492
      %v1494 = vpop.f32.mrf.mxu0
      %1495 = vdwg.mxu0
      %1496 = vmatpush.bf16.msra.mxu0 0
      %1497 = vmatpush.bf16.msra.mxu0 0
      %1498 = vmatpush.bf16.msra.mxu0 0
      %1499 = vmatpush.bf16.msra.mxu0 %v1235
      %1500 = vmatpush.bf16.msra.mxu0 %v1159
      %1501 = vmatpush.bf16.msra.mxu0 %v1149
      %1502 = vmatpush.bf16.msra.mxu0 %v1139
      %1503 = vmatpush.bf16.msra.mxu0 %v1129
      %1504 = vmatmul.bf16.gmra.mxu0 %v1413
      %v1505 = vpop.f32.mrf.mxu0
      %v1506 = vadd.f32 %v1337, %v1505
      %v1507 = vpop.f32.mrf.mxu0
      %1508 = vdwg.mxu0
      %1509 = vmatpush.bf16.msra.mxu0 0
      %1510 = vmatpush.bf16.msra.mxu0 0
      %1511 = vmatpush.bf16.msra.mxu0 0
      %1512 = vmatpush.bf16.msra.mxu0 %v1238
      %1513 = vmatpush.bf16.msra.mxu0 %v1160
      %1514 = vmatpush.bf16.msra.mxu0 %v1150
      %1515 = vmatpush.bf16.msra.mxu0 %v1140
      %1516 = vmatpush.bf16.msra.mxu0 %v1130
      %1517 = vmatmul.bf16.gmra.mxu0 %v1413
      %v1518 = vpop.f32.mrf.mxu0
      %v1519 = vadd.f32 %v1350, %v1518
      %v1520 = vpop.f32.mrf.mxu0
      %1521 = vdwg.mxu0
      %1522 = vmatpush.bf16.msra.mxu0 0
      %1523 = vmatpush.bf16.msra.mxu0 0
      %1524 = vmatpush.bf16.msra.mxu0 0
      %1525 = vmatpush.bf16.msra.mxu0 %v1241
      %1526 = vmatpush.bf16.msra.mxu0 %v1161
      %1527 = vmatpush.bf16.msra.mxu0 %v1151
      %1528 = vmatpush.bf16.msra.mxu0 %v1141
      %1529 = vmatpush.bf16.msra.mxu0 %v1131
      %1530 = vmatmul.bf16.gmra.mxu0 %v1413
      %v1531 = vpop.f32.mrf.mxu0
      %v1532 = vadd.f32 %v1363, %v1531
      %v1533 = vpop.f32.mrf.mxu0
      %1534 = vdwg.mxu0
      %1535 = vmatpush.bf16.msra.mxu0 0
      %1536 = vmatpush.bf16.msra.mxu0 0
      %1537 = vmatpush.bf16.msra.mxu0 0
      %1538 = vmatpush.bf16.msra.mxu0 %v1244
      %1539 = vmatpush.bf16.msra.mxu0 %v1162
      %1540 = vmatpush.bf16.msra.mxu0 %v1152
      %1541 = vmatpush.bf16.msra.mxu0 %v1142
      %1542 = vmatpush.bf16.msra.mxu0 %v1132
      %1543 = vmatmul.bf16.gmra.mxu0 %v1413
      %v1544 = vpop.f32.mrf.mxu0
      %v1545 = vadd.f32 %v1376, %v1544
      %v1546 = vpop.f32.mrf.mxu0
      %1547 = vdwg.mxu0
      %s1548 = scalar_lea.vmem %s4, 8
      %v1549 = vld [vmem:[%s1548] sm:$0xf]
      %v1558 = vunpack.c.l.b16 %v752
      %v1559 = vunpack.c.l.b16 %v759
      %v1560 = vunpack.c.l.b16 %v766
      %v1561 = vunpack.c.l.b16 %v773
      %v1562 = vunpack.c.l.b16 %v780
      %v1563 = vunpack.c.l.b16 %v787
      %v1564 = vunpack.c.l.b16 %v794
      %v1565 = vunpack.c.l.b16 %v801
      %v1566 = vpack.c.b16 %v1558, %v1379
      %v1567 = vpack.c.b16 %v1560, %v1559
      %v1568 = vpack.c.b16 %v1562, %v1561
      %v1569 = vpack.c.b16 %v1564, %v1563
      %v1570 = vpack.c.b16 %v1565, %v1565
      %1571 = vrot.lane.b32.xlu0 %v1566, 11
      %v1572 = vpop.permute.xlu0 %1571
      %1573 = vrot.lane.b32.xlu0 %v1567, 11
      %v1574 = vpop.permute.xlu0 %1573
      %1575 = vrot.lane.b32.xlu0 %v1568, 11
      %v1576 = vpop.permute.xlu0 %1575
      %1577 = vrot.lane.b32.xlu0 %v1569, 11
      %v1578 = vpop.permute.xlu0 %1577
      %1579 = vrot.lane.b32.xlu0 %v1570, 11
      %v1580 = vpop.permute.xlu0 %1579
      %v1581 = vsel %vm1123, %v1034, %v1572
      %v1582 = vsel %vm1123, %v1056, %v1574
      %v1583 = vsel %vm1123, %v1078, %v1576
      %v1584 = vsel %vm1123, %v1100, %v1578
      %v1585 = vsel %vm1123, %v1122, %v1580
      %v1591 = vsel %vm1214, %v1549, 0
      %v1594 = vsel %vm1218, %v1585, 0
      %1596 = vmatpush.bf16.msra.mxu0 0
      %1597 = vmatpush.bf16.msra.mxu0 0
      %1598 = vmatpush.bf16.msra.mxu0 0
      %1599 = vmatpush.bf16.msra.mxu0 %v1223
      %1600 = vmatpush.bf16.msra.mxu0 %v1155
      %1601 = vmatpush.bf16.msra.mxu0 %v1145
      %1602 = vmatpush.bf16.msra.mxu0 %v1135
      %1603 = vmatpush.bf16.msra.mxu0 %v1125
      %1604 = vmatmul.bf16.gmra.mxu0 %v1591
      %v1605 = vpop.f32.mrf.mxu0
      %v1606 = vadd.f32 0.0, %v1605
      %v1607 = vpop.f32.mrf.mxu0
      %1608 = vdwg.mxu0
      %1609 = vmatpush.bf16.msra.mxu0 0
      %1610 = vmatpush.bf16.msra.mxu0 0
      %1611 = vmatpush.bf16.msra.mxu0 0
      %1612 = vmatpush.bf16.msra.mxu0 %v1226
      %1613 = vmatpush.bf16.msra.mxu0 %v1156
      %1614 = vmatpush.bf16.msra.mxu0 %v1146
      %1615 = vmatpush.bf16.msra.mxu0 %v1136
      %1616 = vmatpush.bf16.msra.mxu0 %v1126
      %1617 = vmatmul.bf16.gmra.mxu0 %v1591
      %v1618 = vpop.f32.mrf.mxu0
      %v1619 = vadd.f32 0.0, %v1618
      %v1620 = vpop.f32.mrf.mxu0
      %1621 = vdwg.mxu0
      %1622 = vmatpush.bf16.msra.mxu0 0
      %1623 = vmatpush.bf16.msra.mxu0 0
      %1624 = vmatpush.bf16.msra.mxu0 0
      %1625 = vmatpush.bf16.msra.mxu0 %v1229
      %1626 = vmatpush.bf16.msra.mxu0 %v1157
      %1627 = vmatpush.bf16.msra.mxu0 %v1147
      %1628 = vmatpush.bf16.msra.mxu0 %v1137
      %1629 = vmatpush.bf16.msra.mxu0 %v1127
      %1630 = vmatmul.bf16.gmra.mxu0 %v1591
      %v1631 = vpop.f32.mrf.mxu0
      %v1632 = vadd.f32 0.0, %v1631
      %v1633 = vpop.f32.mrf.mxu0
      %1634 = vdwg.mxu0
      %1635 = vmatpush.bf16.msra.mxu0 0
      %1636 = vmatpush.bf16.msra.mxu0 0
      %1637 = vmatpush.bf16.msra.mxu0 0
      %1638 = vmatpush.bf16.msra.mxu0 %v1232
      %1639 = vmatpush.bf16.msra.mxu0 %v1158
      %1640 = vmatpush.bf16.msra.mxu0 %v1148
      %1641 = vmatpush.bf16.msra.mxu0 %v1138
      %1642 = vmatpush.bf16.msra.mxu0 %v1128
      %1643 = vmatmul.bf16.gmra.mxu0 %v1591
      %v1644 = vpop.f32.mrf.mxu0
      %v1645 = vadd.f32 0.0, %v1644
      %v1646 = vpop.f32.mrf.mxu0
      %1647 = vdwg.mxu0
      %1648 = vmatpush.bf16.msra.mxu0 0
      %1649 = vmatpush.bf16.msra.mxu0 0
      %1650 = vmatpush.bf16.msra.mxu0 0
      %1651 = vmatpush.bf16.msra.mxu0 %v1235
      %1652 = vmatpush.bf16.msra.mxu0 %v1159
      %1653 = vmatpush.bf16.msra.mxu0 %v1149
      %1654 = vmatpush.bf16.msra.mxu0 %v1139
      %1655 = vmatpush.bf16.msra.mxu0 %v1129
      %1656 = vmatmul.bf16.gmra.mxu0 %v1591
      %v1657 = vpop.f32.mrf.mxu0
      %v1658 = vadd.f32 0.0, %v1657
      %v1659 = vpop.f32.mrf.mxu0
      %1660 = vdwg.mxu0
      %1661 = vmatpush.bf16.msra.mxu0 0
      %1662 = vmatpush.bf16.msra.mxu0 0
      %1663 = vmatpush.bf16.msra.mxu0 0
      %1664 = vmatpush.bf16.msra.mxu0 %v1238
      %1665 = vmatpush.bf16.msra.mxu0 %v1160
      %1666 = vmatpush.bf16.msra.mxu0 %v1150
      %1667 = vmatpush.bf16.msra.mxu0 %v1140
      %1668 = vmatpush.bf16.msra.mxu0 %v1130
      %1669 = vmatmul.bf16.gmra.mxu0 %v1591
      %v1670 = vpop.f32.mrf.mxu0
      %v1671 = vadd.f32 0.0, %v1670
      %v1672 = vpop.f32.mrf.mxu0
      %1673 = vdwg.mxu0
      %1674 = vmatpush.bf16.msra.mxu0 0
      %1675 = vmatpush.bf16.msra.mxu0 0
      %1676 = vmatpush.bf16.msra.mxu0 0
      %1677 = vmatpush.bf16.msra.mxu0 %v1241
      %1678 = vmatpush.bf16.msra.mxu0 %v1161
      %1679 = vmatpush.bf16.msra.mxu0 %v1151
      %1680 = vmatpush.bf16.msra.mxu0 %v1141
      %1681 = vmatpush.bf16.msra.mxu0 %v1131
      %1682 = vmatmul.bf16.gmra.mxu0 %v1591
      %v1683 = vpop.f32.mrf.mxu0
      %v1684 = vadd.f32 0.0, %v1683
      %v1685 = vpop.f32.mrf.mxu0
      %1686 = vdwg.mxu0
      %1687 = vmatpush.bf16.msra.mxu0 0
      %1688 = vmatpush.bf16.msra.mxu0 0
      %1689 = vmatpush.bf16.msra.mxu0 0
      %1690 = vmatpush.bf16.msra.mxu0 %v1244
      %1691 = vmatpush.bf16.msra.mxu0 %v1162
      %1692 = vmatpush.bf16.msra.mxu0 %v1152
      %1693 = vmatpush.bf16.msra.mxu0 %v1142
      %1694 = vmatpush.bf16.msra.mxu0 %v1132
      %1695 = vmatmul.bf16.gmra.mxu0 %v1591
      %v1696 = vpop.f32.mrf.mxu0
      %v1697 = vadd.f32 0.0, %v1696
      %v1698 = vpop.f32.mrf.mxu0
      %1699 = vdwg.mxu0
      %1700 = vmatpush.bf16.msra.mxu0 0
      %1701 = vmatpush.bf16.msra.mxu0 0
      %1702 = vmatpush.bf16.msra.mxu0 0
      %1703 = vmatpush.bf16.msra.mxu0 %v1247
      %1704 = vmatpush.bf16.msra.mxu0 %v1163
      %1705 = vmatpush.bf16.msra.mxu0 %v1153
      %1706 = vmatpush.bf16.msra.mxu0 %v1143
      %1707 = vmatpush.bf16.msra.mxu0 %v1133
      %1708 = vmatmul.bf16.gmra.mxu0 %v1591
      %v1709 = vpop.f32.mrf.mxu0
      %v1710 = vadd.f32 0.0, %v1709
      %v1711 = vpop.f32.mrf.mxu0
      %1712 = vdwg.mxu0
      %1713 = vmatpush.bf16.msra.mxu0 0
      %1714 = vmatpush.bf16.msra.mxu0 0
      %1715 = vmatpush.bf16.msra.mxu0 0
      %1716 = vmatpush.bf16.msra.mxu0 %v1594
      %1717 = vmatpush.bf16.msra.mxu0 %v1584
      %1718 = vmatpush.bf16.msra.mxu0 %v1583
      %1719 = vmatpush.bf16.msra.mxu0 %v1582
      %1720 = vmatpush.bf16.msra.mxu0 %v1581
      %1721 = vmatmul.bf16.gmra.mxu0 %v1591
      %v1722 = vpop.f32.mrf.mxu0
      %v1723 = vadd.f32 0.0, %v1722
      %v1724 = vpop.f32.mrf.mxu0
      %1725 = vdwg.mxu0
      %v1726 = vadd.f32 %v1428, %v1606
      %v1727 = vadd.f32 %v1441, %v1619
      %v1728 = vadd.f32 %v1454, %v1632
      %v1729 = vadd.f32 %v1467, %v1645
      %v1730 = vadd.f32 %v1480, %v1658
      %v1731 = vadd.f32 %v1493, %v1671
      %v1732 = vadd.f32 %v1506, %v1684
      %v1733 = vadd.f32 %v1519, %v1697
      %v1734 = vadd.f32 %v1532, %v1710
      %v1735 = vadd.f32 %v1545, %v1723
      %v1736 = vld [vmem:[%s5] sm:$0xff]
      %1738 = vset.pattern.permute.xlu0 0
      %1739 = vperm.xlu0 %1738, %v1736
      %v1740 = vpop.permute.xlu0 %1739
      %v1742 = vadd.f32 %v1726, %v1740
      %v1743 = vadd.f32 %v1727, %v1740
      %v1744 = vadd.f32 %v1728, %v1740
      %v1745 = vadd.f32 %v1729, %v1740
      %v1746 = vadd.f32 %v1730, %v1740
      %v1747 = vadd.f32 %v1731, %v1740
      %v1748 = vadd.f32 %v1732, %v1740
      %v1749 = vadd.f32 %v1733, %v1740
      %v1750 = vadd.f32 %v1734, %v1740
      %v1751 = vadd.f32 %v1735, %v1740
      %v1752 = vmul.f32 %v1742, %v331
      %v1753 = vmul.f32 %v1743, %v332
      %v1754 = vmul.f32 %v1744, %v333
      %v1755 = vmul.f32 %v1745, %v334
      %v1756 = vmul.f32 %v1746, %v335
      %v1757 = vmul.f32 %v1747, %v336
      %v1758 = vmul.f32 %v1748, %v337
      %v1759 = vmul.f32 %v1749, %v338
      %v1760 = vmul.f32 %v1750, %v339
      %v1761 = vmul.f32 %v1751, %v340
      %1762 = vst [vmem:[%s268] sm:$0xff] %v1752
      %1763 = vst [vmem:[%s268 + $0x8] sm:$0xff] %v1753
      %1764 = vst [vmem:[%s268 + $0x10] sm:$0xff] %v1754
      %1765 = vst [vmem:[%s268 + $0x18] sm:$0xff] %v1755
      %1766 = vst [vmem:[%s268 + $0x20] sm:$0xff] %v1756
      %1767 = vst [vmem:[%s268 + $0x28] sm:$0xff] %v1757
      %1768 = vst [vmem:[%s268 + $0x30] sm:$0xff] %v1758
      %1769 = vst [vmem:[%s268 + $0x38] sm:$0xff] %v1759
      %1770 = vst [vmem:[%s268 + $0x40] sm:$0xff] %v1760
      %1771 = vst [vmem:[%s268 + $0x48] sm:$0xff] %v1761
      %p1772 = scmp.lt.s32.totalorder %s17, 1
      %s1773 = scalar_select %p1772, %s17, 1
      %s1774 = smul.addr %s1773, 10
      %s1775 = smul.addr %s1774, 8
      %s1776 = scalar_lea.vmem %s6, %s1775
      // Predicated region
      $region45: #{transformer_in_feat_forward.3} parent=43 // pred_check
        %p1777 = pneg %p171
      $region46: #{transformer_in_feat_forward.3} parent=43 // pred_check_branch
        %1779 = sbr.rel (%p1777) target = $region48
      $region47: #{transformer_in_feat_forward.3} parent=43 // pred_region
        _
      $region48: #{transformer_in_feat_forward.3} parent=43 // pred_fallthru
        _
    $region44: #{transformer_in_feat_forward.3} parent=5 // pred_fallthru
      _
    %p1780 = scmp.le.s32.totalorder 2, %s12
    // Predicated region
    $region49: #{transformer_in_feat_forward.3} parent=5 // pred_check
      %p1781 = pneg %p1780
    $region50: #{transformer_in_feat_forward.3} parent=5 // pred_check_branch
      %1783 = sbr.rel (%p1781) target = $region52
    $region51: #{transformer_in_feat_forward.3} parent=5 // pred_region
      %s1784 = ssub.s32 %s12, 2
      // Predicated region
      $region53: #{transformer_in_feat_forward.3} parent=51 // pred_check
        %p1785 = pneg %p177
      $region54: #{transformer_in_feat_forward.3} parent=51 // pred_check_branch
        %1787 = sbr.rel (%p1785) target = $region56
      $region55: #{transformer_in_feat_forward.3} parent=51 // pred_region
        %p1788 = scmp.lt.s32.totalorder %s18, 1
        %s1789 = scalar_select %p1788, %s18, 1
        %s1790 = smul.addr %s1789, 10
        %s1791 = smul.addr %s1790, 8
        %s1792 = scalar_lea.vmem %s6, %s1791
      $region56: #{transformer_in_feat_forward.3} parent=51 // pred_fallthru
        _
    $region52: #{transformer_in_feat_forward.3} parent=5 // pred_fallthru
      _
  $region6: #{transformer_in_feat_forward.3} parent=0 // loop_footer
    %s16 = sadd.s32 1, %s12
  $region7: #{transformer_in_feat_forward.3} parent=0 // loop_footer_branch
    %11 = sbr.rel target = $region3
  $region8: #{transformer_in_feat_forward.3} parent=0 // loop_exit
    _

// kernel: transformer_in_feat_forward.2
$region0: #{transformer_in_feat_forward.2}
  #allocation0 [shape = 'u32[]', space=smem, size = 0x4, offset = 0x4, fixed_abs, tag = 'smem constant byte address 0x4 - core index']
  #allocation1 [shape = 'u32[72,128]{1,0:T(1,128)}', space=vmem, size = 0x9000, scoped, tag = 'internal scratch']
  %s0 = inlined_call_operand.vmem [shape: f32[2,8,1280], index: 0, kind: input, shape index: {}]
  %s1 = inlined_call_operand.vmem [shape: f32[2,8,1], index: 1, kind: input, shape index: {}]
  %s2 = inlined_call_operand.vmem [shape: f32[2,1,1280], index: 2, kind: input, shape index: {}]
  %s3 = inlined_call_operand.vmem [shape: bf16[3,8,72], index: 3, kind: input, shape index: {}]
  %s4 = inlined_call_operand.vmem [shape: bf16[2,8,1280], index: 4, kind: output, shape index: {0}]
  %s5 = inlined_call_operand.vmem [shape: f32[2,8,1], index: 5, kind: output, shape index: {1}]
  %s6 = inlined_call_operand.vmem [shape: f32[2,8,1], index: 6, kind: output, shape index: {2}]
  %7 = xla_tuple %s4, %s5, %s6
  %s8 = sld [smem:[#allocation0]]
  $region65: #{transformer_in_feat_forward.2} parent=0
    _
  %s10 = ssub.s32 1, %s8
  %s11 = scalar_select 0, %s10, %s8
  loop: start=0, step=1, limit=4
  $region2: #{transformer_in_feat_forward.2} parent=0 // loop_pre_header
    _
  $region3: #{transformer_in_feat_forward.2} parent=0 // loop_header
    %s13 = sphi 0, %s17
    %p14 = scmp.ge.s32.totalorder %s13, 4
    %s23 = sphi 0, %s25
    %s26 = sphi 0, %s23
    %s27 = sphi 0, %s26
    %s43 = sphi 0, %s27
    %s49 = sphi 0, %s51
    %s52 = sphi 0, %s49
    %s53 = sphi 0, %s52
    %s69 = sphi 0, %s53
    %s75 = sphi 0, %s77
    %s78 = sphi 0, %s75
    %s79 = sphi 0, %s78
    %s95 = sphi 0, %s79
    %s99 = sphi 0, %s99
    %s101 = sphi 0, %s99
    %s102 = sphi 0, %s101
    %s116 = sphi 0, %s102
    %s122 = sphi 0, %s124
    %s125 = sphi 0, %s122
    %s126 = sphi 0, %s125
    %s142 = sphi 0, %s126
    %s148 = sphi 0, %s150
    %s151 = sphi 0, %s148
    %s152 = sphi 0, %s151
    %s168 = sphi 0, %s152
    %s174 = sphi 0, %s176
    %s177 = sphi 0, %s174
    %s178 = sphi 0, %s177
    %s194 = sphi 0, %s178
  $region4: #{transformer_in_feat_forward.2} parent=0 // loop_header_branch
    %16 = sbr.rel (%p14) target = $region8
  $region5: #{transformer_in_feat_forward.2} parent=0 // loop_body
    %s18 = ssub.s32 %s13, 1
    %s19 = ssub.s32 %s13, 2
    %s20 = sadd.s32 %s13, 1
    %s21 = ssub.s32 %s13, %s20
    %p22 = scmp.eq.s32.totalorder %s21, 0
    %s24 = sadd.s32 %s23, 1
    %s25 = scalar_select %p22, %s23, %s24
    %p28 = pneg %p22
    %p29 = scmp.eq.s32.totalorder %s13, 1
    %p30 = por %p28, %p29
    %p31 = scmp.ne.s32.totalorder %s23, %s26
    %p32 = scmp.eq.s32.totalorder %s13, 0
    %p33 = por %p31, %p32
    %p34 = scmp.ne.s32.totalorder %s23, %s26
    %p35 = scmp.eq.s32.totalorder %s18, 1
    %p36 = por %p34, %p35
    %p37 = scmp.ne.s32.totalorder %s26, %s27
    %p38 = scmp.eq.s32.totalorder %s18, 0
    %p39 = por %p37, %p38
    %p40 = scmp.ne.s32.totalorder %s26, %s27
    %p41 = scmp.eq.s32.totalorder %s19, 1
    %p42 = por %p40, %p41
    %p44 = scmp.ne.s32.totalorder %s27, %s43
    %p45 = scmp.eq.s32.totalorder %s19, 0
    %p46 = por %p44, %p45
    %s47 = ssub.s32 %s13, %s20
    %p48 = scmp.eq.s32.totalorder %s47, 0
    %s50 = sadd.s32 %s49, 1
    %s51 = scalar_select %p48, %s49, %s50
    %p54 = pneg %p48
    %p55 = scmp.eq.s32.totalorder %s13, 1
    %p56 = por %p54, %p55
    %p57 = scmp.ne.s32.totalorder %s49, %s52
    %p58 = scmp.eq.s32.totalorder %s13, 0
    %p59 = por %p57, %p58
    %p60 = scmp.ne.s32.totalorder %s49, %s52
    %p61 = scmp.eq.s32.totalorder %s18, 1
    %p62 = por %p60, %p61
    %p63 = scmp.ne.s32.totalorder %s52, %s53
    %p64 = scmp.eq.s32.totalorder %s18, 0
    %p65 = por %p63, %p64
    %p66 = scmp.ne.s32.totalorder %s52, %s53
    %p67 = scmp.eq.s32.totalorder %s19, 1
    %p68 = por %p66, %p67
    %p70 = scmp.ne.s32.totalorder %s53, %s69
    %p71 = scmp.eq.s32.totalorder %s19, 0
    %p72 = por %p70, %p71
    %s73 = ssub.s32 %s13, %s20
    %p74 = scmp.eq.s32.totalorder %s73, 0
    %s76 = sadd.s32 %s75, 1
    %s77 = scalar_select %p74, %s75, %s76
    %p80 = pneg %p74
    %p81 = scmp.eq.s32.totalorder %s13, 1
    %p82 = por %p80, %p81
    %p83 = scmp.ne.s32.totalorder %s75, %s78
    %p84 = scmp.eq.s32.totalorder %s13, 0
    %p85 = por %p83, %p84
    %p86 = scmp.ne.s32.totalorder %s75, %s78
    %p87 = scmp.eq.s32.totalorder %s18, 1
    %p88 = por %p86, %p87
    %p89 = scmp.ne.s32.totalorder %s78, %s79
    %p90 = scmp.eq.s32.totalorder %s18, 0
    %p91 = por %p89, %p90
    %p92 = scmp.ne.s32.totalorder %s78, %s79
    %p93 = scmp.eq.s32.totalorder %s19, 1
    %p94 = por %p92, %p93
    %p96 = scmp.ne.s32.totalorder %s79, %s95
    %p97 = scmp.eq.s32.totalorder %s19, 0
    %p98 = por %p96, %p97
    %s100 = sadd.s32 %s99, 1
    %p103 = scmp.eq.s32.totalorder %s13, 1
    %p104 = scmp.ne.s32.totalorder %s99, %s101
    %p105 = scmp.eq.s32.totalorder %s13, 0
    %p106 = por %p104, %p105
    %p107 = scmp.ne.s32.totalorder %s99, %s101
    %p108 = scmp.eq.s32.totalorder %s18, 1
    %p109 = por %p107, %p108
    %p110 = scmp.ne.s32.totalorder %s101, %s102
    %p111 = scmp.eq.s32.totalorder %s18, 0
    %p112 = por %p110, %p111
    %p113 = scmp.ne.s32.totalorder %s101, %s102
    %p114 = scmp.eq.s32.totalorder %s19, 1
    %p115 = por %p113, %p114
    %p117 = scmp.ne.s32.totalorder %s102, %s116
    %p118 = scmp.eq.s32.totalorder %s19, 0
    %p119 = por %p117, %p118
    %s120 = ssub.s32 %s13, %s20
    %p121 = scmp.eq.s32.totalorder %s120, 0
    %s123 = sadd.s32 %s122, 1
    %s124 = scalar_select %p121, %s122, %s123
    %p127 = pneg %p121
    %p128 = scmp.eq.s32.totalorder %s13, 1
    %p129 = por %p127, %p128
    %p130 = scmp.ne.s32.totalorder %s122, %s125
    %p131 = scmp.eq.s32.totalorder %s13, 0
    %p132 = por %p130, %p131
    %p133 = scmp.ne.s32.totalorder %s122, %s125
    %p134 = scmp.eq.s32.totalorder %s18, 1
    %p135 = por %p133, %p134
    %p136 = scmp.ne.s32.totalorder %s125, %s126
    %p137 = scmp.eq.s32.totalorder %s18, 0
    %p138 = por %p136, %p137
    %p139 = scmp.ne.s32.totalorder %s125, %s126
    %p140 = scmp.eq.s32.totalorder %s19, 1
    %p141 = por %p139, %p140
    %p143 = scmp.ne.s32.totalorder %s126, %s142
    %p144 = scmp.eq.s32.totalorder %s19, 0
    %p145 = por %p143, %p144
    %s146 = ssub.s32 %s13, %s20
    %p147 = scmp.eq.s32.totalorder %s146, 0
    %s149 = sadd.s32 %s148, 1
    %s150 = scalar_select %p147, %s148, %s149
    %p153 = pneg %p147
    %p154 = scmp.eq.s32.totalorder %s13, 1
    %p155 = por %p153, %p154
    %p156 = scmp.ne.s32.totalorder %s148, %s151
    %p157 = scmp.eq.s32.totalorder %s13, 0
    %p158 = por %p156, %p157
    %p159 = scmp.ne.s32.totalorder %s148, %s151
    %p160 = scmp.eq.s32.totalorder %s18, 1
    %p161 = por %p159, %p160
    %p162 = scmp.ne.s32.totalorder %s151, %s152
    %p163 = scmp.eq.s32.totalorder %s18, 0
    %p164 = por %p162, %p163
    %p165 = scmp.ne.s32.totalorder %s151, %s152
    %p166 = scmp.eq.s32.totalorder %s19, 1
    %p167 = por %p165, %p166
    %p169 = scmp.ne.s32.totalorder %s152, %s168
    %p170 = scmp.eq.s32.totalorder %s19, 0
    %p171 = por %p169, %p170
    %s172 = ssub.s32 %s13, %s20
    %p173 = scmp.eq.s32.totalorder %s172, 0
    %s175 = sadd.s32 %s174, 1
    %s176 = scalar_select %p173, %s174, %s175
    %p179 = pneg %p173
    %p180 = scmp.eq.s32.totalorder %s13, 1
    %p181 = por %p179, %p180
    %p182 = scmp.ne.s32.totalorder %s174, %s177
    %p183 = scmp.eq.s32.totalorder %s13, 0
    %p184 = por %p182, %p183
    %p185 = scmp.ne.s32.totalorder %s174, %s177
    %p186 = scmp.eq.s32.totalorder %s18, 1
    %p187 = por %p185, %p186
    %p188 = scmp.ne.s32.totalorder %s177, %s178
    %p189 = scmp.eq.s32.totalorder %s18, 0
    %p190 = por %p188, %p189
    %p191 = scmp.ne.s32.totalorder %s177, %s178
    %p192 = scmp.eq.s32.totalorder %s19, 1
    %p193 = por %p191, %p192
    %p195 = scmp.ne.s32.totalorder %s178, %s194
    %p196 = scmp.eq.s32.totalorder %s19, 0
    %p197 = por %p195, %p196
    %p198 = scmp.le.s32.totalorder 1, %s13
    %p199 = scmp.lt.s32.totalorder %s13, 3
    %p200 = pnand %p198, %p199
    %p201 = pneg %p200
    // Predicated region
    $region9: #{transformer_in_feat_forward.2} parent=5 // pred_check
      _
    $region10: #{transformer_in_feat_forward.2} parent=5 // pred_check_branch
      %203 = sbr.rel (%p200) target = $region12
    $region11: #{transformer_in_feat_forward.2} parent=5 // pred_region
      %s204 = ssub.s32 %s13, 1
      // Predicated region
      $region13: #{transformer_in_feat_forward.2} parent=11 // pred_check
        %p205 = pneg %p112
      $region14: #{transformer_in_feat_forward.2} parent=11 // pred_check_branch
        %207 = sbr.rel (%p205) target = $region16
      $region15: #{transformer_in_feat_forward.2} parent=11 // pred_region
        _
      $region16: #{transformer_in_feat_forward.2} parent=11 // pred_fallthru
        _
    $region12: #{transformer_in_feat_forward.2} parent=5 // pred_fallthru
      _
    %p208 = scmp.lt.s32.totalorder %s13, 2
    // Predicated region
    $region17: #{transformer_in_feat_forward.2} parent=5 // pred_check
      %p209 = pneg %p208
    $region18: #{transformer_in_feat_forward.2} parent=5 // pred_check_branch
      %211 = sbr.rel (%p209) target = $region20
    $region19: #{transformer_in_feat_forward.2} parent=5 // pred_region
      // Predicated region
      $region21: #{transformer_in_feat_forward.2} parent=19 // pred_check
        %p212 = pneg %p33
      $region22: #{transformer_in_feat_forward.2} parent=19 // pred_check_branch
        %214 = sbr.rel (%p212) target = $region24
      $region23: #{transformer_in_feat_forward.2} parent=19 // pred_region
        %p215 = scmp.lt.s32.totalorder %s13, 1
        %s216 = scalar_select %p215, %s13, 1
        %s217 = smul.addr %s216, 10
        %s218 = smul.addr %s217, 8
        %s219 = scalar_lea.vmem %s0, %s218
      $region24: #{transformer_in_feat_forward.2} parent=19 // pred_fallthru
        _
      // Predicated region
      $region25: #{transformer_in_feat_forward.2} parent=19 // pred_check
        %p220 = pneg %p59
      $region26: #{transformer_in_feat_forward.2} parent=19 // pred_check_branch
        %222 = sbr.rel (%p220) target = $region28
      $region27: #{transformer_in_feat_forward.2} parent=19 // pred_region
        %p223 = scmp.lt.s32.totalorder %s13, 1
        %s224 = scalar_select %p223, %s13, 1
        %s225 = smul.addr %s224, 8
        %s226 = scalar_lea.vmem %s1, %s225
      $region28: #{transformer_in_feat_forward.2} parent=19 // pred_fallthru
        _
      // Predicated region
      $region29: #{transformer_in_feat_forward.2} parent=19 // pred_check
        %p227 = pneg %p85
      $region30: #{transformer_in_feat_forward.2} parent=19 // pred_check_branch
        %229 = sbr.rel (%p227) target = $region32
      $region31: #{transformer_in_feat_forward.2} parent=19 // pred_region
        %p230 = scmp.lt.s32.totalorder %s13, 1
        %s231 = scalar_select %p230, %s13, 1
        %s232 = smul.addr %s231, 10
        %s233 = scalar_lea.vmem %s2, %s232
      $region32: #{transformer_in_feat_forward.2} parent=19 // pred_fallthru
        _
    $region20: #{transformer_in_feat_forward.2} parent=5 // pred_fallthru
      _
    %p234 = scmp.le.s32.totalorder 1, %s13
    %p235 = scmp.lt.s32.totalorder %s13, 3
    %p236 = pnand %p234, %p235
    %p237 = pneg %p236
    // Predicated region
    $region33: #{transformer_in_feat_forward.2} parent=5 // pred_check
      _
    $region34: #{transformer_in_feat_forward.2} parent=5 // pred_check_branch
      %239 = sbr.rel (%p236) target = $region36
    $region35: #{transformer_in_feat_forward.2} parent=5 // pred_region
      %s240 = ssub.s32 %s13, 1
      %p241 = scmp.lt.s32.totalorder %s18, 1
      %s242 = scalar_select %p241, %s18, 1
      %s243 = smul.addr %s242, 10
      %s244 = smul.addr %s243, 8
      %s245 = scalar_lea.vmem %s0, %s244
      %p246 = pneg %p39
      %p247 = pneg %p36
      %p248 = scmp.lt.s32.totalorder %s18, 1
      %s249 = scalar_select %p248, %s18, 1
      %s250 = smul.addr %s249, 8
      %s251 = scalar_lea.vmem %s1, %s250
      %p252 = pneg %p65
      %p253 = pneg %p62
      %p254 = scmp.lt.s32.totalorder %s18, 1
      %s255 = scalar_select %p254, %s18, 1
      %s256 = smul.addr %s255, 10
      %s257 = scalar_lea.vmem %s2, %s256
      %p258 = pneg %p91
      %p259 = pneg %p88
      %p260 = pneg %p112
      %p261 = pneg %p109
      %p262 = pneg %p138
      %p263 = pneg %p135
      %p264 = scmp.lt.s32.totalorder %s18, 1
      %s265 = scalar_select %p264, %s18, 1
      %s266 = smul.addr %s265, 10
      %s267 = smul.addr %s266, 4
      %s268 = scalar_lea.vmem %s4, %s267
      %p269 = pneg %p164
      %p270 = pneg %p161
      %p271 = scmp.lt.s32.totalorder %s18, 1
      %s272 = scalar_select %p271, %s18, 1
      %s273 = smul.addr %s272, 8
      %s274 = scalar_lea.vmem %s5, %s273
      %p275 = pneg %p190
      %p276 = pneg %p187
      %p277 = scmp.lt.s32.totalorder %s18, 1
      %s278 = scalar_select %p277, %s18, 1
      %s279 = smul.addr %s278, 8
      %s280 = scalar_lea.vmem %s6, %s279
      %p281 = scmp.lt.s32.totalorder %s18, 1
      %s282 = scalar_select %p281, %s18, 1
      %s283 = smul.addr %s282, 10
      %s284 = smul.addr %s283, 8
      %s285 = scalar_lea.vmem %s0, %s284
      %p286 = scmp.lt.s32.totalorder %s18, 1
      %s287 = scalar_select %p286, %s18, 1
      %s288 = smul.addr %s287, 8
      %s289 = scalar_lea.vmem %s1, %s288
      %p290 = scmp.lt.s32.totalorder %s18, 1
      %s291 = scalar_select %p290, %s18, 1
      %s292 = smul.addr %s291, 10
      %s293 = scalar_lea.vmem %s2, %s292
      %p294 = scmp.lt.s32.totalorder %s18, 1
      %s295 = scalar_select %p294, %s18, 1
      %s296 = smul.addr %s295, 10
      %s297 = smul.addr %s296, 4
      %s298 = scalar_lea.vmem %s4, %s297
      %p299 = scmp.lt.s32.totalorder %s18, 1
      %s300 = scalar_select %p299, %s18, 1
      %s301 = smul.addr %s300, 8
      %s302 = scalar_lea.vmem %s5, %s301
      %p303 = scmp.lt.s32.totalorder %s18, 1
      %s304 = scalar_select %p303, %s18, 1
      %s305 = smul.addr %s304, 8
      %s306 = scalar_lea.vmem %s6, %s305
      %v308 = vld [vmem:[%s285] sm:$0xff]
      %v309 = vld [vmem:[%s285 + $0x8] sm:$0xff]
      %v310 = vld [vmem:[%s285 + $0x10] sm:$0xff]
      %v311 = vld [vmem:[%s285 + $0x18] sm:$0xff]
      %v312 = vld [vmem:[%s285 + $0x20] sm:$0xff]
      %v313 = vld [vmem:[%s285 + $0x28] sm:$0xff]
      %v314 = vld [vmem:[%s285 + $0x30] sm:$0xff]
      %v315 = vld [vmem:[%s285 + $0x38] sm:$0xff]
      %v316 = vld [vmem:[%s285 + $0x40] sm:$0xff]
      %v317 = vld [vmem:[%s285 + $0x48] sm:$0xff]
      %v318 = vld [vmem:[%s289] sm:$0xff]
      %320 = vset.pattern.permute.xlu0 0
      %321 = vperm.xlu0 %320, %v318
      %v322 = vpop.permute.xlu0 %321
      %v324 = vmul.f32 %v308, %v322
      %v325 = vmul.f32 %v309, %v322
      %v326 = vmul.f32 %v310, %v322
      %v327 = vmul.f32 %v311, %v322
      %v328 = vmul.f32 %v312, %v322
      %v329 = vmul.f32 %v313, %v322
      %v330 = vmul.f32 %v314, %v322
      %v331 = vmul.f32 %v315, %v322
      %v332 = vmul.f32 %v316, %v322
      %v333 = vmul.f32 %v317, %v322
      %345 = vrot.lane.b32.xlu0 0.0, 127
      %v346 = vpop.permute.xlu0 %345
      %347 = vrot.lane.b32.xlu0 %v324, 127
      %v348 = vpop.permute.xlu0 %347
      %349 = vrot.lane.b32.xlu0 %v325, 127
      %v350 = vpop.permute.xlu0 %349
      %351 = vrot.lane.b32.xlu0 %v326, 127
      %v352 = vpop.permute.xlu0 %351
      %353 = vrot.lane.b32.xlu0 %v327, 127
      %v354 = vpop.permute.xlu0 %353
      %355 = vrot.lane.b32.xlu0 %v328, 127
      %v356 = vpop.permute.xlu0 %355
      %357 = vrot.lane.b32.xlu0 %v329, 127
      %v358 = vpop.permute.xlu0 %357
      %359 = vrot.lane.b32.xlu0 %v330, 127
      %v360 = vpop.permute.xlu0 %359
      %361 = vrot.lane.b32.xlu0 %v331, 127
      %v362 = vpop.permute.xlu0 %361
      %363 = vrot.lane.b32.xlu0 %v332, 127
      %v364 = vpop.permute.xlu0 %363
      %365 = vrot.lane.b32.xlu0 %v333, 127
      %v366 = vpop.permute.xlu0 %365
      %vm367 = vcmask 1039360
      %v368 = vsel %vm367, %v346, %v348
      %v369 = vsel %vm367, %v348, %v350
      %v370 = vsel %vm367, %v350, %v352
      %v371 = vsel %vm367, %v352, %v354
      %v372 = vsel %vm367, %v354, %v356
      %v373 = vsel %vm367, %v356, %v358
      %v374 = vsel %vm367, %v358, %v360
      %v375 = vsel %vm367, %v360, %v362
      %v376 = vsel %vm367, %v362, %v364
      %v377 = vsel %vm367, %v364, %v366
      %v378 = vsel %vm367, %v366, %v346
      %391 = vrot.lane.b32.xlu0 0.0, 126
      %v392 = vpop.permute.xlu0 %391
      %393 = vrot.lane.b32.xlu0 %v324, 126
      %v394 = vpop.permute.xlu0 %393
      %395 = vrot.lane.b32.xlu0 %v325, 126
      %v396 = vpop.permute.xlu0 %395
      %397 = vrot.lane.b32.xlu0 %v326, 126
      %v398 = vpop.permute.xlu0 %397
      %399 = vrot.lane.b32.xlu0 %v327, 126
      %v400 = vpop.permute.xlu0 %399
      %401 = vrot.lane.b32.xlu0 %v328, 126
      %v402 = vpop.permute.xlu0 %401
      %403 = vrot.lane.b32.xlu0 %v329, 126
      %v404 = vpop.permute.xlu0 %403
      %405 = vrot.lane.b32.xlu0 %v330, 126
      %v406 = vpop.permute.xlu0 %405
      %407 = vrot.lane.b32.xlu0 %v331, 126
      %v408 = vpop.permute.xlu0 %407
      %409 = vrot.lane.b32.xlu0 %v332, 126
      %v410 = vpop.permute.xlu0 %409
      %411 = vrot.lane.b32.xlu0 %v333, 126
      %v412 = vpop.permute.xlu0 %411
      %vm413 = vcmask 1031168
      %v414 = vsel %vm413, %v392, %v394
      %v415 = vsel %vm413, %v394, %v396
      %v416 = vsel %vm413, %v396, %v398
      %v417 = vsel %vm413, %v398, %v400
      %v418 = vsel %vm413, %v400, %v402
      %v419 = vsel %vm413, %v402, %v404
      %v420 = vsel %vm413, %v404, %v406
      %v421 = vsel %vm413, %v406, %v408
      %v422 = vsel %vm413, %v408, %v410
      %v423 = vsel %vm413, %v410, %v412
      %v424 = vsel %vm413, %v412, %v392
      %437 = vrot.lane.b32.xlu0 0.0, 118
      %v438 = vpop.permute.xlu0 %437
      %439 = vrot.lane.b32.xlu0 %v324, 118
      %v440 = vpop.permute.xlu0 %439
      %441 = vrot.lane.b32.xlu0 %v325, 118
      %v442 = vpop.permute.xlu0 %441
      %443 = vrot.lane.b32.xlu0 %v326, 118
      %v444 = vpop.permute.xlu0 %443
      %445 = vrot.lane.b32.xlu0 %v327, 118
      %v446 = vpop.permute.xlu0 %445
      %447 = vrot.lane.b32.xlu0 %v328, 118
      %v448 = vpop.permute.xlu0 %447
      %449 = vrot.lane.b32.xlu0 %v329, 118
      %v450 = vpop.permute.xlu0 %449
      %451 = vrot.lane.b32.xlu0 %v330, 118
      %v452 = vpop.permute.xlu0 %451
      %453 = vrot.lane.b32.xlu0 %v331, 118
      %v454 = vpop.permute.xlu0 %453
      %455 = vrot.lane.b32.xlu0 %v332, 118
      %v456 = vpop.permute.xlu0 %455
      %457 = vrot.lane.b32.xlu0 %v333, 118
      %v458 = vpop.permute.xlu0 %457
      %vm459 = vcmask 965632
      %v460 = vsel %vm459, %v438, %v440
      %v461 = vsel %vm459, %v440, %v442
      %v462 = vsel %vm459, %v442, %v444
      %v463 = vsel %vm459, %v444, %v446
      %v464 = vsel %vm459, %v446, %v448
      %v465 = vsel %vm459, %v448, %v450
      %v466 = vsel %vm459, %v450, %v452
      %v467 = vsel %vm459, %v452, %v454
      %v468 = vsel %vm459, %v454, %v456
      %v469 = vsel %vm459, %v456, %v458
      %v470 = vsel %vm459, %v458, %v438
      %483 = vrot.lane.b32.xlu0 0.0, 117
      %v484 = vpop.permute.xlu0 %483
      %485 = vrot.lane.b32.xlu0 %v324, 117
      %v486 = vpop.permute.xlu0 %485
      %487 = vrot.lane.b32.xlu0 %v325, 117
      %v488 = vpop.permute.xlu0 %487
      %489 = vrot.lane.b32.xlu0 %v326, 117
      %v490 = vpop.permute.xlu0 %489
      %491 = vrot.lane.b32.xlu0 %v327, 117
      %v492 = vpop.permute.xlu0 %491
      %493 = vrot.lane.b32.xlu0 %v328, 117
      %v494 = vpop.permute.xlu0 %493
      %495 = vrot.lane.b32.xlu0 %v329, 117
      %v496 = vpop.permute.xlu0 %495
      %497 = vrot.lane.b32.xlu0 %v330, 117
      %v498 = vpop.permute.xlu0 %497
      %499 = vrot.lane.b32.xlu0 %v331, 117
      %v500 = vpop.permute.xlu0 %499
      %501 = vrot.lane.b32.xlu0 %v332, 117
      %v502 = vpop.permute.xlu0 %501
      %503 = vrot.lane.b32.xlu0 %v333, 117
      %v504 = vpop.permute.xlu0 %503
      %vm505 = vcmask 957440
      %v506 = vsel %vm505, %v484, %v486
      %v507 = vsel %vm505, %v486, %v488
      %v508 = vsel %vm505, %v488, %v490
      %v509 = vsel %vm505, %v490, %v492
      %v510 = vsel %vm505, %v492, %v494
      %v511 = vsel %vm505, %v494, %v496
      %v512 = vsel %vm505, %v496, %v498
      %v513 = vsel %vm505, %v498, %v500
      %v514 = vsel %vm505, %v500, %v502
      %v515 = vsel %vm505, %v502, %v504
      %v516 = vsel %vm505, %v504, %v484
      %529 = vrot.lane.b32.xlu0 0.0, 116
      %v530 = vpop.permute.xlu0 %529
      %531 = vrot.lane.b32.xlu0 %v324, 116
      %v532 = vpop.permute.xlu0 %531
      %533 = vrot.lane.b32.xlu0 %v325, 116
      %v534 = vpop.permute.xlu0 %533
      %535 = vrot.lane.b32.xlu0 %v326, 116
      %v536 = vpop.permute.xlu0 %535
      %537 = vrot.lane.b32.xlu0 %v327, 116
      %v538 = vpop.permute.xlu0 %537
      %539 = vrot.lane.b32.xlu0 %v328, 116
      %v540 = vpop.permute.xlu0 %539
      %541 = vrot.lane.b32.xlu0 %v329, 116
      %v542 = vpop.permute.xlu0 %541
      %543 = vrot.lane.b32.xlu0 %v330, 116
      %v544 = vpop.permute.xlu0 %543
      %545 = vrot.lane.b32.xlu0 %v331, 116
      %v546 = vpop.permute.xlu0 %545
      %547 = vrot.lane.b32.xlu0 %v332, 116
      %v548 = vpop.permute.xlu0 %547
      %549 = vrot.lane.b32.xlu0 %v333, 116
      %v550 = vpop.permute.xlu0 %549
      %vm551 = vcmask 949248
      %v552 = vsel %vm551, %v530, %v532
      %v553 = vsel %vm551, %v532, %v534
      %v554 = vsel %vm551, %v534, %v536
      %v555 = vsel %vm551, %v536, %v538
      %v556 = vsel %vm551, %v538, %v540
      %v557 = vsel %vm551, %v540, %v542
      %v558 = vsel %vm551, %v542, %v544
      %v559 = vsel %vm551, %v544, %v546
      %v560 = vsel %vm551, %v546, %v548
      %v561 = vsel %vm551, %v548, %v550
      %v562 = vsel %vm551, %v550, %v530
      %575 = vrot.lane.b32.xlu0 0.0, 108
      %v576 = vpop.permute.xlu0 %575
      %577 = vrot.lane.b32.xlu0 %v324, 108
      %v578 = vpop.permute.xlu0 %577
      %579 = vrot.lane.b32.xlu0 %v325, 108
      %v580 = vpop.permute.xlu0 %579
      %581 = vrot.lane.b32.xlu0 %v326, 108
      %v582 = vpop.permute.xlu0 %581
      %583 = vrot.lane.b32.xlu0 %v327, 108
      %v584 = vpop.permute.xlu0 %583
      %585 = vrot.lane.b32.xlu0 %v328, 108
      %v586 = vpop.permute.xlu0 %585
      %587 = vrot.lane.b32.xlu0 %v329, 108
      %v588 = vpop.permute.xlu0 %587
      %589 = vrot.lane.b32.xlu0 %v330, 108
      %v590 = vpop.permute.xlu0 %589
      %591 = vrot.lane.b32.xlu0 %v331, 108
      %v592 = vpop.permute.xlu0 %591
      %593 = vrot.lane.b32.xlu0 %v332, 108
      %v594 = vpop.permute.xlu0 %593
      %595 = vrot.lane.b32.xlu0 %v333, 108
      %v596 = vpop.permute.xlu0 %595
      %vm597 = vcmask 883712
      %v598 = vsel %vm597, %v576, %v578
      %v599 = vsel %vm597, %v578, %v580
      %v600 = vsel %vm597, %v580, %v582
      %v601 = vsel %vm597, %v582, %v584
      %v602 = vsel %vm597, %v584, %v586
      %v603 = vsel %vm597, %v586, %v588
      %v604 = vsel %vm597, %v588, %v590
      %v605 = vsel %vm597, %v590, %v592
      %v606 = vsel %vm597, %v592, %v594
      %v607 = vsel %vm597, %v594, %v596
      %v608 = vsel %vm597, %v596, %v576
      %621 = vrot.lane.b32.xlu0 0.0, 107
      %v622 = vpop.permute.xlu0 %621
      %623 = vrot.lane.b32.xlu0 %v324, 107
      %v624 = vpop.permute.xlu0 %623
      %625 = vrot.lane.b32.xlu0 %v325, 107
      %v626 = vpop.permute.xlu0 %625
      %627 = vrot.lane.b32.xlu0 %v326, 107
      %v628 = vpop.permute.xlu0 %627
      %629 = vrot.lane.b32.xlu0 %v327, 107
      %v630 = vpop.permute.xlu0 %629
      %631 = vrot.lane.b32.xlu0 %v328, 107
      %v632 = vpop.permute.xlu0 %631
      %633 = vrot.lane.b32.xlu0 %v329, 107
      %v634 = vpop.permute.xlu0 %633
      %635 = vrot.lane.b32.xlu0 %v330, 107
      %v636 = vpop.permute.xlu0 %635
      %637 = vrot.lane.b32.xlu0 %v331, 107
      %v638 = vpop.permute.xlu0 %637
      %639 = vrot.lane.b32.xlu0 %v332, 107
      %v640 = vpop.permute.xlu0 %639
      %641 = vrot.lane.b32.xlu0 %v333, 107
      %v642 = vpop.permute.xlu0 %641
      %vm643 = vcmask 875520
      %v644 = vsel %vm643, %v622, %v624
      %v645 = vsel %vm643, %v624, %v626
      %v646 = vsel %vm643, %v626, %v628
      %v647 = vsel %vm643, %v628, %v630
      %v648 = vsel %vm643, %v630, %v632
      %v649 = vsel %vm643, %v632, %v634
      %v650 = vsel %vm643, %v634, %v636
      %v651 = vsel %vm643, %v636, %v638
      %v652 = vsel %vm643, %v638, %v640
      %v653 = vsel %vm643, %v640, %v642
      %v654 = vsel %vm643, %v642, %v622
      %667 = vrot.lane.b32.xlu0 0.0, 106
      %v668 = vpop.permute.xlu0 %667
      %669 = vrot.lane.b32.xlu0 %v324, 106
      %v670 = vpop.permute.xlu0 %669
      %671 = vrot.lane.b32.xlu0 %v325, 106
      %v672 = vpop.permute.xlu0 %671
      %673 = vrot.lane.b32.xlu0 %v326, 106
      %v674 = vpop.permute.xlu0 %673
      %675 = vrot.lane.b32.xlu0 %v327, 106
      %v676 = vpop.permute.xlu0 %675
      %677 = vrot.lane.b32.xlu0 %v328, 106
      %v678 = vpop.permute.xlu0 %677
      %679 = vrot.lane.b32.xlu0 %v329, 106
      %v680 = vpop.permute.xlu0 %679
      %681 = vrot.lane.b32.xlu0 %v330, 106
      %v682 = vpop.permute.xlu0 %681
      %683 = vrot.lane.b32.xlu0 %v331, 106
      %v684 = vpop.permute.xlu0 %683
      %685 = vrot.lane.b32.xlu0 %v332, 106
      %v686 = vpop.permute.xlu0 %685
      %687 = vrot.lane.b32.xlu0 %v333, 106
      %v688 = vpop.permute.xlu0 %687
      %vm689 = vcmask 867328
      %v690 = vsel %vm689, %v668, %v670
      %v691 = vsel %vm689, %v670, %v672
      %v692 = vsel %vm689, %v672, %v674
      %v693 = vsel %vm689, %v674, %v676
      %v694 = vsel %vm689, %v676, %v678
      %v695 = vsel %vm689, %v678, %v680
      %v696 = vsel %vm689, %v680, %v682
      %v697 = vsel %vm689, %v682, %v684
      %v698 = vsel %vm689, %v684, %v686
      %v699 = vsel %vm689, %v686, %v688
      %v700 = vsel %vm689, %v688, %v668
      %v713 = vpack.c.bf16 0.0, 0.0
      %v714 = vpack.c.bf16 %v325, %v324
      %v715 = vpack.c.bf16 %v327, %v326
      %v716 = vpack.c.bf16 %v329, %v328
      %v717 = vpack.c.bf16 %v331, %v330
      %v718 = vpack.c.bf16 %v333, %v332
      %v719 = vpack.c.bf16 %v368, %v346
      %v720 = vpack.c.bf16 %v370, %v369
      %v721 = vpack.c.bf16 %v372, %v371
      %v722 = vpack.c.bf16 %v374, %v373
      %v723 = vpack.c.bf16 %v376, %v375
      %v724 = vpack.c.bf16 %v378, %v377
      %v725 = vpack.c.bf16 %v346, %v346
      %v726 = vpack.c.bf16 %v414, %v392
      %v727 = vpack.c.bf16 %v416, %v415
      %v728 = vpack.c.bf16 %v418, %v417
      %v729 = vpack.c.bf16 %v420, %v419
      %v730 = vpack.c.bf16 %v422, %v421
      %v731 = vpack.c.bf16 %v424, %v423
      %v732 = vpack.c.bf16 %v392, %v392
      %v733 = vpack.c.bf16 %v460, %v438
      %v734 = vpack.c.bf16 %v462, %v461
      %v735 = vpack.c.bf16 %v464, %v463
      %v736 = vpack.c.bf16 %v466, %v465
      %v737 = vpack.c.bf16 %v468, %v467
      %v738 = vpack.c.bf16 %v470, %v469
      %v739 = vpack.c.bf16 %v438, %v438
      %v740 = vpack.c.bf16 %v506, %v484
      %v741 = vpack.c.bf16 %v508, %v507
      %v742 = vpack.c.bf16 %v510, %v509
      %v743 = vpack.c.bf16 %v512, %v511
      %v744 = vpack.c.bf16 %v514, %v513
      %v745 = vpack.c.bf16 %v516, %v515
      %v746 = vpack.c.bf16 %v484, %v484
      %v747 = vpack.c.bf16 %v552, %v530
      %v748 = vpack.c.bf16 %v554, %v553
      %v749 = vpack.c.bf16 %v556, %v555
      %v750 = vpack.c.bf16 %v558, %v557
      %v751 = vpack.c.bf16 %v560, %v559
      %v752 = vpack.c.bf16 %v562, %v561
      %v753 = vpack.c.bf16 %v530, %v530
      %v754 = vpack.c.bf16 %v598, %v576
      %v755 = vpack.c.bf16 %v600, %v599
      %v756 = vpack.c.bf16 %v602, %v601
      %v757 = vpack.c.bf16 %v604, %v603
      %v758 = vpack.c.bf16 %v606, %v605
      %v759 = vpack.c.bf16 %v608, %v607
      %v760 = vpack.c.bf16 %v576, %v576
      %v761 = vpack.c.bf16 %v644, %v622
      %v762 = vpack.c.bf16 %v646, %v645
      %v763 = vpack.c.bf16 %v648, %v647
      %v764 = vpack.c.bf16 %v650, %v649
      %v765 = vpack.c.bf16 %v652, %v651
      %v766 = vpack.c.bf16 %v654, %v653
      %v767 = vpack.c.bf16 %v622, %v622
      %v768 = vpack.c.bf16 %v690, %v668
      %v769 = vpack.c.bf16 %v692, %v691
      %v770 = vpack.c.bf16 %v694, %v693
      %v771 = vpack.c.bf16 %v696, %v695
      %v772 = vpack.c.bf16 %v698, %v697
      %v773 = vpack.c.bf16 %v700, %v699
      %v774 = vpack.c.bf16 %v668, %v668
      %v775 = vld [vmem:[%s3] sm:$0xf]
      %s776 = scalar_lea.vmem %s3, 4
      %v777 = vld [vmem:[%s776] sm:$0xf]
      %v832 = vunpack.c.h.b16 %v713
      %v833 = vunpack.c.l.b16 %v714
      %v834 = vunpack.c.h.b16 %v714
      %v835 = vunpack.c.l.b16 %v715
      %v836 = vunpack.c.h.b16 %v715
      %v837 = vunpack.c.l.b16 %v716
      %v838 = vunpack.c.h.b16 %v716
      %v839 = vunpack.c.l.b16 %v717
      %v840 = vunpack.c.h.b16 %v717
      %v841 = vunpack.c.l.b16 %v718
      %v842 = vunpack.c.h.b16 %v718
      %v843 = vunpack.c.h.b16 %v719
      %v844 = vunpack.c.l.b16 %v720
      %v845 = vunpack.c.h.b16 %v720
      %v846 = vunpack.c.l.b16 %v721
      %v847 = vunpack.c.h.b16 %v721
      %v848 = vunpack.c.l.b16 %v722
      %v849 = vunpack.c.h.b16 %v722
      %v850 = vunpack.c.l.b16 %v723
      %v851 = vunpack.c.h.b16 %v723
      %v852 = vunpack.c.l.b16 %v724
      %v853 = vunpack.c.h.b16 %v724
      %v854 = vunpack.c.h.b16 %v726
      %v855 = vunpack.c.l.b16 %v727
      %v856 = vunpack.c.h.b16 %v727
      %v857 = vunpack.c.l.b16 %v728
      %v858 = vunpack.c.h.b16 %v728
      %v859 = vunpack.c.l.b16 %v729
      %v860 = vunpack.c.h.b16 %v729
      %v861 = vunpack.c.l.b16 %v730
      %v862 = vunpack.c.h.b16 %v730
      %v863 = vunpack.c.l.b16 %v731
      %v864 = vunpack.c.h.b16 %v731
      %v865 = vunpack.c.h.b16 %v733
      %v866 = vunpack.c.l.b16 %v734
      %v867 = vunpack.c.h.b16 %v734
      %v868 = vunpack.c.l.b16 %v735
      %v869 = vunpack.c.h.b16 %v735
      %v870 = vunpack.c.l.b16 %v736
      %v871 = vunpack.c.h.b16 %v736
      %v872 = vunpack.c.l.b16 %v737
      %v873 = vunpack.c.h.b16 %v737
      %v874 = vunpack.c.l.b16 %v738
      %v875 = vunpack.c.h.b16 %v738
      %v876 = vunpack.c.h.b16 %v740
      %v877 = vunpack.c.l.b16 %v741
      %v878 = vunpack.c.h.b16 %v741
      %v879 = vunpack.c.l.b16 %v742
      %v880 = vunpack.c.h.b16 %v742
      %v881 = vunpack.c.l.b16 %v743
      %v882 = vunpack.c.h.b16 %v743
      %v883 = vunpack.c.l.b16 %v744
      %v884 = vunpack.c.h.b16 %v744
      %v885 = vunpack.c.l.b16 %v745
      %v886 = vunpack.c.h.b16 %v745
      %v887 = vunpack.c.h.b16 %v747
      %v888 = vunpack.c.l.b16 %v748
      %v889 = vunpack.c.h.b16 %v748
      %v890 = vunpack.c.l.b16 %v749
      %v891 = vunpack.c.h.b16 %v749
      %v892 = vunpack.c.l.b16 %v750
      %v893 = vunpack.c.h.b16 %v750
      %v894 = vunpack.c.l.b16 %v751
      %v895 = vunpack.c.h.b16 %v751
      %v896 = vunpack.c.l.b16 %v752
      %v897 = vunpack.c.h.b16 %v752
      %v898 = vunpack.c.h.b16 %v754
      %v899 = vunpack.c.l.b16 %v755
      %v900 = vunpack.c.h.b16 %v755
      %v901 = vunpack.c.l.b16 %v756
      %v902 = vunpack.c.h.b16 %v756
      %v903 = vunpack.c.l.b16 %v757
      %v904 = vunpack.c.h.b16 %v757
      %v905 = vunpack.c.l.b16 %v758
      %v906 = vunpack.c.h.b16 %v758
      %v907 = vunpack.c.l.b16 %v759
      %v908 = vunpack.c.h.b16 %v759
      %v909 = vunpack.c.h.b16 %v761
      %v910 = vunpack.c.l.b16 %v762
      %v911 = vunpack.c.h.b16 %v762
      %v912 = vunpack.c.l.b16 %v763
      %v913 = vunpack.c.h.b16 %v763
      %v914 = vunpack.c.l.b16 %v764
      %v915 = vunpack.c.h.b16 %v764
      %v916 = vunpack.c.l.b16 %v765
      %v917 = vunpack.c.h.b16 %v765
      %v918 = vunpack.c.l.b16 %v766
      %v919 = vunpack.c.h.b16 %v766
      %v920 = vunpack.c.h.b16 %v768
      %v921 = vunpack.c.l.b16 %v769
      %v922 = vunpack.c.h.b16 %v769
      %v923 = vunpack.c.l.b16 %v770
      %v924 = vunpack.c.h.b16 %v770
      %v925 = vunpack.c.l.b16 %v771
      %v926 = vunpack.c.h.b16 %v771
      %v927 = vunpack.c.l.b16 %v772
      %v928 = vunpack.c.h.b16 %v772
      %v929 = vunpack.c.l.b16 %v773
      %v930 = vunpack.c.h.b16 %v773
      %v931 = vpack.c.b16 %v843, %v832
      %v932 = vpack.c.b16 %v844, %v833
      %v933 = vpack.c.b16 %v845, %v834
      %v934 = vpack.c.b16 %v846, %v835
      %v935 = vpack.c.b16 %v847, %v836
      %v936 = vpack.c.b16 %v848, %v837
      %v937 = vpack.c.b16 %v849, %v838
      %v938 = vpack.c.b16 %v850, %v839
      %v939 = vpack.c.b16 %v851, %v840
      %v940 = vpack.c.b16 %v852, %v841
      %v941 = vpack.c.b16 %v853, %v842
      %v942 = vpack.c.b16 %v865, %v854
      %v943 = vpack.c.b16 %v866, %v855
      %v944 = vpack.c.b16 %v867, %v856
      %v945 = vpack.c.b16 %v868, %v857
      %v946 = vpack.c.b16 %v869, %v858
      %v947 = vpack.c.b16 %v870, %v859
      %v948 = vpack.c.b16 %v871, %v860
      %v949 = vpack.c.b16 %v872, %v861
      %v950 = vpack.c.b16 %v873, %v862
      %v951 = vpack.c.b16 %v874, %v863
      %v952 = vpack.c.b16 %v875, %v864
      %v953 = vpack.c.b16 %v887, %v876
      %v954 = vpack.c.b16 %v888, %v877
      %v955 = vpack.c.b16 %v889, %v878
      %v956 = vpack.c.b16 %v890, %v879
      %v957 = vpack.c.b16 %v891, %v880
      %v958 = vpack.c.b16 %v892, %v881
      %v959 = vpack.c.b16 %v893, %v882
      %v960 = vpack.c.b16 %v894, %v883
      %v961 = vpack.c.b16 %v895, %v884
      %v962 = vpack.c.b16 %v896, %v885
      %v963 = vpack.c.b16 %v897, %v886
      %v964 = vpack.c.b16 %v909, %v898
      %v965 = vpack.c.b16 %v910, %v899
      %v966 = vpack.c.b16 %v911, %v900
      %v967 = vpack.c.b16 %v912, %v901
      %v968 = vpack.c.b16 %v913, %v902
      %v969 = vpack.c.b16 %v914, %v903
      %v970 = vpack.c.b16 %v915, %v904
      %v971 = vpack.c.b16 %v916, %v905
      %v972 = vpack.c.b16 %v917, %v906
      %v973 = vpack.c.b16 %v918, %v907
      %v974 = vpack.c.b16 %v919, %v908
      %v975 = vpack.c.b16 %v920, %v920
      %v976 = vpack.c.b16 %v921, %v921
      %v977 = vpack.c.b16 %v922, %v922
      %v978 = vpack.c.b16 %v923, %v923
      %v979 = vpack.c.b16 %v924, %v924
      %v980 = vpack.c.b16 %v925, %v925
      %v981 = vpack.c.b16 %v926, %v926
      %v982 = vpack.c.b16 %v927, %v927
      %v983 = vpack.c.b16 %v928, %v928
      %v984 = vpack.c.b16 %v929, %v929
      %v985 = vpack.c.b16 %v930, %v930
      %986 = vrot.lane.b32.xlu0 %v931, 11
      %v987 = vpop.permute.xlu0 %986
      %988 = vrot.lane.b32.xlu0 %v932, 11
      %v989 = vpop.permute.xlu0 %988
      %990 = vrot.lane.b32.xlu0 %v933, 11
      %v991 = vpop.permute.xlu0 %990
      %992 = vrot.lane.b32.xlu0 %v934, 11
      %v993 = vpop.permute.xlu0 %992
      %994 = vrot.lane.b32.xlu0 %v935, 11
      %v995 = vpop.permute.xlu0 %994
      %996 = vrot.lane.b32.xlu0 %v936, 11
      %v997 = vpop.permute.xlu0 %996
      %998 = vrot.lane.b32.xlu0 %v937, 11
      %v999 = vpop.permute.xlu0 %998
      %1000 = vrot.lane.b32.xlu0 %v938, 11
      %v1001 = vpop.permute.xlu0 %1000
      %1002 = vrot.lane.b32.xlu0 %v939, 11
      %v1003 = vpop.permute.xlu0 %1002
      %1004 = vrot.lane.b32.xlu0 %v940, 11
      %v1005 = vpop.permute.xlu0 %1004
      %1006 = vrot.lane.b32.xlu0 %v941, 11
      %v1007 = vpop.permute.xlu0 %1006
      %1008 = vrot.lane.b32.xlu0 %v942, 11
      %v1009 = vpop.permute.xlu0 %1008
      %1010 = vrot.lane.b32.xlu0 %v943, 11
      %v1011 = vpop.permute.xlu0 %1010
      %1012 = vrot.lane.b32.xlu0 %v944, 11
      %v1013 = vpop.permute.xlu0 %1012
      %1014 = vrot.lane.b32.xlu0 %v945, 11
      %v1015 = vpop.permute.xlu0 %1014
      %1016 = vrot.lane.b32.xlu0 %v946, 11
      %v1017 = vpop.permute.xlu0 %1016
      %1018 = vrot.lane.b32.xlu0 %v947, 11
      %v1019 = vpop.permute.xlu0 %1018
      %1020 = vrot.lane.b32.xlu0 %v948, 11
      %v1021 = vpop.permute.xlu0 %1020
      %1022 = vrot.lane.b32.xlu0 %v949, 11
      %v1023 = vpop.permute.xlu0 %1022
      %1024 = vrot.lane.b32.xlu0 %v950, 11
      %v1025 = vpop.permute.xlu0 %1024
      %1026 = vrot.lane.b32.xlu0 %v951, 11
      %v1027 = vpop.permute.xlu0 %1026
      %1028 = vrot.lane.b32.xlu0 %v952, 11
      %v1029 = vpop.permute.xlu0 %1028
      %1030 = vrot.lane.b32.xlu0 %v953, 11
      %v1031 = vpop.permute.xlu0 %1030
      %1032 = vrot.lane.b32.xlu0 %v954, 11
      %v1033 = vpop.permute.xlu0 %1032
      %1034 = vrot.lane.b32.xlu0 %v955, 11
      %v1035 = vpop.permute.xlu0 %1034
      %1036 = vrot.lane.b32.xlu0 %v956, 11
      %v1037 = vpop.permute.xlu0 %1036
      %1038 = vrot.lane.b32.xlu0 %v957, 11
      %v1039 = vpop.permute.xlu0 %1038
      %1040 = vrot.lane.b32.xlu0 %v958, 11
      %v1041 = vpop.permute.xlu0 %1040
      %1042 = vrot.lane.b32.xlu0 %v959, 11
      %v1043 = vpop.permute.xlu0 %1042
      %1044 = vrot.lane.b32.xlu0 %v960, 11
      %v1045 = vpop.permute.xlu0 %1044
      %1046 = vrot.lane.b32.xlu0 %v961, 11
      %v1047 = vpop.permute.xlu0 %1046
      %1048 = vrot.lane.b32.xlu0 %v962, 11
      %v1049 = vpop.permute.xlu0 %1048
      %1050 = vrot.lane.b32.xlu0 %v963, 11
      %v1051 = vpop.permute.xlu0 %1050
      %1052 = vrot.lane.b32.xlu0 %v964, 11
      %v1053 = vpop.permute.xlu0 %1052
      %1054 = vrot.lane.b32.xlu0 %v965, 11
      %v1055 = vpop.permute.xlu0 %1054
      %1056 = vrot.lane.b32.xlu0 %v966, 11
      %v1057 = vpop.permute.xlu0 %1056
      %1058 = vrot.lane.b32.xlu0 %v967, 11
      %v1059 = vpop.permute.xlu0 %1058
      %1060 = vrot.lane.b32.xlu0 %v968, 11
      %v1061 = vpop.permute.xlu0 %1060
      %1062 = vrot.lane.b32.xlu0 %v969, 11
      %v1063 = vpop.permute.xlu0 %1062
      %1064 = vrot.lane.b32.xlu0 %v970, 11
      %v1065 = vpop.permute.xlu0 %1064
      %1066 = vrot.lane.b32.xlu0 %v971, 11
      %v1067 = vpop.permute.xlu0 %1066
      %1068 = vrot.lane.b32.xlu0 %v972, 11
      %v1069 = vpop.permute.xlu0 %1068
      %1070 = vrot.lane.b32.xlu0 %v973, 11
      %v1071 = vpop.permute.xlu0 %1070
      %1072 = vrot.lane.b32.xlu0 %v974, 11
      %v1073 = vpop.permute.xlu0 %1072
      %1074 = vrot.lane.b32.xlu0 %v975, 11
      %v1075 = vpop.permute.xlu0 %1074
      %1076 = vrot.lane.b32.xlu0 %v976, 11
      %v1077 = vpop.permute.xlu0 %1076
      %1078 = vrot.lane.b32.xlu0 %v977, 11
      %v1079 = vpop.permute.xlu0 %1078
      %1080 = vrot.lane.b32.xlu0 %v978, 11
      %v1081 = vpop.permute.xlu0 %1080
      %1082 = vrot.lane.b32.xlu0 %v979, 11
      %v1083 = vpop.permute.xlu0 %1082
      %1084 = vrot.lane.b32.xlu0 %v980, 11
      %v1085 = vpop.permute.xlu0 %1084
      %1086 = vrot.lane.b32.xlu0 %v981, 11
      %v1087 = vpop.permute.xlu0 %1086
      %1088 = vrot.lane.b32.xlu0 %v982, 11
      %v1089 = vpop.permute.xlu0 %1088
      %1090 = vrot.lane.b32.xlu0 %v983, 11
      %v1091 = vpop.permute.xlu0 %1090
      %1092 = vrot.lane.b32.xlu0 %v984, 11
      %v1093 = vpop.permute.xlu0 %1092
      %1094 = vrot.lane.b32.xlu0 %v985, 11
      %v1095 = vpop.permute.xlu0 %1094
      %vm1096 = vcmask 89088
      %v1097 = vsel %vm1096, %v987, %v989
      %v1098 = vsel %vm1096, %v989, %v991
      %v1099 = vsel %vm1096, %v991, %v993
      %v1100 = vsel %vm1096, %v993, %v995
      %v1101 = vsel %vm1096, %v995, %v997
      %v1102 = vsel %vm1096, %v997, %v999
      %v1103 = vsel %vm1096, %v999, %v1001
      %v1104 = vsel %vm1096, %v1001, %v1003
      %v1105 = vsel %vm1096, %v1003, %v1005
      %v1106 = vsel %vm1096, %v1005, %v1007
      %v1107 = vsel %vm1096, %v1009, %v1011
      %v1108 = vsel %vm1096, %v1011, %v1013
      %v1109 = vsel %vm1096, %v1013, %v1015
      %v1110 = vsel %vm1096, %v1015, %v1017
      %v1111 = vsel %vm1096, %v1017, %v1019
      %v1112 = vsel %vm1096, %v1019, %v1021
      %v1113 = vsel %vm1096, %v1021, %v1023
      %v1114 = vsel %vm1096, %v1023, %v1025
      %v1115 = vsel %vm1096, %v1025, %v1027
      %v1116 = vsel %vm1096, %v1027, %v1029
      %v1117 = vsel %vm1096, %v1031, %v1033
      %v1118 = vsel %vm1096, %v1033, %v1035
      %v1119 = vsel %vm1096, %v1035, %v1037
      %v1120 = vsel %vm1096, %v1037, %v1039
      %v1121 = vsel %vm1096, %v1039, %v1041
      %v1122 = vsel %vm1096, %v1041, %v1043
      %v1123 = vsel %vm1096, %v1043, %v1045
      %v1124 = vsel %vm1096, %v1045, %v1047
      %v1125 = vsel %vm1096, %v1047, %v1049
      %v1126 = vsel %vm1096, %v1049, %v1051
      %v1127 = vsel %vm1096, %v1053, %v1055
      %v1128 = vsel %vm1096, %v1055, %v1057
      %v1129 = vsel %vm1096, %v1057, %v1059
      %v1130 = vsel %vm1096, %v1059, %v1061
      %v1131 = vsel %vm1096, %v1061, %v1063
      %v1132 = vsel %vm1096, %v1063, %v1065
      %v1133 = vsel %vm1096, %v1065, %v1067
      %v1134 = vsel %vm1096, %v1067, %v1069
      %v1135 = vsel %vm1096, %v1069, %v1071
      %v1136 = vsel %vm1096, %v1071, %v1073
      %v1137 = vsel %vm1096, %v1075, %v1077
      %v1138 = vsel %vm1096, %v1077, %v1079
      %v1139 = vsel %vm1096, %v1079, %v1081
      %v1140 = vsel %vm1096, %v1081, %v1083
      %v1141 = vsel %vm1096, %v1083, %v1085
      %v1142 = vsel %vm1096, %v1085, %v1087
      %v1143 = vsel %vm1096, %v1087, %v1089
      %v1144 = vsel %vm1096, %v1089, %v1091
      %v1145 = vsel %vm1096, %v1091, %v1093
      %v1146 = vsel %vm1096, %v1093, %v1095
      %vm1187 = vcmask 588800
      %v1189 = vsel %vm1187, %v777, 0
      %vm1191 = vcmask 1043456
      %v1193 = vsel %vm1191, %v1137, 0
      %v1196 = vsel %vm1191, %v1138, 0
      %v1199 = vsel %vm1191, %v1139, 0
      %v1202 = vsel %vm1191, %v1140, 0
      %v1205 = vsel %vm1191, %v1141, 0
      %v1208 = vsel %vm1191, %v1142, 0
      %v1211 = vsel %vm1191, %v1143, 0
      %v1214 = vsel %vm1191, %v1144, 0
      %v1217 = vsel %vm1191, %v1145, 0
      %v1220 = vsel %vm1191, %v1146, 0
      %1222 = vmatpush.bf16.msra.mxu0 0
      %1223 = vmatpush.bf16.msra.mxu0 0
      %1224 = vmatpush.bf16.msra.mxu0 0
      %1225 = vmatpush.bf16.msra.mxu0 %v1193
      %1226 = vmatpush.bf16.msra.mxu0 %v1127
      %1227 = vmatpush.bf16.msra.mxu0 %v1117
      %1228 = vmatpush.bf16.msra.mxu0 %v1107
      %1229 = vmatpush.bf16.msra.mxu0 %v1097
      %1230 = vmatmul.bf16.gmra.mxu0 %v1189
      %v1231 = vpop.f32.mrf.mxu0
      %v1232 = vadd.f32 0.0, %v1231
      %v1233 = vpop.f32.mrf.mxu0
      %1234 = vdwg.mxu0
      %1235 = vmatpush.bf16.msra.mxu0 0
      %1236 = vmatpush.bf16.msra.mxu0 0
      %1237 = vmatpush.bf16.msra.mxu0 0
      %1238 = vmatpush.bf16.msra.mxu0 %v1196
      %1239 = vmatpush.bf16.msra.mxu0 %v1128
      %1240 = vmatpush.bf16.msra.mxu0 %v1118
      %1241 = vmatpush.bf16.msra.mxu0 %v1108
      %1242 = vmatpush.bf16.msra.mxu0 %v1098
      %1243 = vmatmul.bf16.gmra.mxu0 %v1189
      %v1244 = vpop.f32.mrf.mxu0
      %v1245 = vadd.f32 0.0, %v1244
      %v1246 = vpop.f32.mrf.mxu0
      %1247 = vdwg.mxu0
      %1248 = vmatpush.bf16.msra.mxu0 0
      %1249 = vmatpush.bf16.msra.mxu0 0
      %1250 = vmatpush.bf16.msra.mxu0 0
      %1251 = vmatpush.bf16.msra.mxu0 %v1199
      %1252 = vmatpush.bf16.msra.mxu0 %v1129
      %1253 = vmatpush.bf16.msra.mxu0 %v1119
      %1254 = vmatpush.bf16.msra.mxu0 %v1109
      %1255 = vmatpush.bf16.msra.mxu0 %v1099
      %1256 = vmatmul.bf16.gmra.mxu0 %v1189
      %v1257 = vpop.f32.mrf.mxu0
      %v1258 = vadd.f32 0.0, %v1257
      %v1259 = vpop.f32.mrf.mxu0
      %1260 = vdwg.mxu0
      %1261 = vmatpush.bf16.msra.mxu0 0
      %1262 = vmatpush.bf16.msra.mxu0 0
      %1263 = vmatpush.bf16.msra.mxu0 0
      %1264 = vmatpush.bf16.msra.mxu0 %v1202
      %1265 = vmatpush.bf16.msra.mxu0 %v1130
      %1266 = vmatpush.bf16.msra.mxu0 %v1120
      %1267 = vmatpush.bf16.msra.mxu0 %v1110
      %1268 = vmatpush.bf16.msra.mxu0 %v1100
      %1269 = vmatmul.bf16.gmra.mxu0 %v1189
      %v1270 = vpop.f32.mrf.mxu0
      %v1271 = vadd.f32 0.0, %v1270
      %v1272 = vpop.f32.mrf.mxu0
      %1273 = vdwg.mxu0
      %1274 = vmatpush.bf16.msra.mxu0 0
      %1275 = vmatpush.bf16.msra.mxu0 0
      %1276 = vmatpush.bf16.msra.mxu0 0
      %1277 = vmatpush.bf16.msra.mxu0 %v1205
      %1278 = vmatpush.bf16.msra.mxu0 %v1131
      %1279 = vmatpush.bf16.msra.mxu0 %v1121
      %1280 = vmatpush.bf16.msra.mxu0 %v1111
      %1281 = vmatpush.bf16.msra.mxu0 %v1101
      %1282 = vmatmul.bf16.gmra.mxu0 %v1189
      %v1283 = vpop.f32.mrf.mxu0
      %v1284 = vadd.f32 0.0, %v1283
      %v1285 = vpop.f32.mrf.mxu0
      %1286 = vdwg.mxu0
      %1287 = vmatpush.bf16.msra.mxu0 0
      %1288 = vmatpush.bf16.msra.mxu0 0
      %1289 = vmatpush.bf16.msra.mxu0 0
      %1290 = vmatpush.bf16.msra.mxu0 %v1208
      %1291 = vmatpush.bf16.msra.mxu0 %v1132
      %1292 = vmatpush.bf16.msra.mxu0 %v1122
      %1293 = vmatpush.bf16.msra.mxu0 %v1112
      %1294 = vmatpush.bf16.msra.mxu0 %v1102
      %1295 = vmatmul.bf16.gmra.mxu0 %v1189
      %v1296 = vpop.f32.mrf.mxu0
      %v1297 = vadd.f32 0.0, %v1296
      %v1298 = vpop.f32.mrf.mxu0
      %1299 = vdwg.mxu0
      %1300 = vmatpush.bf16.msra.mxu0 0
      %1301 = vmatpush.bf16.msra.mxu0 0
      %1302 = vmatpush.bf16.msra.mxu0 0
      %1303 = vmatpush.bf16.msra.mxu0 %v1211
      %1304 = vmatpush.bf16.msra.mxu0 %v1133
      %1305 = vmatpush.bf16.msra.mxu0 %v1123
      %1306 = vmatpush.bf16.msra.mxu0 %v1113
      %1307 = vmatpush.bf16.msra.mxu0 %v1103
      %1308 = vmatmul.bf16.gmra.mxu0 %v1189
      %v1309 = vpop.f32.mrf.mxu0
      %v1310 = vadd.f32 0.0, %v1309
      %v1311 = vpop.f32.mrf.mxu0
      %1312 = vdwg.mxu0
      %1313 = vmatpush.bf16.msra.mxu0 0
      %1314 = vmatpush.bf16.msra.mxu0 0
      %1315 = vmatpush.bf16.msra.mxu0 0
      %1316 = vmatpush.bf16.msra.mxu0 %v1214
      %1317 = vmatpush.bf16.msra.mxu0 %v1134
      %1318 = vmatpush.bf16.msra.mxu0 %v1124
      %1319 = vmatpush.bf16.msra.mxu0 %v1114
      %1320 = vmatpush.bf16.msra.mxu0 %v1104
      %1321 = vmatmul.bf16.gmra.mxu0 %v1189
      %v1322 = vpop.f32.mrf.mxu0
      %v1323 = vadd.f32 0.0, %v1322
      %v1324 = vpop.f32.mrf.mxu0
      %1325 = vdwg.mxu0
      %1326 = vmatpush.bf16.msra.mxu0 0
      %1327 = vmatpush.bf16.msra.mxu0 0
      %1328 = vmatpush.bf16.msra.mxu0 0
      %1329 = vmatpush.bf16.msra.mxu0 %v1217
      %1330 = vmatpush.bf16.msra.mxu0 %v1135
      %1331 = vmatpush.bf16.msra.mxu0 %v1125
      %1332 = vmatpush.bf16.msra.mxu0 %v1115
      %1333 = vmatpush.bf16.msra.mxu0 %v1105
      %1334 = vmatmul.bf16.gmra.mxu0 %v1189
      %v1335 = vpop.f32.mrf.mxu0
      %v1336 = vadd.f32 0.0, %v1335
      %v1337 = vpop.f32.mrf.mxu0
      %1338 = vdwg.mxu0
      %1339 = vmatpush.bf16.msra.mxu0 0
      %1340 = vmatpush.bf16.msra.mxu0 0
      %1341 = vmatpush.bf16.msra.mxu0 0
      %1342 = vmatpush.bf16.msra.mxu0 %v1220
      %1343 = vmatpush.bf16.msra.mxu0 %v1136
      %1344 = vmatpush.bf16.msra.mxu0 %v1126
      %1345 = vmatpush.bf16.msra.mxu0 %v1116
      %1346 = vmatpush.bf16.msra.mxu0 %v1106
      %1347 = vmatmul.bf16.gmra.mxu0 %v1189
      %v1348 = vpop.f32.mrf.mxu0
      %v1349 = vadd.f32 0.0, %v1348
      %v1350 = vpop.f32.mrf.mxu0
      %1351 = vdwg.mxu0
      %v1352 = vunpack.c.l.b16 %v713
      %v1353 = vunpack.c.l.b16 %v719
      %v1354 = vunpack.c.l.b16 %v726
      %v1355 = vunpack.c.l.b16 %v733
      %v1356 = vunpack.c.l.b16 %v740
      %v1357 = vunpack.c.l.b16 %v747
      %v1358 = vunpack.c.l.b16 %v754
      %v1359 = vunpack.c.l.b16 %v761
      %v1360 = vunpack.c.l.b16 %v768
      %v1361 = vpack.c.b16 %v1353, %v1352
      %v1362 = vpack.c.b16 %v1355, %v1354
      %v1363 = vpack.c.b16 %v1357, %v1356
      %v1364 = vpack.c.b16 %v1359, %v1358
      %v1365 = vpack.c.b16 %v1360, %v1360
      %1366 = vrot.lane.b32.xlu0 %v1361, 11
      %v1367 = vpop.permute.xlu0 %1366
      %1368 = vrot.lane.b32.xlu0 %v1362, 11
      %v1369 = vpop.permute.xlu0 %1368
      %1370 = vrot.lane.b32.xlu0 %v1363, 11
      %v1371 = vpop.permute.xlu0 %1370
      %1372 = vrot.lane.b32.xlu0 %v1364, 11
      %v1373 = vpop.permute.xlu0 %1372
      %1374 = vrot.lane.b32.xlu0 %v1365, 11
      %v1375 = vpop.permute.xlu0 %1374
      %v1376 = vsel %vm1096, %v1367, %v987
      %v1377 = vsel %vm1096, %v1369, %v1009
      %v1378 = vsel %vm1096, %v1371, %v1031
      %v1379 = vsel %vm1096, %v1373, %v1053
      %v1380 = vsel %vm1096, %v1375, %v1075
      %v1386 = vsel %vm1187, %v775, 0
      %v1389 = vsel %vm1191, %v1380, 0
      %1391 = vmatpush.bf16.msra.mxu0 0
      %1392 = vmatpush.bf16.msra.mxu0 0
      %1393 = vmatpush.bf16.msra.mxu0 0
      %1394 = vmatpush.bf16.msra.mxu0 %v1389
      %1395 = vmatpush.bf16.msra.mxu0 %v1379
      %1396 = vmatpush.bf16.msra.mxu0 %v1378
      %1397 = vmatpush.bf16.msra.mxu0 %v1377
      %1398 = vmatpush.bf16.msra.mxu0 %v1376
      %1399 = vmatmul.bf16.gmra.mxu0 %v1386
      %v1400 = vpop.f32.mrf.mxu0
      %v1401 = vadd.f32 %v1232, %v1400
      %v1402 = vpop.f32.mrf.mxu0
      %1403 = vdwg.mxu0
      %1404 = vmatpush.bf16.msra.mxu0 0
      %1405 = vmatpush.bf16.msra.mxu0 0
      %1406 = vmatpush.bf16.msra.mxu0 0
      %1407 = vmatpush.bf16.msra.mxu0 %v1193
      %1408 = vmatpush.bf16.msra.mxu0 %v1127
      %1409 = vmatpush.bf16.msra.mxu0 %v1117
      %1410 = vmatpush.bf16.msra.mxu0 %v1107
      %1411 = vmatpush.bf16.msra.mxu0 %v1097
      %1412 = vmatmul.bf16.gmra.mxu0 %v1386
      %v1413 = vpop.f32.mrf.mxu0
      %v1414 = vadd.f32 %v1245, %v1413
      %v1415 = vpop.f32.mrf.mxu0
      %1416 = vdwg.mxu0
      %1417 = vmatpush.bf16.msra.mxu0 0
      %1418 = vmatpush.bf16.msra.mxu0 0
      %1419 = vmatpush.bf16.msra.mxu0 0
      %1420 = vmatpush.bf16.msra.mxu0 %v1196
      %1421 = vmatpush.bf16.msra.mxu0 %v1128
      %1422 = vmatpush.bf16.msra.mxu0 %v1118
      %1423 = vmatpush.bf16.msra.mxu0 %v1108
      %1424 = vmatpush.bf16.msra.mxu0 %v1098
      %1425 = vmatmul.bf16.gmra.mxu0 %v1386
      %v1426 = vpop.f32.mrf.mxu0
      %v1427 = vadd.f32 %v1258, %v1426
      %v1428 = vpop.f32.mrf.mxu0
      %1429 = vdwg.mxu0
      %1430 = vmatpush.bf16.msra.mxu0 0
      %1431 = vmatpush.bf16.msra.mxu0 0
      %1432 = vmatpush.bf16.msra.mxu0 0
      %1433 = vmatpush.bf16.msra.mxu0 %v1199
      %1434 = vmatpush.bf16.msra.mxu0 %v1129
      %1435 = vmatpush.bf16.msra.mxu0 %v1119
      %1436 = vmatpush.bf16.msra.mxu0 %v1109
      %1437 = vmatpush.bf16.msra.mxu0 %v1099
      %1438 = vmatmul.bf16.gmra.mxu0 %v1386
      %v1439 = vpop.f32.mrf.mxu0
      %v1440 = vadd.f32 %v1271, %v1439
      %v1441 = vpop.f32.mrf.mxu0
      %1442 = vdwg.mxu0
      %1443 = vmatpush.bf16.msra.mxu0 0
      %1444 = vmatpush.bf16.msra.mxu0 0
      %1445 = vmatpush.bf16.msra.mxu0 0
      %1446 = vmatpush.bf16.msra.mxu0 %v1202
      %1447 = vmatpush.bf16.msra.mxu0 %v1130
      %1448 = vmatpush.bf16.msra.mxu0 %v1120
      %1449 = vmatpush.bf16.msra.mxu0 %v1110
      %1450 = vmatpush.bf16.msra.mxu0 %v1100
      %1451 = vmatmul.bf16.gmra.mxu0 %v1386
      %v1452 = vpop.f32.mrf.mxu0
      %v1453 = vadd.f32 %v1284, %v1452
      %v1454 = vpop.f32.mrf.mxu0
      %1455 = vdwg.mxu0
      %1456 = vmatpush.bf16.msra.mxu0 0
      %1457 = vmatpush.bf16.msra.mxu0 0
      %1458 = vmatpush.bf16.msra.mxu0 0
      %1459 = vmatpush.bf16.msra.mxu0 %v1205
      %1460 = vmatpush.bf16.msra.mxu0 %v1131
      %1461 = vmatpush.bf16.msra.mxu0 %v1121
      %1462 = vmatpush.bf16.msra.mxu0 %v1111
      %1463 = vmatpush.bf16.msra.mxu0 %v1101
      %1464 = vmatmul.bf16.gmra.mxu0 %v1386
      %v1465 = vpop.f32.mrf.mxu0
      %v1466 = vadd.f32 %v1297, %v1465
      %v1467 = vpop.f32.mrf.mxu0
      %1468 = vdwg.mxu0
      %1469 = vmatpush.bf16.msra.mxu0 0
      %1470 = vmatpush.bf16.msra.mxu0 0
      %1471 = vmatpush.bf16.msra.mxu0 0
      %1472 = vmatpush.bf16.msra.mxu0 %v1208
      %1473 = vmatpush.bf16.msra.mxu0 %v1132
      %1474 = vmatpush.bf16.msra.mxu0 %v1122
      %1475 = vmatpush.bf16.msra.mxu0 %v1112
      %1476 = vmatpush.bf16.msra.mxu0 %v1102
      %1477 = vmatmul.bf16.gmra.mxu0 %v1386
      %v1478 = vpop.f32.mrf.mxu0
      %v1479 = vadd.f32 %v1310, %v1478
      %v1480 = vpop.f32.mrf.mxu0
      %1481 = vdwg.mxu0
      %1482 = vmatpush.bf16.msra.mxu0 0
      %1483 = vmatpush.bf16.msra.mxu0 0
      %1484 = vmatpush.bf16.msra.mxu0 0
      %1485 = vmatpush.bf16.msra.mxu0 %v1211
      %1486 = vmatpush.bf16.msra.mxu0 %v1133
      %1487 = vmatpush.bf16.msra.mxu0 %v1123
      %1488 = vmatpush.bf16.msra.mxu0 %v1113
      %1489 = vmatpush.bf16.msra.mxu0 %v1103
      %1490 = vmatmul.bf16.gmra.mxu0 %v1386
      %v1491 = vpop.f32.mrf.mxu0
      %v1492 = vadd.f32 %v1323, %v1491
      %v1493 = vpop.f32.mrf.mxu0
      %1494 = vdwg.mxu0
      %1495 = vmatpush.bf16.msra.mxu0 0
      %1496 = vmatpush.bf16.msra.mxu0 0
      %1497 = vmatpush.bf16.msra.mxu0 0
      %1498 = vmatpush.bf16.msra.mxu0 %v1214
      %1499 = vmatpush.bf16.msra.mxu0 %v1134
      %1500 = vmatpush.bf16.msra.mxu0 %v1124
      %1501 = vmatpush.bf16.msra.mxu0 %v1114
      %1502 = vmatpush.bf16.msra.mxu0 %v1104
      %1503 = vmatmul.bf16.gmra.mxu0 %v1386
      %v1504 = vpop.f32.mrf.mxu0
      %v1505 = vadd.f32 %v1336, %v1504
      %v1506 = vpop.f32.mrf.mxu0
      %1507 = vdwg.mxu0
      %1508 = vmatpush.bf16.msra.mxu0 0
      %1509 = vmatpush.bf16.msra.mxu0 0
      %1510 = vmatpush.bf16.msra.mxu0 0
      %1511 = vmatpush.bf16.msra.mxu0 %v1217
      %1512 = vmatpush.bf16.msra.mxu0 %v1135
      %1513 = vmatpush.bf16.msra.mxu0 %v1125
      %1514 = vmatpush.bf16.msra.mxu0 %v1115
      %1515 = vmatpush.bf16.msra.mxu0 %v1105
      %1516 = vmatmul.bf16.gmra.mxu0 %v1386
      %v1517 = vpop.f32.mrf.mxu0
      %v1518 = vadd.f32 %v1349, %v1517
      %v1519 = vpop.f32.mrf.mxu0
      %1520 = vdwg.mxu0
      %s1521 = scalar_lea.vmem %s3, 8
      %v1522 = vld [vmem:[%s1521] sm:$0xf]
      %v1531 = vunpack.c.l.b16 %v725
      %v1532 = vunpack.c.l.b16 %v732
      %v1533 = vunpack.c.l.b16 %v739
      %v1534 = vunpack.c.l.b16 %v746
      %v1535 = vunpack.c.l.b16 %v753
      %v1536 = vunpack.c.l.b16 %v760
      %v1537 = vunpack.c.l.b16 %v767
      %v1538 = vunpack.c.l.b16 %v774
      %v1539 = vpack.c.b16 %v1531, %v1352
      %v1540 = vpack.c.b16 %v1533, %v1532
      %v1541 = vpack.c.b16 %v1535, %v1534
      %v1542 = vpack.c.b16 %v1537, %v1536
      %v1543 = vpack.c.b16 %v1538, %v1538
      %1544 = vrot.lane.b32.xlu0 %v1539, 11
      %v1545 = vpop.permute.xlu0 %1544
      %1546 = vrot.lane.b32.xlu0 %v1540, 11
      %v1547 = vpop.permute.xlu0 %1546
      %1548 = vrot.lane.b32.xlu0 %v1541, 11
      %v1549 = vpop.permute.xlu0 %1548
      %1550 = vrot.lane.b32.xlu0 %v1542, 11
      %v1551 = vpop.permute.xlu0 %1550
      %1552 = vrot.lane.b32.xlu0 %v1543, 11
      %v1553 = vpop.permute.xlu0 %1552
      %v1554 = vsel %vm1096, %v1007, %v1545
      %v1555 = vsel %vm1096, %v1029, %v1547
      %v1556 = vsel %vm1096, %v1051, %v1549
      %v1557 = vsel %vm1096, %v1073, %v1551
      %v1558 = vsel %vm1096, %v1095, %v1553
      %v1564 = vsel %vm1187, %v1522, 0
      %v1567 = vsel %vm1191, %v1558, 0
      %1569 = vmatpush.bf16.msra.mxu0 0
      %1570 = vmatpush.bf16.msra.mxu0 0
      %1571 = vmatpush.bf16.msra.mxu0 0
      %1572 = vmatpush.bf16.msra.mxu0 %v1196
      %1573 = vmatpush.bf16.msra.mxu0 %v1128
      %1574 = vmatpush.bf16.msra.mxu0 %v1118
      %1575 = vmatpush.bf16.msra.mxu0 %v1108
      %1576 = vmatpush.bf16.msra.mxu0 %v1098
      %1577 = vmatmul.bf16.gmra.mxu0 %v1564
      %v1578 = vpop.f32.mrf.mxu0
      %v1579 = vadd.f32 0.0, %v1578
      %v1580 = vpop.f32.mrf.mxu0
      %1581 = vdwg.mxu0
      %1582 = vmatpush.bf16.msra.mxu0 0
      %1583 = vmatpush.bf16.msra.mxu0 0
      %1584 = vmatpush.bf16.msra.mxu0 0
      %1585 = vmatpush.bf16.msra.mxu0 %v1199
      %1586 = vmatpush.bf16.msra.mxu0 %v1129
      %1587 = vmatpush.bf16.msra.mxu0 %v1119
      %1588 = vmatpush.bf16.msra.mxu0 %v1109
      %1589 = vmatpush.bf16.msra.mxu0 %v1099
      %1590 = vmatmul.bf16.gmra.mxu0 %v1564
      %v1591 = vpop.f32.mrf.mxu0
      %v1592 = vadd.f32 0.0, %v1591
      %v1593 = vpop.f32.mrf.mxu0
      %1594 = vdwg.mxu0
      %1595 = vmatpush.bf16.msra.mxu0 0
      %1596 = vmatpush.bf16.msra.mxu0 0
      %1597 = vmatpush.bf16.msra.mxu0 0
      %1598 = vmatpush.bf16.msra.mxu0 %v1202
      %1599 = vmatpush.bf16.msra.mxu0 %v1130
      %1600 = vmatpush.bf16.msra.mxu0 %v1120
      %1601 = vmatpush.bf16.msra.mxu0 %v1110
      %1602 = vmatpush.bf16.msra.mxu0 %v1100
      %1603 = vmatmul.bf16.gmra.mxu0 %v1564
      %v1604 = vpop.f32.mrf.mxu0
      %v1605 = vadd.f32 0.0, %v1604
      %v1606 = vpop.f32.mrf.mxu0
      %1607 = vdwg.mxu0
      %1608 = vmatpush.bf16.msra.mxu0 0
      %1609 = vmatpush.bf16.msra.mxu0 0
      %1610 = vmatpush.bf16.msra.mxu0 0
      %1611 = vmatpush.bf16.msra.mxu0 %v1205
      %1612 = vmatpush.bf16.msra.mxu0 %v1131
      %1613 = vmatpush.bf16.msra.mxu0 %v1121
      %1614 = vmatpush.bf16.msra.mxu0 %v1111
      %1615 = vmatpush.bf16.msra.mxu0 %v1101
      %1616 = vmatmul.bf16.gmra.mxu0 %v1564
      %v1617 = vpop.f32.mrf.mxu0
      %v1618 = vadd.f32 0.0, %v1617
      %v1619 = vpop.f32.mrf.mxu0
      %1620 = vdwg.mxu0
      %1621 = vmatpush.bf16.msra.mxu0 0
      %1622 = vmatpush.bf16.msra.mxu0 0
      %1623 = vmatpush.bf16.msra.mxu0 0
      %1624 = vmatpush.bf16.msra.mxu0 %v1208
      %1625 = vmatpush.bf16.msra.mxu0 %v1132
      %1626 = vmatpush.bf16.msra.mxu0 %v1122
      %1627 = vmatpush.bf16.msra.mxu0 %v1112
      %1628 = vmatpush.bf16.msra.mxu0 %v1102
      %1629 = vmatmul.bf16.gmra.mxu0 %v1564
      %v1630 = vpop.f32.mrf.mxu0
      %v1631 = vadd.f32 0.0, %v1630
      %v1632 = vpop.f32.mrf.mxu0
      %1633 = vdwg.mxu0
      %1634 = vmatpush.bf16.msra.mxu0 0
      %1635 = vmatpush.bf16.msra.mxu0 0
      %1636 = vmatpush.bf16.msra.mxu0 0
      %1637 = vmatpush.bf16.msra.mxu0 %v1211
      %1638 = vmatpush.bf16.msra.mxu0 %v1133
      %1639 = vmatpush.bf16.msra.mxu0 %v1123
      %1640 = vmatpush.bf16.msra.mxu0 %v1113
      %1641 = vmatpush.bf16.msra.mxu0 %v1103
      %1642 = vmatmul.bf16.gmra.mxu0 %v1564
      %v1643 = vpop.f32.mrf.mxu0
      %v1644 = vadd.f32 0.0, %v1643
      %v1645 = vpop.f32.mrf.mxu0
      %1646 = vdwg.mxu0
      %1647 = vmatpush.bf16.msra.mxu0 0
      %1648 = vmatpush.bf16.msra.mxu0 0
      %1649 = vmatpush.bf16.msra.mxu0 0
      %1650 = vmatpush.bf16.msra.mxu0 %v1214
      %1651 = vmatpush.bf16.msra.mxu0 %v1134
      %1652 = vmatpush.bf16.msra.mxu0 %v1124
      %1653 = vmatpush.bf16.msra.mxu0 %v1114
      %1654 = vmatpush.bf16.msra.mxu0 %v1104
      %1655 = vmatmul.bf16.gmra.mxu0 %v1564
      %v1656 = vpop.f32.mrf.mxu0
      %v1657 = vadd.f32 0.0, %v1656
      %v1658 = vpop.f32.mrf.mxu0
      %1659 = vdwg.mxu0
      %1660 = vmatpush.bf16.msra.mxu0 0
      %1661 = vmatpush.bf16.msra.mxu0 0
      %1662 = vmatpush.bf16.msra.mxu0 0
      %1663 = vmatpush.bf16.msra.mxu0 %v1217
      %1664 = vmatpush.bf16.msra.mxu0 %v1135
      %1665 = vmatpush.bf16.msra.mxu0 %v1125
      %1666 = vmatpush.bf16.msra.mxu0 %v1115
      %1667 = vmatpush.bf16.msra.mxu0 %v1105
      %1668 = vmatmul.bf16.gmra.mxu0 %v1564
      %v1669 = vpop.f32.mrf.mxu0
      %v1670 = vadd.f32 0.0, %v1669
      %v1671 = vpop.f32.mrf.mxu0
      %1672 = vdwg.mxu0
      %1673 = vmatpush.bf16.msra.mxu0 0
      %1674 = vmatpush.bf16.msra.mxu0 0
      %1675 = vmatpush.bf16.msra.mxu0 0
      %1676 = vmatpush.bf16.msra.mxu0 %v1220
      %1677 = vmatpush.bf16.msra.mxu0 %v1136
      %1678 = vmatpush.bf16.msra.mxu0 %v1126
      %1679 = vmatpush.bf16.msra.mxu0 %v1116
      %1680 = vmatpush.bf16.msra.mxu0 %v1106
      %1681 = vmatmul.bf16.gmra.mxu0 %v1564
      %v1682 = vpop.f32.mrf.mxu0
      %v1683 = vadd.f32 0.0, %v1682
      %v1684 = vpop.f32.mrf.mxu0
      %1685 = vdwg.mxu0
      %1686 = vmatpush.bf16.msra.mxu0 0
      %1687 = vmatpush.bf16.msra.mxu0 0
      %1688 = vmatpush.bf16.msra.mxu0 0
      %1689 = vmatpush.bf16.msra.mxu0 %v1567
      %1690 = vmatpush.bf16.msra.mxu0 %v1557
      %1691 = vmatpush.bf16.msra.mxu0 %v1556
      %1692 = vmatpush.bf16.msra.mxu0 %v1555
      %1693 = vmatpush.bf16.msra.mxu0 %v1554
      %1694 = vmatmul.bf16.gmra.mxu0 %v1564
      %v1695 = vpop.f32.mrf.mxu0
      %v1696 = vadd.f32 0.0, %v1695
      %v1697 = vpop.f32.mrf.mxu0
      %1698 = vdwg.mxu0
      %v1699 = vadd.f32 %v1401, %v1579
      %v1700 = vadd.f32 %v1414, %v1592
      %v1701 = vadd.f32 %v1427, %v1605
      %v1702 = vadd.f32 %v1440, %v1618
      %v1703 = vadd.f32 %v1453, %v1631
      %v1704 = vadd.f32 %v1466, %v1644
      %v1705 = vadd.f32 %v1479, %v1657
      %v1706 = vadd.f32 %v1492, %v1670
      %v1707 = vadd.f32 %v1505, %v1683
      %v1708 = vadd.f32 %v1518, %v1696
      %v1709 = vld [vmem:[%s293] sm:$0xff]
      %v1710 = vld [vmem:[%s293 + $0x8] sm:$0x3]
      %v1713 = vperm.slane %v1709, 0
      %v1714 = vperm.slane %v1709, 1
      %v1715 = vperm.slane %v1709, 2
      %v1716 = vperm.slane %v1709, 3
      %v1717 = vperm.slane %v1709, 4
      %v1718 = vperm.slane %v1709, 5
      %v1719 = vperm.slane %v1709, 6
      %v1720 = vperm.slane %v1709, 7
      %v1721 = vperm.slane %v1710, 0
      %v1722 = vperm.slane %v1710, 1
      %v1733 = vmul.f32 %v1699, %v1713
      %v1734 = vmul.f32 %v1700, %v1714
      %v1735 = vmul.f32 %v1701, %v1715
      %v1736 = vmul.f32 %v1702, %v1716
      %v1737 = vmul.f32 %v1703, %v1717
      %v1738 = vmul.f32 %v1704, %v1718
      %v1739 = vmul.f32 %v1705, %v1719
      %v1740 = vmul.f32 %v1706, %v1720
      %v1741 = vmul.f32 %v1707, %v1721
      %v1742 = vmul.f32 %v1708, %v1722
      %v1743 = vadd.f32 %v1733, %v1734
      %v1744 = vadd.f32 %v1743, %v1735
      %v1745 = vadd.f32 %v1744, %v1736
      %v1746 = vadd.f32 %v1745, %v1737
      %v1747 = vadd.f32 %v1746, %v1738
      %v1748 = vadd.f32 %v1747, %v1739
      %v1749 = vadd.f32 %v1748, %v1740
      %v1750 = vadd.f32 %v1749, %v1741
      %v1751 = vadd.f32 %v1750, %v1742
      %1752 = vadd.xlane.f32.xlu0 %v1751
      %v1753 = vpop.xlane.xlu0 %1752
      %vm1754 = vcmask 7168
      %1755 = vst.msk [vmem:[%s302] sm:$0xff] %vm1754, %v1753
      %v1756 = vmul.f32 %v1733, %v1733
      %v1757 = vmul.f32 %v1734, %v1734
      %v1758 = vmul.f32 %v1735, %v1735
      %v1759 = vmul.f32 %v1736, %v1736
      %v1760 = vmul.f32 %v1737, %v1737
      %v1761 = vmul.f32 %v1738, %v1738
      %v1762 = vmul.f32 %v1739, %v1739
      %v1763 = vmul.f32 %v1740, %v1740
      %v1764 = vmul.f32 %v1741, %v1741
      %v1765 = vmul.f32 %v1742, %v1742
      %v1766 = vadd.f32 %v1756, %v1757
      %v1767 = vadd.f32 %v1766, %v1758
      %v1768 = vadd.f32 %v1767, %v1759
      %v1769 = vadd.f32 %v1768, %v1760
      %v1770 = vadd.f32 %v1769, %v1761
      %v1771 = vadd.f32 %v1770, %v1762
      %v1772 = vadd.f32 %v1771, %v1763
      %v1773 = vadd.f32 %v1772, %v1764
      %v1774 = vadd.f32 %v1773, %v1765
      %1775 = vadd.xlane.f32.xlu0 %v1774
      %v1776 = vpop.xlane.xlu0 %1775
      %1777 = vst.msk [vmem:[%s306] sm:$0xff] %vm1754, %v1776
      %v1778 = vpack.c.bf16 %v1734, %v1733
      %v1779 = vpack.c.bf16 %v1736, %v1735
      %v1780 = vpack.c.bf16 %v1738, %v1737
      %v1781 = vpack.c.bf16 %v1740, %v1739
      %v1782 = vpack.c.bf16 %v1742, %v1741
      %1783 = vst [vmem:[%s298] sm:$0xff] %v1778
      %1784 = vst [vmem:[%s298 + $0x8] sm:$0xff] %v1779
      %1785 = vst [vmem:[%s298 + $0x10] sm:$0xff] %v1780
      %1786 = vst [vmem:[%s298 + $0x18] sm:$0xff] %v1781
      %1787 = vst [vmem:[%s298 + $0x20] sm:$0xff] %v1782
      %p1788 = scmp.lt.s32.totalorder %s18, 1
      %s1789 = scalar_select %p1788, %s18, 1
      %s1790 = smul.addr %s1789, 10
      %s1791 = smul.addr %s1790, 4
      %s1792 = scalar_lea.vmem %s4, %s1791
      %p1793 = scmp.lt.s32.totalorder %s18, 1
      %s1794 = scalar_select %p1793, %s18, 1
      %s1795 = smul.addr %s1794, 8
      %s1796 = scalar_lea.vmem %s5, %s1795
      %p1797 = scmp.lt.s32.totalorder %s18, 1
      %s1798 = scalar_select %p1797, %s18, 1
      %s1799 = smul.addr %s1798, 8
      %s1800 = scalar_lea.vmem %s6, %s1799
      // Predicated region
      $region37: #{transformer_in_feat_forward.2} parent=35 // pred_check
        %p1801 = pneg %p135
      $region38: #{transformer_in_feat_forward.2} parent=35 // pred_check_branch
        %1803 = sbr.rel (%p1801) target = $region40
      $region39: #{transformer_in_feat_forward.2} parent=35 // pred_region
        _
      $region40: #{transformer_in_feat_forward.2} parent=35 // pred_fallthru
        _
      // Predicated region
      $region41: #{transformer_in_feat_forward.2} parent=35 // pred_check
        %p1804 = pneg %p161
      $region42: #{transformer_in_feat_forward.2} parent=35 // pred_check_branch
        %1806 = sbr.rel (%p1804) target = $region44
      $region43: #{transformer_in_feat_forward.2} parent=35 // pred_region
        _
      $region44: #{transformer_in_feat_forward.2} parent=35 // pred_fallthru
        _
      // Predicated region
      $region45: #{transformer_in_feat_forward.2} parent=35 // pred_check
        %p1807 = pneg %p187
      $region46: #{transformer_in_feat_forward.2} parent=35 // pred_check_branch
        %1809 = sbr.rel (%p1807) target = $region48
      $region47: #{transformer_in_feat_forward.2} parent=35 // pred_region
        _
      $region48: #{transformer_in_feat_forward.2} parent=35 // pred_fallthru
        _
    $region36: #{transformer_in_feat_forward.2} parent=5 // pred_fallthru
      _
    %p1810 = scmp.le.s32.totalorder 2, %s13
    // Predicated region
    $region49: #{transformer_in_feat_forward.2} parent=5 // pred_check
      %p1811 = pneg %p1810
    $region50: #{transformer_in_feat_forward.2} parent=5 // pred_check_branch
      %1813 = sbr.rel (%p1811) target = $region52
    $region51: #{transformer_in_feat_forward.2} parent=5 // pred_region
      %s1814 = ssub.s32 %s13, 2
      // Predicated region
      $region53: #{transformer_in_feat_forward.2} parent=51 // pred_check
        %p1815 = pneg %p141
      $region54: #{transformer_in_feat_forward.2} parent=51 // pred_check_branch
        %1817 = sbr.rel (%p1815) target = $region56
      $region55: #{transformer_in_feat_forward.2} parent=51 // pred_region
        %p1818 = scmp.lt.s32.totalorder %s19, 1
        %s1819 = scalar_select %p1818, %s19, 1
        %s1820 = smul.addr %s1819, 10
        %s1821 = smul.addr %s1820, 4
        %s1822 = scalar_lea.vmem %s4, %s1821
      $region56: #{transformer_in_feat_forward.2} parent=51 // pred_fallthru
        _
      // Predicated region
      $region57: #{transformer_in_feat_forward.2} parent=51 // pred_check
        %p1823 = pneg %p167
      $region58: #{transformer_in_feat_forward.2} parent=51 // pred_check_branch
        %1825 = sbr.rel (%p1823) target = $region60
      $region59: #{transformer_in_feat_forward.2} parent=51 // pred_region
        %p1826 = scmp.lt.s32.totalorder %s19, 1
        %s1827 = scalar_select %p1826, %s19, 1
        %s1828 = smul.addr %s1827, 8
        %s1829 = scalar_lea.vmem %s5, %s1828
      $region60: #{transformer_in_feat_forward.2} parent=51 // pred_fallthru
        _
      // Predicated region
      $region61: #{transformer_in_feat_forward.2} parent=51 // pred_check
        %p1830 = pneg %p193
      $region62: #{transformer_in_feat_forward.2} parent=51 // pred_check_branch
        %1832 = sbr.rel (%p1830) target = $region64
      $region63: #{transformer_in_feat_forward.2} parent=51 // pred_region
        %p1833 = scmp.lt.s32.totalorder %s19, 1
        %s1834 = scalar_select %p1833, %s19, 1
        %s1835 = smul.addr %s1834, 8
        %s1836 = scalar_lea.vmem %s6, %s1835
      $region64: #{transformer_in_feat_forward.2} parent=51 // pred_fallthru
        _
    $region52: #{transformer_in_feat_forward.2} parent=5 // pred_fallthru
      _
  $region6: #{transformer_in_feat_forward.2} parent=0 // loop_footer
    %s17 = sadd.s32 1, %s13
  $region7: #{transformer_in_feat_forward.2} parent=0 // loop_footer_branch
    %12 = sbr.rel target = $region3
  $region8: #{transformer_in_feat_forward.2} parent=0 // loop_exit
    _

</llo_original>
